<compile_context>
chip_gen: v5e
topology: v5e:2x2
jax: 0.10.0
libtpu: 0.0.40
codegen_flags: <defaults>
</compile_context>

<pallas_src>
import functools

import jax
import jax.numpy as jnp
from jax import lax
from jax.experimental import pallas as pl
from jax.experimental.pallas import tpu as pltpu

K = 3       # conv kernel width (padding=1, "same")
HALO = 128  # per-side halo columns (one 128-lane block); each fused residual
            # block consumes 2 halo columns -> supports L <= 64 layers.


def _fused_res_stack_kernel(body_ref, left_ref, right_ref,
                            w1_ref, s1_ref, t1_ref, w2_ref, s2_ref, t2_ref,
                            out_ref, *, num_layers, t_tile, seq_len):
    """Fused stack of residual conv blocks, NCL-native layout.

    body_ref  : [1, C, t_tile]  original columns [i*tT, (i+1)*tT)
    left_ref  : [1, C, HALO]    original columns [i*tT - 128, i*tT)   (clamped)
    right_ref : [1, C, HALO]    original columns [(i+1)*tT, +128)     (clamped)
    w*_ref    : [L, K, C, C]    bf16 per-tap weights W[l, k, c_out, c_in]
    s*,t*_ref : [L, C, 1]       folded BN scale / shift (conv bias folded in)
    out_ref   : [1, C, t_tile]
    """
    win = t_tile + 2 * HALO
    i = pl.program_id(1)
    C = body_ref.shape[1]

    # Assemble the compute window (lane axis = time; width multiple of 128).
    a0 = jnp.concatenate([left_ref[0], body_ref[0], right_ref[0]], axis=1)  # [C, win] f32

    def conv3(x_f32, w_ref, l):
        # One bf16 cast of the window, three per-tap MXU matmuls (f32 accum),
        # tap shifts applied to the f32 outputs via XLU rolls.
        xb = x_f32.astype(jnp.bfloat16)
        y0 = jnp.dot(w_ref[l, 0], xb, preferred_element_type=jnp.float32)  # tap uses x[t-1]
        y1 = jnp.dot(w_ref[l, 1], xb, preferred_element_type=jnp.float32)  # tap uses x[t]
        y2 = jnp.dot(w_ref[l, 2], xb, preferred_element_type=jnp.float32)  # tap uses x[t+1]
        return pltpu.roll(y0, 1, axis=1) + y1 + pltpu.roll(y2, win - 1, axis=1)

    def run_stack(a, apply_mask):
        if apply_mask:
            # Columns inside the original sequence; hoisted out of the layer
            # loop (broadcast once).  jnp.where (not multiply) so garbage
            # lanes from clamped/partial blocks cannot inject NaNs.
            col = lax.broadcasted_iota(jnp.int32, (1, win), 1) + (i * t_tile - HALO)
            valid = jnp.broadcast_to(
                jnp.logical_and(col >= 0, col < seq_len), (C, win))
            a = jnp.where(valid, a, 0.0)
        for l in range(num_layers):            # static unroll (module caps L<=5)
            h = conv3(a, w1_ref, l)
            h = jnp.maximum(h * s1_ref[l] + t1_ref[l], 0.0)
            if apply_mask:
                h = jnp.where(valid, h, 0.0)
            g = conv3(h, w2_ref, l)
            g = g * s2_ref[l] + t2_ref[l]
            a = jnp.maximum(g + a, 0.0)        # residual path stays f32
            if apply_mask:
                a = jnp.where(valid, a, 0.0)
        return a

    # Interior tiles: every window column is real in-range data -> no masking.
    interior = jnp.logical_and(i > 0, (i + 1) * t_tile + HALO <= seq_len)

    # Roll wrap-around garbage only reaches 2L <= HALO columns from the window
    # edges, so the output slice [HALO, HALO + t_tile) (lane-aligned) is exact.
    @pl.when(interior)
    def _():
        out_ref[0, :, :] = run_stack(a0, False)[:, HALO:HALO + t_tile]

    @pl.when(jnp.logical_not(interior))
    def _():
        out_ref[0, :, :] = run_stack(a0, True)[:, HALO:HALO + t_tile]


def fused_res_stack(x_ncl, w1, s1, t1, w2, s2, t2, *, t_tile=None):
    """Run the whole residual-layer stack in one pallas_call.

    x_ncl: [B, C, T] float32 (PyTorch NCL layout, kept native: T -> lanes).
    """
    B, C, T = x_ncl.shape
    L = w1.shape[0]
    assert 2 * L <= HALO, "increase HALO for very deep stacks"

    if t_tile is None:
        # Lane-dense tile (multiple of 128); big enough to amortize per-step
        # pipeline overhead, small enough to stay far below v7x's 64 MiB VMEM.
        t_tile = max(128, min(4096, pl.cdiv(T, 128) * 128))
        # Keep >= 2 grid steps when possible so both v7x TensorCores get work.
        if B * pl.cdiv(T, t_tile) < 2 and T > 128:
            t_tile = max(128, pl.cdiv(pl.cdiv(T, 2), 128) * 128)
    assert t_tile % 128 == 0

    n_t = pl.cdiv(T, t_tile)
    hb = t_tile // HALO           # body width in 128-column halo blocks
    n128 = pl.cdiv(T, HALO)       # number of 128-column blocks in T

    kernel = functools.partial(_fused_res_stack_kernel,
                               num_layers=L, t_tile=t_tile, seq_len=T)
    out = pl.pallas_call(
        kernel,
        out_shape=jax.ShapeDtypeStruct((B, C, T), jnp.float32),
        grid=(B, n_t),
        in_specs=[
            # window body: original columns [i*t_tile, (i+1)*t_tile)
            pl.BlockSpec((1, C, t_tile), lambda b, i: (b, 0, i)),
            # left halo (clamped at i=0; masked in-kernel)
            pl.BlockSpec((1, C, HALO),
                         lambda b, i: (b, 0, jnp.maximum(i * hb - 1, 0))),
            # right halo (clamped at the tail; masked in-kernel)
            pl.BlockSpec((1, C, HALO),
                         lambda b, i: (b, 0, jnp.minimum((i + 1) * hb, n128 - 1))),
            # per-layer weights / folded BN params (resident across the grid)
            pl.BlockSpec((L, K, C, C), lambda b, i: (0, 0, 0, 0)),
            pl.BlockSpec((L, C, 1), lambda b, i: (0, 0, 0)),
            pl.BlockSpec((L, C, 1), lambda b, i: (0, 0, 0)),
            pl.BlockSpec((L, K, C, C), lambda b, i: (0, 0, 0, 0)),
            pl.BlockSpec((L, C, 1), lambda b, i: (0, 0, 0)),
            pl.BlockSpec((L, C, 1), lambda b, i: (0, 0, 0)),
        ],
        out_specs=pl.BlockSpec((1, C, t_tile), lambda b, i: (b, 0, i)),
        compiler_params=pltpu.CompilerParams(
            dimension_semantics=("parallel", "parallel"),
            vmem_limit_bytes=32 * 1024 * 1024),
    )(x_ncl, x_ncl, x_ncl, w1, s1, t1, w2, s2, t2)
    return out


def make_res_block_params(key, C):
    """Deterministic parameters for one residual block (BN folded, eval mode)."""
    k1, k2, k3, k4 = jax.random.split(key, 4)
    fan_in = C * K
    bound = 1.0 / float(fan_in) ** 0.5
    # PyTorch Conv1d weight is [C_out, C_in, K]; stored here as [K, C_in, C_out].
    w1 = jax.random.uniform(k1, (K, C, C), jnp.float32, -bound, bound)
    b1 = jax.random.uniform(k2, (C,), jnp.float32, -bound, bound)
    w2 = jax.random.uniform(k3, (K, C, C), jnp.float32, -bound, bound)
    b2 = jax.random.uniform(k4, (C,), jnp.float32, -bound, bound)

    eps = 1e-5
    idx = jnp.arange(C, dtype=jnp.float32)
    gamma1, beta1 = jnp.ones((C,)), jnp.zeros((C,))
    mean1, var1 = 0.01 * idx, 1.0 + 0.05 * idx
    gamma2, beta2 = 0.9 * jnp.ones((C,)), 0.1 * jnp.ones((C,))
    mean2, var2 = -0.01 * idx, 1.0 + 0.02 * idx

    s1 = gamma1 / jnp.sqrt(var1 + eps)
    t1 = beta1 - mean1 * s1 + b1 * s1       # conv bias folded into BN shift
    s2 = gamma2 / jnp.sqrt(var2 + eps)
    t2 = beta2 - mean2 * s2 + b2 * s2
    return dict(w1=w1, s1=s1, t1=t1, w2=w2, s2=s2, t2=t2)


def pack_params(params_list):
    """Stack per-layer params into the fused-kernel layout (bf16 MXU weights)."""
    C = params_list[0]['w1'].shape[1]

    def taps(w):  # [K, C_in, C_out] -> [K, C_out, C_in]
        return jnp.transpose(w, (0, 2, 1))

    w1 = jnp.stack([taps(p['w1']) for p in params_list]).astype(jnp.bfloat16)
    w2 = jnp.stack([taps(p['w2']) for p in params_list]).astype(jnp.bfloat16)
    s1 = jnp.stack([p['s1'].reshape(C, 1) for p in params_list])
    t1 = jnp.stack([p['t1'].reshape(C, 1) for p in params_list])
    s2 = jnp.stack([p['s2'].reshape(C, 1) for p in params_list])
    t2 = jnp.stack([p['t2'].reshape(C, 1) for p in params_list])
    return w1, s1, t1, w2, s2, t2


def simple_cnn_res_forward(x_ncl, x_len, params_list,
                           dropout=False, dropout_input=False, t_tile=None):
    """SimpleCNN_res.forward. x_ncl: [B, C, T] (PyTorch NCL). Returns (x, x_len)."""
    x = x_ncl.astype(jnp.float32)          # x = x.float()
    # dropout / dropout_input default False; nn.Dropout is identity in eval mode.
    w1, s1, t1, w2, s2, t2 = pack_params(params_list)
    x = fused_res_stack(x, w1, s1, t1, w2, s2, t2, t_tile=t_tile)
    return x, x_len


# ---- pure-JAX reference (channels-last, per layer); emulates the kernel's ----
# ---- bf16 MXU operands (f32 accumulation) so a tight tolerance can be used ---
def _bf(v):
    return v.astype(jnp.bfloat16).astype(jnp.float32)


def _ref_block(x_ntc, p):
    B, T, C = x_ntc.shape
    xpad = jnp.pad(_bf(x_ntc), ((0, 0), (1, 1), (0, 0)))
    h = sum(jnp.einsum('bti,io->bto', xpad[:, k:k + T, :], _bf(p['w1'][k]))
            for k in range(K))
    h = jnp.maximum(h * p['s1'][None, None, :] + p['t1'][None, None, :], 0.0)
    hpad = jnp.pad(_bf(h), ((0, 0), (1, 1), (0, 0)))
    g = sum(jnp.einsum('bti,io->bto', hpad[:, k:k + T, :], _bf(p['w2'][k]))
            for k in range(K))
    g = g * p['s2'][None, None, :] + p['t2'][None, None, :]
    return jnp.maximum(g + x_ntc, 0.0)


def _ref_forward(x_ncl, params_list):
    xr = jnp.transpose(x_ncl, (0, 2, 1))
    for p in params_list:
        xr = _ref_block(xr, p)
    return jnp.transpose(xr, (0, 2, 1))


if __name__ == "__main__":
    key = jax.random.PRNGKey(0)
    B, C, T = 2, 32, 16          # batch, channels, sequence length
    layers = 3

    k_x, k_x2, k_x3, k1, k2, k3 = jax.random.split(key, 6)
    x = jax.random.normal(k_x, (B, C, T), jnp.float32)   # PyTorch NCL input
    x_len = jnp.full((B,), T, dtype=jnp.int32)
    params = [make_res_block_params(k, C) for k in (k1, k2, k3)]

    y, y_len = simple_cnn_res_forward(x, x_len, params)
    y = jax.block_until_ready(y)

    y_ref = _ref_forward(x, params)
    assert y.shape == (B, C, T) and y.dtype == jnp.float32
    assert jnp.allclose(y, y_ref, atol=2e-3, rtol=2e-3), "mismatch vs reference"
    assert jnp.array_equal(y_len, x_len)

    # Multi-tile T with a ragged last tile: exercises inter-tile halos and the
    # boundary masking / masked partial stores on the T-tiled grid.
    T2 = 300
    x2 = jax.random.normal(k_x2, (B, C, T2), jnp.float32)
    y2, _ = simple_cnn_res_forward(x2, jnp.full((B,), T2, jnp.int32), params,
                                   t_tile=128)
    y2 = jax.block_until_ready(y2)
    y2_ref = _ref_forward(x2, params)
    assert jnp.allclose(y2, y2_ref, atol=2e-3, rtol=2e-3), "multi-tile mismatch"

    # Exact multiple of the tile size: exercises the unmasked interior fast path
    # (tiles 1..3 are fully interior) alongside the boundary tiles.
    T3 = 640
    x3 = jax.random.normal(k_x3, (B, C, T3), jnp.float32)
    y3, _ = simple_cnn_res_forward(x3, jnp.full((B,), T3, jnp.int32), params,
                                   t_tile=128)
    y3 = jax.block_until_ready(y3)
    y3_ref = _ref_forward(x3, params)
    assert jnp.allclose(y3, y3_ref, atol=2e-3, rtol=2e-3), "interior-path mismatch"

    print("KERNEL_OK")
</pallas_src>

<mosaic_0001>
module attributes {stable_mosaic.version = 11 : i64} {
  func.func @_fused_res_stack_kernel(%arg0: i32, %arg1: i32, %arg2: memref<1x32x128xf32, #tpu.memory_space<vmem>>, %arg3: memref<1x32x128xf32, #tpu.memory_space<vmem>>, %arg4: memref<1x32x128xf32, #tpu.memory_space<vmem>>, %arg5: memref<3x3x32x32xbf16, #tpu.memory_space<vmem>>, %arg6: memref<3x32x1xf32, #tpu.memory_space<vmem>>, %arg7: memref<3x32x1xf32, #tpu.memory_space<vmem>>, %arg8: memref<3x3x32x32xbf16, #tpu.memory_space<vmem>>, %arg9: memref<3x32x1xf32, #tpu.memory_space<vmem>>, %arg10: memref<3x32x1xf32, #tpu.memory_space<vmem>>, %arg11: memref<1x32x128xf32, #tpu.memory_space<vmem>>) attributes {dimension_semantics = [#tpu.dimension_semantics<parallel>, #tpu.dimension_semantics<parallel>], iteration_bounds = array<i64: 2, 1>, scalar_prefetch = 0 : i64, scratch_operands = 0 : i64, tpu.core_type = #tpu.core_type<tc>, window_params = [{transform_indices = @transform_0, window_bounds = array<i64: 1, 32, 128>}, {transform_indices = @transform_1, window_bounds = array<i64: 1, 32, 128>}, {transform_indices = @transform_2, window_bounds = array<i64: 1, 32, 128>}, {pipeline_mode = #tpu.pipeline_mode<synchronous>, transform_indices = @transform_3, window_bounds = array<i64: 3, 3, 32, 32>}, {pipeline_mode = #tpu.pipeline_mode<synchronous>, transform_indices = @transform_4, window_bounds = array<i64: 3, 32, 1>}, {pipeline_mode = #tpu.pipeline_mode<synchronous>, transform_indices = @transform_5, window_bounds = array<i64: 3, 32, 1>}, {pipeline_mode = #tpu.pipeline_mode<synchronous>, transform_indices = @transform_6, window_bounds = array<i64: 3, 3, 32, 32>}, {pipeline_mode = #tpu.pipeline_mode<synchronous>, transform_indices = @transform_7, window_bounds = array<i64: 3, 32, 1>}, {pipeline_mode = #tpu.pipeline_mode<synchronous>, transform_indices = @transform_8, window_bounds = array<i64: 3, 32, 1>}, {transform_indices = @transform_9, window_bounds = array<i64: 1, 32, 128>}]} {
    %c0 = arith.constant 0 : index
    %c0_0 = arith.constant 0 : index
    %c0_1 = arith.constant 0 : index
    %0 = vector.load %arg3[%c0, %c0_0, %c0_1] : memref<1x32x128xf32, #tpu.memory_space<vmem>>, vector<1x32x128xf32>
    %1 = vector.shape_cast %0 : vector<1x32x128xf32> to vector<32x128xf32>
    %c0_2 = arith.constant 0 : index
    %c0_3 = arith.constant 0 : index
    %c0_4 = arith.constant 0 : index
    %2 = vector.load %arg2[%c0_2, %c0_3, %c0_4] : memref<1x32x128xf32, #tpu.memory_space<vmem>>, vector<1x32x128xf32>
    %3 = vector.shape_cast %2 : vector<1x32x128xf32> to vector<32x128xf32>
    %c0_5 = arith.constant 0 : index
    %c0_6 = arith.constant 0 : index
    %c0_7 = arith.constant 0 : index
    %4 = vector.load %arg4[%c0_5, %c0_6, %c0_7] : memref<1x32x128xf32, #tpu.memory_space<vmem>>, vector<1x32x128xf32>
    %5 = vector.shape_cast %4 : vector<1x32x128xf32> to vector<32x128xf32>
    %6 = tpu.concatenate %1, %3, %5 in 1 : vector<32x128xf32>, vector<32x128xf32>, vector<32x128xf32> -> vector<32x384xf32>
    %c0_i32 = arith.constant 0 : i32
    %7 = arith.cmpi sgt, %arg1, %c0_i32 : i32
    %c1_i32 = arith.constant 1 : i32
    %8 = arith.addi %arg1, %c1_i32 : i32
    %c128_i32 = arith.constant 128 : i32
    %9 = arith.muli %8, %c128_i32 : i32
    %c128_i32_8 = arith.constant 128 : i32
    %10 = arith.addi %9, %c128_i32_8 : i32
    %c16_i32 = arith.constant 16 : i32
    %11 = arith.cmpi sle, %10, %c16_i32 : i32
    %12 = arith.andi %7, %11 : i1
    %13 = arith.extui %12 : i1 to i32
    %c0_i32_9 = arith.constant 0 : i32
    %14 = arith.cmpi ne, %13, %c0_i32_9 : i32
    scf.if %14 {
      %18 = arith.truncf %6 : vector<32x384xf32> to vector<32x384xbf16>
      %c0_11 = arith.constant 0 : index
      %c0_12 = arith.constant 0 : index
      %c0_13 = arith.constant 0 : index
      %c0_14 = arith.constant 0 : index
      %19 = vector.load %arg5[%c0_11, %c0_12, %c0_13, %c0_14] : memref<3x3x32x32xbf16, #tpu.memory_space<vmem>>, vector<1x1x32x32xbf16>
      %20 = vector.shape_cast %19 : vector<1x1x32x32xbf16> to vector<32x32xbf16>
      %cst = arith.constant dense<0.000000e+00> : vector<32x384xf32>
      %21 = tpu.matmul %20, %18, %cst {dimension_numbers = #tpu.dot_dimension_numbers<[1], [0], [0], [1], [0, 0, 1, 1], [], []>} : vector<32x32xbf16>, vector<32x384xbf16>, vector<32x384xf32> -> vector<32x384xf32>
      %c0_15 = arith.constant 0 : index
      %c1 = arith.constant 1 : index
      %c0_16 = arith.constant 0 : index
      %c0_17 = arith.constant 0 : index
      %22 = vector.load %arg5[%c0_15, %c1, %c0_16, %c0_17] : memref<3x3x32x32xbf16, #tpu.memory_space<vmem>>, vector<1x1x32x32xbf16>
      %23 = vector.shape_cast %22 : vector<1x1x32x32xbf16> to vector<32x32xbf16>
      %cst_18 = arith.constant dense<0.000000e+00> : vector<32x384xf32>
      %24 = tpu.matmul %23, %18, %cst_18 {dimension_numbers = #tpu.dot_dimension_numbers<[1], [0], [0], [1], [0, 0, 1, 1], [], []>} : vector<32x32xbf16>, vector<32x384xbf16>, vector<32x384xf32> -> vector<32x384xf32>
      %c0_19 = arith.constant 0 : index
      %c2 = arith.constant 2 : index
      %c0_20 = arith.constant 0 : index
      %c0_21 = arith.constant 0 : index
      %25 = vector.load %arg5[%c0_19, %c2, %c0_20, %c0_21] : memref<3x3x32x32xbf16, #tpu.memory_space<vmem>>, vector<1x1x32x32xbf16>
      %26 = vector.shape_cast %25 : vector<1x1x32x32xbf16> to vector<32x32xbf16>
      %cst_22 = arith.constant dense<0.000000e+00> : vector<32x384xf32>
      %27 = tpu.matmul %26, %18, %cst_22 {dimension_numbers = #tpu.dot_dimension_numbers<[1], [0], [0], [1], [0, 0, 1, 1], [], []>} : vector<32x32xbf16>, vector<32x384xbf16>, vector<32x384xf32> -> vector<32x384xf32>
      %c1_i32_23 = arith.constant 1 : i32
      %28 = tpu.dynamic_rotate %21 by %c1_i32_23 dim 1 : vector<32x384xf32>, i32 -> vector<32x384xf32>
      %29 = arith.addf %28, %24 : vector<32x384xf32>
      %c383_i32 = arith.constant 383 : i32
      %30 = tpu.dynamic_rotate %27 by %c383_i32 dim 1 : vector<32x384xf32>, i32 -> vector<32x384xf32>
      %31 = arith.addf %29, %30 : vector<32x384xf32>
      %c0_24 = arith.constant 0 : index
      %c0_25 = arith.constant 0 : index
      %c0_26 = arith.constant 0 : index
      %32 = vector.load %arg6[%c0_24, %c0_25, %c0_26] : memref<3x32x1xf32, #tpu.memory_space<vmem>>, vector<1x32x1xf32>
      %33 = vector.shape_cast %32 : vector<1x32x1xf32> to vector<32x1xf32>
      %34 = vector.broadcast %33 : vector<32x1xf32> to vector<32x384xf32>
      %35 = arith.mulf %31, %34 : vector<32x384xf32>
      %c0_27 = arith.constant 0 : index
      %c0_28 = arith.constant 0 : index
      %c0_29 = arith.constant 0 : index
      %36 = vector.load %arg7[%c0_27, %c0_28, %c0_29] : memref<3x32x1xf32, #tpu.memory_space<vmem>>, vector<1x32x1xf32>
      %37 = vector.shape_cast %36 : vector<1x32x1xf32> to vector<32x1xf32>
      %38 = vector.broadcast %37 : vector<32x1xf32> to vector<32x384xf32>
      %39 = arith.addf %35, %38 : vector<32x384xf32>
      %cst_30 = arith.constant 0.000000e+00 : f32
      %40 = vector.broadcast %cst_30 : f32 to vector<32x384xf32>
      %41 = arith.maximumf %39, %40 : vector<32x384xf32>
      %42 = arith.truncf %41 : vector<32x384xf32> to vector<32x384xbf16>
      %c0_31 = arith.constant 0 : index
      %c0_32 = arith.constant 0 : index
      %c0_33 = arith.constant 0 : index
      %c0_34 = arith.constant 0 : index
      %43 = vector.load %arg8[%c0_31, %c0_32, %c0_33, %c0_34] : memref<3x3x32x32xbf16, #tpu.memory_space<vmem>>, vector<1x1x32x32xbf16>
      %44 = vector.shape_cast %43 : vector<1x1x32x32xbf16> to vector<32x32xbf16>
      %cst_35 = arith.constant dense<0.000000e+00> : vector<32x384xf32>
      %45 = tpu.matmul %44, %42, %cst_35 {dimension_numbers = #tpu.dot_dimension_numbers<[1], [0], [0], [1], [0, 0, 1, 1], [], []>} : vector<32x32xbf16>, vector<32x384xbf16>, vector<32x384xf32> -> vector<32x384xf32>
      %c0_36 = arith.constant 0 : index
      %c1_37 = arith.constant 1 : index
      %c0_38 = arith.constant 0 : index
      %c0_39 = arith.constant 0 : index
      %46 = vector.load %arg8[%c0_36, %c1_37, %c0_38, %c0_39] : memref<3x3x32x32xbf16, #tpu.memory_space<vmem>>, vector<1x1x32x32xbf16>
      %47 = vector.shape_cast %46 : vector<1x1x32x32xbf16> to vector<32x32xbf16>
      %cst_40 = arith.constant dense<0.000000e+00> : vector<32x384xf32>
      %48 = tpu.matmul %47, %42, %cst_40 {dimension_numbers = #tpu.dot_dimension_numbers<[1], [0], [0], [1], [0, 0, 1, 1], [], []>} : vector<32x32xbf16>, vector<32x384xbf16>, vector<32x384xf32> -> vector<32x384xf32>
      %c0_41 = arith.constant 0 : index
      %c2_42 = arith.constant 2 : index
      %c0_43 = arith.constant 0 : index
      %c0_44 = arith.constant 0 : index
      %49 = vector.load %arg8[%c0_41, %c2_42, %c0_43, %c0_44] : memref<3x3x32x32xbf16, #tpu.memory_space<vmem>>, vector<1x1x32x32xbf16>
      %50 = vector.shape_cast %49 : vector<1x1x32x32xbf16> to vector<32x32xbf16>
      %cst_45 = arith.constant dense<0.000000e+00> : vector<32x384xf32>
      %51 = tpu.matmul %50, %42, %cst_45 {dimension_numbers = #tpu.dot_dimension_numbers<[1], [0], [0], [1], [0, 0, 1, 1], [], []>} : vector<32x32xbf16>, vector<32x384xbf16>, vector<32x384xf32> -> vector<32x384xf32>
      %c1_i32_46 = arith.constant 1 : i32
      %52 = tpu.dynamic_rotate %45 by %c1_i32_46 dim 1 : vector<32x384xf32>, i32 -> vector<32x384xf32>
      %53 = arith.addf %52, %48 : vector<32x384xf32>
      %c383_i32_47 = arith.constant 383 : i32
      %54 = tpu.dynamic_rotate %51 by %c383_i32_47 dim 1 : vector<32x384xf32>, i32 -> vector<32x384xf32>
      %55 = arith.addf %53, %54 : vector<32x384xf32>
      %c0_48 = arith.constant 0 : index
      %c0_49 = arith.constant 0 : index
      %c0_50 = arith.constant 0 : index
      %56 = vector.load %arg9[%c0_48, %c0_49, %c0_50] : memref<3x32x1xf32, #tpu.memory_space<vmem>>, vector<1x32x1xf32>
      %57 = vector.shape_cast %56 : vector<1x32x1xf32> to vector<32x1xf32>
      %58 = vector.broadcast %57 : vector<32x1xf32> to vector<32x384xf32>
      %59 = arith.mulf %55, %58 : vector<32x384xf32>
      %c0_51 = arith.constant 0 : index
      %c0_52 = arith.constant 0 : index
      %c0_53 = arith.constant 0 : index
      %60 = vector.load %arg10[%c0_51, %c0_52, %c0_53] : memref<3x32x1xf32, #tpu.memory_space<vmem>>, vector<1x32x1xf32>
      %61 = vector.shape_cast %60 : vector<1x32x1xf32> to vector<32x1xf32>
      %62 = vector.broadcast %61 : vector<32x1xf32> to vector<32x384xf32>
      %63 = arith.addf %59, %62 : vector<32x384xf32>
      %64 = arith.addf %63, %6 : vector<32x384xf32>
      %cst_54 = arith.constant 0.000000e+00 : f32
      %65 = vector.broadcast %cst_54 : f32 to vector<32x384xf32>
      %66 = arith.maximumf %64, %65 : vector<32x384xf32>
      %67 = arith.truncf %66 : vector<32x384xf32> to vector<32x384xbf16>
      %c1_55 = arith.constant 1 : index
      %c0_56 = arith.constant 0 : index
      %c0_57 = arith.constant 0 : index
      %c0_58 = arith.constant 0 : index
      %68 = vector.load %arg5[%c1_55, %c0_56, %c0_57, %c0_58] : memref<3x3x32x32xbf16, #tpu.memory_space<vmem>>, vector<1x1x32x32xbf16>
      %69 = vector.shape_cast %68 : vector<1x1x32x32xbf16> to vector<32x32xbf16>
      %cst_59 = arith.constant dense<0.000000e+00> : vector<32x384xf32>
      %70 = tpu.matmul %69, %67, %cst_59 {dimension_numbers = #tpu.dot_dimension_numbers<[1], [0], [0], [1], [0, 0, 1, 1], [], []>} : vector<32x32xbf16>, vector<32x384xbf16>, vector<32x384xf32> -> vector<32x384xf32>
      %c1_60 = arith.constant 1 : index
      %c1_61 = arith.constant 1 : index
      %c0_62 = arith.constant 0 : index
      %c0_63 = arith.constant 0 : index
      %71 = vector.load %arg5[%c1_60, %c1_61, %c0_62, %c0_63] : memref<3x3x32x32xbf16, #tpu.memory_space<vmem>>, vector<1x1x32x32xbf16>
      %72 = vector.shape_cast %71 : vector<1x1x32x32xbf16> to vector<32x32xbf16>
      %cst_64 = arith.constant dense<0.000000e+00> : vector<32x384xf32>
      %73 = tpu.matmul %72, %67, %cst_64 {dimension_numbers = #tpu.dot_dimension_numbers<[1], [0], [0], [1], [0, 0, 1, 1], [], []>} : vector<32x32xbf16>, vector<32x384xbf16>, vector<32x384xf32> -> vector<32x384xf32>
      %c1_65 = arith.constant 1 : index
      %c2_66 = arith.constant 2 : index
      %c0_67 = arith.constant 0 : index
      %c0_68 = arith.constant 0 : index
      %74 = vector.load %arg5[%c1_65, %c2_66, %c0_67, %c0_68] : memref<3x3x32x32xbf16, #tpu.memory_space<vmem>>, vector<1x1x32x32xbf16>
      %75 = vector.shape_cast %74 : vector<1x1x32x32xbf16> to vector<32x32xbf16>
      %cst_69 = arith.constant dense<0.000000e+00> : vector<32x384xf32>
      %76 = tpu.matmul %75, %67, %cst_69 {dimension_numbers = #tpu.dot_dimension_numbers<[1], [0], [0], [1], [0, 0, 1, 1], [], []>} : vector<32x32xbf16>, vector<32x384xbf16>, vector<32x384xf32> -> vector<32x384xf32>
      %c1_i32_70 = arith.constant 1 : i32
      %77 = tpu.dynamic_rotate %70 by %c1_i32_70 dim 1 : vector<32x384xf32>, i32 -> vector<32x384xf32>
      %78 = arith.addf %77, %73 : vector<32x384xf32>
      %c383_i32_71 = arith.constant 383 : i32
      %79 = tpu.dynamic_rotate %76 by %c383_i32_71 dim 1 : vector<32x384xf32>, i32 -> vector<32x384xf32>
      %80 = arith.addf %78, %79 : vector<32x384xf32>
      %c1_72 = arith.constant 1 : index
      %c0_73 = arith.constant 0 : index
      %c0_74 = arith.constant 0 : index
      %81 = vector.load %arg6[%c1_72, %c0_73, %c0_74] : memref<3x32x1xf32, #tpu.memory_space<vmem>>, vector<1x32x1xf32>
      %82 = vector.shape_cast %81 : vector<1x32x1xf32> to vector<32x1xf32>
      %83 = vector.broadcast %82 : vector<32x1xf32> to vector<32x384xf32>
      %84 = arith.mulf %80, %83 : vector<32x384xf32>
      %c1_75 = arith.constant 1 : index
      %c0_76 = arith.constant 0 : index
      %c0_77 = arith.constant 0 : index
      %85 = vector.load %arg7[%c1_75, %c0_76, %c0_77] : memref<3x32x1xf32, #tpu.memory_space<vmem>>, vector<1x32x1xf32>
      %86 = vector.shape_cast %85 : vector<1x32x1xf32> to vector<32x1xf32>
      %87 = vector.broadcast %86 : vector<32x1xf32> to vector<32x384xf32>
      %88 = arith.addf %84, %87 : vector<32x384xf32>
      %cst_78 = arith.constant 0.000000e+00 : f32
      %89 = vector.broadcast %cst_78 : f32 to vector<32x384xf32>
      %90 = arith.maximumf %88, %89 : vector<32x384xf32>
      %91 = arith.truncf %90 : vector<32x384xf32> to vector<32x384xbf16>
      %c1_79 = arith.constant 1 : index
      %c0_80 = arith.constant 0 : index
      %c0_81 = arith.constant 0 : index
      %c0_82 = arith.constant 0 : index
      %92 = vector.load %arg8[%c1_79, %c0_80, %c0_81, %c0_82] : memref<3x3x32x32xbf16, #tpu.memory_space<vmem>>, vector<1x1x32x32xbf16>
      %93 = vector.shape_cast %92 : vector<1x1x32x32xbf16> to vector<32x32xbf16>
      %cst_83 = arith.constant dense<0.000000e+00> : vector<32x384xf32>
      %94 = tpu.matmul %93, %91, %cst_83 {dimension_numbers = #tpu.dot_dimension_numbers<[1], [0], [0], [1], [0, 0, 1, 1], [], []>} : vector<32x32xbf16>, vector<32x384xbf16>, vector<32x384xf32> -> vector<32x384xf32>
      %c1_84 = arith.constant 1 : index
      %c1_85 = arith.constant 1 : index
      %c0_86 = arith.constant 0 : index
      %c0_87 = arith.constant 0 : index
      %95 = vector.load %arg8[%c1_84, %c1_85, %c0_86, %c0_87] : memref<3x3x32x32xbf16, #tpu.memory_space<vmem>>, vector<1x1x32x32xbf16>
      %96 = vector.shape_cast %95 : vector<1x1x32x32xbf16> to vector<32x32xbf16>
      %cst_88 = arith.constant dense<0.000000e+00> : vector<32x384xf32>
      %97 = tpu.matmul %96, %91, %cst_88 {dimension_numbers = #tpu.dot_dimension_numbers<[1], [0], [0], [1], [0, 0, 1, 1], [], []>} : vector<32x32xbf16>, vector<32x384xbf16>, vector<32x384xf32> -> vector<32x384xf32>
      %c1_89 = arith.constant 1 : index
      %c2_90 = arith.constant 2 : index
      %c0_91 = arith.constant 0 : index
      %c0_92 = arith.constant 0 : index
      %98 = vector.load %arg8[%c1_89, %c2_90, %c0_91, %c0_92] : memref<3x3x32x32xbf16, #tpu.memory_space<vmem>>, vector<1x1x32x32xbf16>
      %99 = vector.shape_cast %98 : vector<1x1x32x32xbf16> to vector<32x32xbf16>
      %cst_93 = arith.constant dense<0.000000e+00> : vector<32x384xf32>
      %100 = tpu.matmul %99, %91, %cst_93 {dimension_numbers = #tpu.dot_dimension_numbers<[1], [0], [0], [1], [0, 0, 1, 1], [], []>} : vector<32x32xbf16>, vector<32x384xbf16>, vector<32x384xf32> -> vector<32x384xf32>
      %c1_i32_94 = arith.constant 1 : i32
      %101 = tpu.dynamic_rotate %94 by %c1_i32_94 dim 1 : vector<32x384xf32>, i32 -> vector<32x384xf32>
      %102 = arith.addf %101, %97 : vector<32x384xf32>
      %c383_i32_95 = arith.constant 383 : i32
      %103 = tpu.dynamic_rotate %100 by %c383_i32_95 dim 1 : vector<32x384xf32>, i32 -> vector<32x384xf32>
      %104 = arith.addf %102, %103 : vector<32x384xf32>
      %c1_96 = arith.constant 1 : index
      %c0_97 = arith.constant 0 : index
      %c0_98 = arith.constant 0 : index
      %105 = vector.load %arg9[%c1_96, %c0_97, %c0_98] : memref<3x32x1xf32, #tpu.memory_space<vmem>>, vector<1x32x1xf32>
      %106 = vector.shape_cast %105 : vector<1x32x1xf32> to vector<32x1xf32>
      %107 = vector.broadcast %106 : vector<32x1xf32> to vector<32x384xf32>
      %108 = arith.mulf %104, %107 : vector<32x384xf32>
      %c1_99 = arith.constant 1 : index
      %c0_100 = arith.constant 0 : index
      %c0_101 = arith.constant 0 : index
      %109 = vector.load %arg10[%c1_99, %c0_100, %c0_101] : memref<3x32x1xf32, #tpu.memory_space<vmem>>, vector<1x32x1xf32>
      %110 = vector.shape_cast %109 : vector<1x32x1xf32> to vector<32x1xf32>
      %111 = vector.broadcast %110 : vector<32x1xf32> to vector<32x384xf32>
      %112 = arith.addf %108, %111 : vector<32x384xf32>
      %113 = arith.addf %112, %66 : vector<32x384xf32>
      %cst_102 = arith.constant 0.000000e+00 : f32
      %114 = vector.broadcast %cst_102 : f32 to vector<32x384xf32>
      %115 = arith.maximumf %113, %114 : vector<32x384xf32>
      %116 = arith.truncf %115 : vector<32x384xf32> to vector<32x384xbf16>
      %c2_103 = arith.constant 2 : index
      %c0_104 = arith.constant 0 : index
      %c0_105 = arith.constant 0 : index
      %c0_106 = arith.constant 0 : index
      %117 = vector.load %arg5[%c2_103, %c0_104, %c0_105, %c0_106] : memref<3x3x32x32xbf16, #tpu.memory_space<vmem>>, vector<1x1x32x32xbf16>
      %118 = vector.shape_cast %117 : vector<1x1x32x32xbf16> to vector<32x32xbf16>
      %cst_107 = arith.constant dense<0.000000e+00> : vector<32x384xf32>
      %119 = tpu.matmul %118, %116, %cst_107 {dimension_numbers = #tpu.dot_dimension_numbers<[1], [0], [0], [1], [0, 0, 1, 1], [], []>} : vector<32x32xbf16>, vector<32x384xbf16>, vector<32x384xf32> -> vector<32x384xf32>
      %c2_108 = arith.constant 2 : index
      %c1_109 = arith.constant 1 : index
      %c0_110 = arith.constant 0 : index
      %c0_111 = arith.constant 0 : index
      %120 = vector.load %arg5[%c2_108, %c1_109, %c0_110, %c0_111] : memref<3x3x32x32xbf16, #tpu.memory_space<vmem>>, vector<1x1x32x32xbf16>
      %121 = vector.shape_cast %120 : vector<1x1x32x32xbf16> to vector<32x32xbf16>
      %cst_112 = arith.constant dense<0.000000e+00> : vector<32x384xf32>
      %122 = tpu.matmul %121, %116, %cst_112 {dimension_numbers = #tpu.dot_dimension_numbers<[1], [0], [0], [1], [0, 0, 1, 1], [], []>} : vector<32x32xbf16>, vector<32x384xbf16>, vector<32x384xf32> -> vector<32x384xf32>
      %c2_113 = arith.constant 2 : index
      %c2_114 = arith.constant 2 : index
      %c0_115 = arith.constant 0 : index
      %c0_116 = arith.constant 0 : index
      %123 = vector.load %arg5[%c2_113, %c2_114, %c0_115, %c0_116] : memref<3x3x32x32xbf16, #tpu.memory_space<vmem>>, vector<1x1x32x32xbf16>
      %124 = vector.shape_cast %123 : vector<1x1x32x32xbf16> to vector<32x32xbf16>
      %cst_117 = arith.constant dense<0.000000e+00> : vector<32x384xf32>
      %125 = tpu.matmul %124, %116, %cst_117 {dimension_numbers = #tpu.dot_dimension_numbers<[1], [0], [0], [1], [0, 0, 1, 1], [], []>} : vector<32x32xbf16>, vector<32x384xbf16>, vector<32x384xf32> -> vector<32x384xf32>
      %c1_i32_118 = arith.constant 1 : i32
      %126 = tpu.dynamic_rotate %119 by %c1_i32_118 dim 1 : vector<32x384xf32>, i32 -> vector<32x384xf32>
      %127 = arith.addf %126, %122 : vector<32x384xf32>
      %c383_i32_119 = arith.constant 383 : i32
      %128 = tpu.dynamic_rotate %125 by %c383_i32_119 dim 1 : vector<32x384xf32>, i32 -> vector<32x384xf32>
      %129 = arith.addf %127, %128 : vector<32x384xf32>
      %c2_120 = arith.constant 2 : index
      %c0_121 = arith.constant 0 : index
      %c0_122 = arith.constant 0 : index
      %130 = vector.load %arg6[%c2_120, %c0_121, %c0_122] : memref<3x32x1xf32, #tpu.memory_space<vmem>>, vector<1x32x1xf32>
      %131 = vector.shape_cast %130 : vector<1x32x1xf32> to vector<32x1xf32>
      %132 = vector.broadcast %131 : vector<32x1xf32> to vector<32x384xf32>
      %133 = arith.mulf %129, %132 : vector<32x384xf32>
      %c2_123 = arith.constant 2 : index
      %c0_124 = arith.constant 0 : index
      %c0_125 = arith.constant 0 : index
      %134 = vector.load %arg7[%c2_123, %c0_124, %c0_125] : memref<3x32x1xf32, #tpu.memory_space<vmem>>, vector<1x32x1xf32>
      %135 = vector.shape_cast %134 : vector<1x32x1xf32> to vector<32x1xf32>
      %136 = vector.broadcast %135 : vector<32x1xf32> to vector<32x384xf32>
      %137 = arith.addf %133, %136 : vector<32x384xf32>
      %cst_126 = arith.constant 0.000000e+00 : f32
      %138 = vector.broadcast %cst_126 : f32 to vector<32x384xf32>
      %139 = arith.maximumf %137, %138 : vector<32x384xf32>
      %140 = arith.truncf %139 : vector<32x384xf32> to vector<32x384xbf16>
      %c2_127 = arith.constant 2 : index
      %c0_128 = arith.constant 0 : index
      %c0_129 = arith.constant 0 : index
      %c0_130 = arith.constant 0 : index
      %141 = vector.load %arg8[%c2_127, %c0_128, %c0_129, %c0_130] : memref<3x3x32x32xbf16, #tpu.memory_space<vmem>>, vector<1x1x32x32xbf16>
      %142 = vector.shape_cast %141 : vector<1x1x32x32xbf16> to vector<32x32xbf16>
      %cst_131 = arith.constant dense<0.000000e+00> : vector<32x384xf32>
      %143 = tpu.matmul %142, %140, %cst_131 {dimension_numbers = #tpu.dot_dimension_numbers<[1], [0], [0], [1], [0, 0, 1, 1], [], []>} : vector<32x32xbf16>, vector<32x384xbf16>, vector<32x384xf32> -> vector<32x384xf32>
      %c2_132 = arith.constant 2 : index
      %c1_133 = arith.constant 1 : index
      %c0_134 = arith.constant 0 : index
      %c0_135 = arith.constant 0 : index
      %144 = vector.load %arg8[%c2_132, %c1_133, %c0_134, %c0_135] : memref<3x3x32x32xbf16, #tpu.memory_space<vmem>>, vector<1x1x32x32xbf16>
      %145 = vector.shape_cast %144 : vector<1x1x32x32xbf16> to vector<32x32xbf16>
      %cst_136 = arith.constant dense<0.000000e+00> : vector<32x384xf32>
      %146 = tpu.matmul %145, %140, %cst_136 {dimension_numbers = #tpu.dot_dimension_numbers<[1], [0], [0], [1], [0, 0, 1, 1], [], []>} : vector<32x32xbf16>, vector<32x384xbf16>, vector<32x384xf32> -> vector<32x384xf32>
      %c2_137 = arith.constant 2 : index
      %c2_138 = arith.constant 2 : index
      %c0_139 = arith.constant 0 : index
      %c0_140 = arith.constant 0 : index
      %147 = vector.load %arg8[%c2_137, %c2_138, %c0_139, %c0_140] : memref<3x3x32x32xbf16, #tpu.memory_space<vmem>>, vector<1x1x32x32xbf16>
      %148 = vector.shape_cast %147 : vector<1x1x32x32xbf16> to vector<32x32xbf16>
      %cst_141 = arith.constant dense<0.000000e+00> : vector<32x384xf32>
      %149 = tpu.matmul %148, %140, %cst_141 {dimension_numbers = #tpu.dot_dimension_numbers<[1], [0], [0], [1], [0, 0, 1, 1], [], []>} : vector<32x32xbf16>, vector<32x384xbf16>, vector<32x384xf32> -> vector<32x384xf32>
      %c1_i32_142 = arith.constant 1 : i32
      %150 = tpu.dynamic_rotate %143 by %c1_i32_142 dim 1 : vector<32x384xf32>, i32 -> vector<32x384xf32>
      %151 = arith.addf %150, %146 : vector<32x384xf32>
      %c383_i32_143 = arith.constant 383 : i32
      %152 = tpu.dynamic_rotate %149 by %c383_i32_143 dim 1 : vector<32x384xf32>, i32 -> vector<32x384xf32>
      %153 = arith.addf %151, %152 : vector<32x384xf32>
      %c2_144 = arith.constant 2 : index
      %c0_145 = arith.constant 0 : index
      %c0_146 = arith.constant 0 : index
      %154 = vector.load %arg9[%c2_144, %c0_145, %c0_146] : memref<3x32x1xf32, #tpu.memory_space<vmem>>, vector<1x32x1xf32>
      %155 = vector.shape_cast %154 : vector<1x32x1xf32> to vector<32x1xf32>
      %156 = vector.broadcast %155 : vector<32x1xf32> to vector<32x384xf32>
      %157 = arith.mulf %153, %156 : vector<32x384xf32>
      %c2_147 = arith.constant 2 : index
      %c0_148 = arith.constant 0 : index
      %c0_149 = arith.constant 0 : index
      %158 = vector.load %arg10[%c2_147, %c0_148, %c0_149] : memref<3x32x1xf32, #tpu.memory_space<vmem>>, vector<1x32x1xf32>
      %159 = vector.shape_cast %158 : vector<1x32x1xf32> to vector<32x1xf32>
      %160 = vector.broadcast %159 : vector<32x1xf32> to vector<32x384xf32>
      %161 = arith.addf %157, %160 : vector<32x384xf32>
      %162 = arith.addf %161, %115 : vector<32x384xf32>
      %cst_150 = arith.constant 0.000000e+00 : f32
      %163 = vector.broadcast %cst_150 : f32 to vector<32x384xf32>
      %164 = arith.maximumf %162, %163 : vector<32x384xf32>
      %165 = vector.extract_strided_slice %164 {offsets = [0, 128], sizes = [32, 128], strides = [1, 1]} : vector<32x384xf32> to vector<32x128xf32>
      %c0_151 = arith.constant 0 : index
      %c0_152 = arith.constant 0 : index
      %c0_153 = arith.constant 0 : index
      %166 = vector.load %arg11[%c0_151, %c0_152, %c0_153] : memref<1x32x128xf32, #tpu.memory_space<vmem>>, vector<1x32x128xf32>
      %167 = vector.shape_cast %166 : vector<1x32x128xf32> to vector<32x128xf32>
      %168 = vector.shape_cast %165 : vector<32x128xf32> to vector<1x32x128xf32>
      tpu.vector_store %arg11[%c0_151, %c0_152, %c0_153], %168 {strides = array<i32>} : memref<1x32x128xf32, #tpu.memory_space<vmem>>, vector<1x32x128xf32>,
    } else {
    }
    %true = arith.constant true
    %15 = arith.xori %12, %true : i1
    %16 = arith.extui %15 : i1 to i32
    %c0_i32_10 = arith.constant 0 : i32
    %17 = arith.cmpi ne, %16, %c0_i32_10 : i32
    scf.if %17 {
      %18 = tpu.iota {dimensions = array<i32: 1>} : vector<1x384xi32>
      %c128_i32_11 = arith.constant 128 : i32
      %19 = arith.muli %arg1, %c128_i32_11 : i32
      %c128_i32_12 = arith.constant 128 : i32
      %20 = arith.subi %19, %c128_i32_12 : i32
      %21 = vector.broadcast %20 : i32 to vector<1x384xi32>
      %22 = arith.addi %18, %21 : vector<1x384xi32>
      %c0_i32_13 = arith.constant 0 : i32
      %23 = vector.broadcast %c0_i32_13 : i32 to vector<1x384xi32>
      %24 = arith.cmpi sge, %22, %23 : vector<1x384xi32>
      %c16_i32_14 = arith.constant 16 : i32
      %25 = vector.broadcast %c16_i32_14 : i32 to vector<1x384xi32>
      %26 = arith.cmpi slt, %22, %25 : vector<1x384xi32>
      %27 = arith.andi %24, %26 : vector<1x384xi1>
      %28 = vector.shape_cast %27 : vector<1x384xi1> to vector<1x384xi1>
      %29 = vector.broadcast %28 : vector<1x384xi1> to vector<32x384xi1>
      %cst = arith.constant 0.000000e+00 : f32
      %30 = vector.broadcast %cst : f32 to vector<32x384xf32>
      %31 = arith.select %29, %6, %30 : vector<32x384xi1>, vector<32x384xf32>
      %32 = arith.truncf %31 : vector<32x384xf32> to vector<32x384xbf16>
      %c0_15 = arith.constant 0 : index
      %c0_16 = arith.constant 0 : index
      %c0_17 = arith.constant 0 : index
      %c0_18 = arith.constant 0 : index
      %33 = vector.load %arg5[%c0_15, %c0_16, %c0_17, %c0_18] : memref<3x3x32x32xbf16, #tpu.memory_space<vmem>>, vector<1x1x32x32xbf16>
      %34 = vector.shape_cast %33 : vector<1x1x32x32xbf16> to vector<32x32xbf16>
      %cst_19 = arith.constant dense<0.000000e+00> : vector<32x384xf32>
      %35 = tpu.matmul %34, %32, %cst_19 {dimension_numbers = #tpu.dot_dimension_numbers<[1], [0], [0], [1], [0, 0, 1, 1], [], []>} : vector<32x32xbf16>, vector<32x384xbf16>, vector<32x384xf32> -> vector<32x384xf32>
      %c0_20 = arith.constant 0 : index
      %c1 = arith.constant 1 : index
      %c0_21 = arith.constant 0 : index
      %c0_22 = arith.constant 0 : index
      %36 = vector.load %arg5[%c0_20, %c1, %c0_21, %c0_22] : memref<3x3x32x32xbf16, #tpu.memory_space<vmem>>, vector<1x1x32x32xbf16>
      %37 = vector.shape_cast %36 : vector<1x1x32x32xbf16> to vector<32x32xbf16>
      %cst_23 = arith.constant dense<0.000000e+00> : vector<32x384xf32>
      %38 = tpu.matmul %37, %32, %cst_23 {dimension_numbers = #tpu.dot_dimension_numbers<[1], [0], [0], [1], [0, 0, 1, 1], [], []>} : vector<32x32xbf16>, vector<32x384xbf16>, vector<32x384xf32> -> vector<32x384xf32>
      %c0_24 = arith.constant 0 : index
      %c2 = arith.constant 2 : index
      %c0_25 = arith.constant 0 : index
      %c0_26 = arith.constant 0 : index
      %39 = vector.load %arg5[%c0_24, %c2, %c0_25, %c0_26] : memref<3x3x32x32xbf16, #tpu.memory_space<vmem>>, vector<1x1x32x32xbf16>
      %40 = vector.shape_cast %39 : vector<1x1x32x32xbf16> to vector<32x32xbf16>
      %cst_27 = arith.constant dense<0.000000e+00> : vector<32x384xf32>
      %41 = tpu.matmul %40, %32, %cst_27 {dimension_numbers = #tpu.dot_dimension_numbers<[1], [0], [0], [1], [0, 0, 1, 1], [], []>} : vector<32x32xbf16>, vector<32x384xbf16>, vector<32x384xf32> -> vector<32x384xf32>
      %c1_i32_28 = arith.constant 1 : i32
      %42 = tpu.dynamic_rotate %35 by %c1_i32_28 dim 1 : vector<32x384xf32>, i32 -> vector<32x384xf32>
      %43 = arith.addf %42, %38 : vector<32x384xf32>
      %c383_i32 = arith.constant 383 : i32
      %44 = tpu.dynamic_rotate %41 by %c383_i32 dim 1 : vector<32x384xf32>, i32 -> vector<32x384xf32>
      %45 = arith.addf %43, %44 : vector<32x384xf32>
      %c0_29 = arith.constant 0 : index
      %c0_30 = arith.constant 0 : index
      %c0_31 = arith.constant 0 : index
      %46 = vector.load %arg6[%c0_29, %c0_30, %c0_31] : memref<3x32x1xf32, #tpu.memory_space<vmem>>, vector<1x32x1xf32>
      %47 = vector.shape_cast %46 : vector<1x32x1xf32> to vector<32x1xf32>
      %48 = vector.broadcast %47 : vector<32x1xf32> to vector<32x384xf32>
      %49 = arith.mulf %45, %48 : vector<32x384xf32>
      %c0_32 = arith.constant 0 : index
      %c0_33 = arith.constant 0 : index
      %c0_34 = arith.constant 0 : index
      %50 = vector.load %arg7[%c0_32, %c0_33, %c0_34] : memref<3x32x1xf32, #tpu.memory_space<vmem>>, vector<1x32x1xf32>
      %51 = vector.shape_cast %50 : vector<1x32x1xf32> to vector<32x1xf32>
      %52 = vector.broadcast %51 : vector<32x1xf32> to vector<32x384xf32>
      %53 = arith.addf %49, %52 : vector<32x384xf32>
      %cst_35 = arith.constant 0.000000e+00 : f32
      %54 = vector.broadcast %cst_35 : f32 to vector<32x384xf32>
      %55 = arith.maximumf %53, %54 : vector<32x384xf32>
      %cst_36 = arith.constant 0.000000e+00 : f32
      %56 = vector.broadcast %cst_36 : f32 to vector<32x384xf32>
      %57 = arith.select %29, %55, %56 : vector<32x384xi1>, vector<32x384xf32>
      %58 = arith.truncf %57 : vector<32x384xf32> to vector<32x384xbf16>
      %c0_37 = arith.constant 0 : index
      %c0_38 = arith.constant 0 : index
      %c0_39 = arith.constant 0 : index
      %c0_40 = arith.constant 0 : index
      %59 = vector.load %arg8[%c0_37, %c0_38, %c0_39, %c0_40] : memref<3x3x32x32xbf16, #tpu.memory_space<vmem>>, vector<1x1x32x32xbf16>
      %60 = vector.shape_cast %59 : vector<1x1x32x32xbf16> to vector<32x32xbf16>
      %cst_41 = arith.constant dense<0.000000e+00> : vector<32x384xf32>
      %61 = tpu.matmul %60, %58, %cst_41 {dimension_numbers = #tpu.dot_dimension_numbers<[1], [0], [0], [1], [0, 0, 1, 1], [], []>} : vector<32x32xbf16>, vector<32x384xbf16>, vector<32x384xf32> -> vector<32x384xf32>
      %c0_42 = arith.constant 0 : index
      %c1_43 = arith.constant 1 : index
      %c0_44 = arith.constant 0 : index
      %c0_45 = arith.constant 0 : index
      %62 = vector.load %arg8[%c0_42, %c1_43, %c0_44, %c0_45] : memref<3x3x32x32xbf16, #tpu.memory_space<vmem>>, vector<1x1x32x32xbf16>
      %63 = vector.shape_cast %62 : vector<1x1x32x32xbf16> to vector<32x32xbf16>
      %cst_46 = arith.constant dense<0.000000e+00> : vector<32x384xf32>
      %64 = tpu.matmul %63, %58, %cst_46 {dimension_numbers = #tpu.dot_dimension_numbers<[1], [0], [0], [1], [0, 0, 1, 1], [], []>} : vector<32x32xbf16>, vector<32x384xbf16>, vector<32x384xf32> -> vector<32x384xf32>
      %c0_47 = arith.constant 0 : index
      %c2_48 = arith.constant 2 : index
      %c0_49 = arith.constant 0 : index
      %c0_50 = arith.constant 0 : index
      %65 = vector.load %arg8[%c0_47, %c2_48, %c0_49, %c0_50] : memref<3x3x32x32xbf16, #tpu.memory_space<vmem>>, vector<1x1x32x32xbf16>
      %66 = vector.shape_cast %65 : vector<1x1x32x32xbf16> to vector<32x32xbf16>
      %cst_51 = arith.constant dense<0.000000e+00> : vector<32x384xf32>
      %67 = tpu.matmul %66, %58, %cst_51 {dimension_numbers = #tpu.dot_dimension_numbers<[1], [0], [0], [1], [0, 0, 1, 1], [], []>} : vector<32x32xbf16>, vector<32x384xbf16>, vector<32x384xf32> -> vector<32x384xf32>
      %c1_i32_52 = arith.constant 1 : i32
      %68 = tpu.dynamic_rotate %61 by %c1_i32_52 dim 1 : vector<32x384xf32>, i32 -> vector<32x384xf32>
      %69 = arith.addf %68, %64 : vector<32x384xf32>
      %c383_i32_53 = arith.constant 383 : i32
      %70 = tpu.dynamic_rotate %67 by %c383_i32_53 dim 1 : vector<32x384xf32>, i32 -> vector<32x384xf32>
      %71 = arith.addf %69, %70 : vector<32x384xf32>
      %c0_54 = arith.constant 0 : index
      %c0_55 = arith.constant 0 : index
      %c0_56 = arith.constant 0 : index
      %72 = vector.load %arg9[%c0_54, %c0_55, %c0_56] : memref<3x32x1xf32, #tpu.memory_space<vmem>>, vector<1x32x1xf32>
      %73 = vector.shape_cast %72 : vector<1x32x1xf32> to vector<32x1xf32>
      %74 = vector.broadcast %73 : vector<32x1xf32> to vector<32x384xf32>
      %75 = arith.mulf %71, %74 : vector<32x384xf32>
      %c0_57 = arith.constant 0 : index
      %c0_58 = arith.constant 0 : index
      %c0_59 = arith.constant 0 : index
      %76 = vector.load %arg10[%c0_57, %c0_58, %c0_59] : memref<3x32x1xf32, #tpu.memory_space<vmem>>, vector<1x32x1xf32>
      %77 = vector.shape_cast %76 : vector<1x32x1xf32> to vector<32x1xf32>
      %78 = vector.broadcast %77 : vector<32x1xf32> to vector<32x384xf32>
      %79 = arith.addf %75, %78 : vector<32x384xf32>
      %80 = arith.addf %79, %31 : vector<32x384xf32>
      %cst_60 = arith.constant 0.000000e+00 : f32
      %81 = vector.broadcast %cst_60 : f32 to vector<32x384xf32>
      %82 = arith.maximumf %80, %81 : vector<32x384xf32>
      %cst_61 = arith.constant 0.000000e+00 : f32
      %83 = vector.broadcast %cst_61 : f32 to vector<32x384xf32>
      %84 = arith.select %29, %82, %83 : vector<32x384xi1>, vector<32x384xf32>
      %85 = arith.truncf %84 : vector<32x384xf32> to vector<32x384xbf16>
      %c1_62 = arith.constant 1 : index
      %c0_63 = arith.constant 0 : index
      %c0_64 = arith.constant 0 : index
      %c0_65 = arith.constant 0 : index
      %86 = vector.load %arg5[%c1_62, %c0_63, %c0_64, %c0_65] : memref<3x3x32x32xbf16, #tpu.memory_space<vmem>>, vector<1x1x32x32xbf16>
      %87 = vector.shape_cast %86 : vector<1x1x32x32xbf16> to vector<32x32xbf16>
      %cst_66 = arith.constant dense<0.000000e+00> : vector<32x384xf32>
      %88 = tpu.matmul %87, %85, %cst_66 {dimension_numbers = #tpu.dot_dimension_numbers<[1], [0], [0], [1], [0, 0, 1, 1], [], []>} : vector<32x32xbf16>, vector<32x384xbf16>, vector<32x384xf32> -> vector<32x384xf32>
      %c1_67 = arith.constant 1 : index
      %c1_68 = arith.constant 1 : index
      %c0_69 = arith.constant 0 : index
      %c0_70 = arith.constant 0 : index
      %89 = vector.load %arg5[%c1_67, %c1_68, %c0_69, %c0_70] : memref<3x3x32x32xbf16, #tpu.memory_space<vmem>>, vector<1x1x32x32xbf16>
      %90 = vector.shape_cast %89 : vector<1x1x32x32xbf16> to vector<32x32xbf16>
      %cst_71 = arith.constant dense<0.000000e+00> : vector<32x384xf32>
      %91 = tpu.matmul %90, %85, %cst_71 {dimension_numbers = #tpu.dot_dimension_numbers<[1], [0], [0], [1], [0, 0, 1, 1], [], []>} : vector<32x32xbf16>, vector<32x384xbf16>, vector<32x384xf32> -> vector<32x384xf32>
      %c1_72 = arith.constant 1 : index
      %c2_73 = arith.constant 2 : index
      %c0_74 = arith.constant 0 : index
      %c0_75 = arith.constant 0 : index
      %92 = vector.load %arg5[%c1_72, %c2_73, %c0_74, %c0_75] : memref<3x3x32x32xbf16, #tpu.memory_space<vmem>>, vector<1x1x32x32xbf16>
      %93 = vector.shape_cast %92 : vector<1x1x32x32xbf16> to vector<32x32xbf16>
      %cst_76 = arith.constant dense<0.000000e+00> : vector<32x384xf32>
      %94 = tpu.matmul %93, %85, %cst_76 {dimension_numbers = #tpu.dot_dimension_numbers<[1], [0], [0], [1], [0, 0, 1, 1], [], []>} : vector<32x32xbf16>, vector<32x384xbf16>, vector<32x384xf32> -> vector<32x384xf32>
      %c1_i32_77 = arith.constant 1 : i32
      %95 = tpu.dynamic_rotate %88 by %c1_i32_77 dim 1 : vector<32x384xf32>, i32 -> vector<32x384xf32>
      %96 = arith.addf %95, %91 : vector<32x384xf32>
      %c383_i32_78 = arith.constant 383 : i32
      %97 = tpu.dynamic_rotate %94 by %c383_i32_78 dim 1 : vector<32x384xf32>, i32 -> vector<32x384xf32>
      %98 = arith.addf %96, %97 : vector<32x384xf32>
      %c1_79 = arith.constant 1 : index
      %c0_80 = arith.constant 0 : index
      %c0_81 = arith.constant 0 : index
      %99 = vector.load %arg6[%c1_79, %c0_80, %c0_81] : memref<3x32x1xf32, #tpu.memory_space<vmem>>, vector<1x32x1xf32>
      %100 = vector.shape_cast %99 : vector<1x32x1xf32> to vector<32x1xf32>
      %101 = vector.broadcast %100 : vector<32x1xf32> to vector<32x384xf32>
      %102 = arith.mulf %98, %101 : vector<32x384xf32>
      %c1_82 = arith.constant 1 : index
      %c0_83 = arith.constant 0 : index
      %c0_84 = arith.constant 0 : index
      %103 = vector.load %arg7[%c1_82, %c0_83, %c0_84] : memref<3x32x1xf32, #tpu.memory_space<vmem>>, vector<1x32x1xf32>
      %104 = vector.shape_cast %103 : vector<1x32x1xf32> to vector<32x1xf32>
      %105 = vector.broadcast %104 : vector<32x1xf32> to vector<32x384xf32>
      %106 = arith.addf %102, %105 : vector<32x384xf32>
      %cst_85 = arith.constant 0.000000e+00 : f32
      %107 = vector.broadcast %cst_85 : f32 to vector<32x384xf32>
      %108 = arith.maximumf %106, %107 : vector<32x384xf32>
      %cst_86 = arith.constant 0.000000e+00 : f32
      %109 = vector.broadcast %cst_86 : f32 to vector<32x384xf32>
      %110 = arith.select %29, %108, %109 : vector<32x384xi1>, vector<32x384xf32>
      %111 = arith.truncf %110 : vector<32x384xf32> to vector<32x384xbf16>
      %c1_87 = arith.constant 1 : index
      %c0_88 = arith.constant 0 : index
      %c0_89 = arith.constant 0 : index
      %c0_90 = arith.constant 0 : index
      %112 = vector.load %arg8[%c1_87, %c0_88, %c0_89, %c0_90] : memref<3x3x32x32xbf16, #tpu.memory_space<vmem>>, vector<1x1x32x32xbf16>
      %113 = vector.shape_cast %112 : vector<1x1x32x32xbf16> to vector<32x32xbf16>
      %cst_91 = arith.constant dense<0.000000e+00> : vector<32x384xf32>
      %114 = tpu.matmul %113, %111, %cst_91 {dimension_numbers = #tpu.dot_dimension_numbers<[1], [0], [0], [1], [0, 0, 1, 1], [], []>} : vector<32x32xbf16>, vector<32x384xbf16>, vector<32x384xf32> -> vector<32x384xf32>
      %c1_92 = arith.constant 1 : index
      %c1_93 = arith.constant 1 : index
      %c0_94 = arith.constant 0 : index
      %c0_95 = arith.constant 0 : index
      %115 = vector.load %arg8[%c1_92, %c1_93, %c0_94, %c0_95] : memref<3x3x32x32xbf16, #tpu.memory_space<vmem>>, vector<1x1x32x32xbf16>
      %116 = vector.shape_cast %115 : vector<1x1x32x32xbf16> to vector<32x32xbf16>
      %cst_96 = arith.constant dense<0.000000e+00> : vector<32x384xf32>
      %117 = tpu.matmul %116, %111, %cst_96 {dimension_numbers = #tpu.dot_dimension_numbers<[1], [0], [0], [1], [0, 0, 1, 1], [], []>} : vector<32x32xbf16>, vector<32x384xbf16>, vector<32x384xf32> -> vector<32x384xf32>
      %c1_97 = arith.constant 1 : index
      %c2_98 = arith.constant 2 : index
      %c0_99 = arith.constant 0 : index
      %c0_100 = arith.constant 0 : index
      %118 = vector.load %arg8[%c1_97, %c2_98, %c0_99, %c0_100] : memref<3x3x32x32xbf16, #tpu.memory_space<vmem>>, vector<1x1x32x32xbf16>
      %119 = vector.shape_cast %118 : vector<1x1x32x32xbf16> to vector<32x32xbf16>
      %cst_101 = arith.constant dense<0.000000e+00> : vector<32x384xf32>
      %120 = tpu.matmul %119, %111, %cst_101 {dimension_numbers = #tpu.dot_dimension_numbers<[1], [0], [0], [1], [0, 0, 1, 1], [], []>} : vector<32x32xbf16>, vector<32x384xbf16>, vector<32x384xf32> -> vector<32x384xf32>
      %c1_i32_102 = arith.constant 1 : i32
      %121 = tpu.dynamic_rotate %114 by %c1_i32_102 dim 1 : vector<32x384xf32>, i32 -> vector<32x384xf32>
      %122 = arith.addf %121, %117 : vector<32x384xf32>
      %c383_i32_103 = arith.constant 383 : i32
      %123 = tpu.dynamic_rotate %120 by %c383_i32_103 dim 1 : vector<32x384xf32>, i32 -> vector<32x384xf32>
      %124 = arith.addf %122, %123 : vector<32x384xf32>
      %c1_104 = arith.constant 1 : index
      %c0_105 = arith.constant 0 : index
      %c0_106 = arith.constant 0 : index
      %125 = vector.load %arg9[%c1_104, %c0_105, %c0_106] : memref<3x32x1xf32, #tpu.memory_space<vmem>>, vector<1x32x1xf32>
      %126 = vector.shape_cast %125 : vector<1x32x1xf32> to vector<32x1xf32>
      %127 = vector.broadcast %126 : vector<32x1xf32> to vector<32x384xf32>
      %128 = arith.mulf %124, %127 : vector<32x384xf32>
      %c1_107 = arith.constant 1 : index
      %c0_108 = arith.constant 0 : index
      %c0_109 = arith.constant 0 : index
      %129 = vector.load %arg10[%c1_107, %c0_108, %c0_109] : memref<3x32x1xf32, #tpu.memory_space<vmem>>, vector<1x32x1xf32>
      %130 = vector.shape_cast %129 : vector<1x32x1xf32> to vector<32x1xf32>
      %131 = vector.broadcast %130 : vector<32x1xf32> to vector<32x384xf32>
      %132 = arith.addf %128, %131 : vector<32x384xf32>
      %133 = arith.addf %132, %84 : vector<32x384xf32>
      %cst_110 = arith.constant 0.000000e+00 : f32
      %134 = vector.broadcast %cst_110 : f32 to vector<32x384xf32>
      %135 = arith.maximumf %133, %134 : vector<32x384xf32>
      %cst_111 = arith.constant 0.000000e+00 : f32
      %136 = vector.broadcast %cst_111 : f32 to vector<32x384xf32>
      %137 = arith.select %29, %135, %136 : vector<32x384xi1>, vector<32x384xf32>
      %138 = arith.truncf %137 : vector<32x384xf32> to vector<32x384xbf16>
      %c2_112 = arith.constant 2 : index
      %c0_113 = arith.constant 0 : index
      %c0_114 = arith.constant 0 : index
      %c0_115 = arith.constant 0 : index
      %139 = vector.load %arg5[%c2_112, %c0_113, %c0_114, %c0_115] : memref<3x3x32x32xbf16, #tpu.memory_space<vmem>>, vector<1x1x32x32xbf16>
      %140 = vector.shape_cast %139 : vector<1x1x32x32xbf16> to vector<32x32xbf16>
      %cst_116 = arith.constant dense<0.000000e+00> : vector<32x384xf32>
      %141 = tpu.matmul %140, %138, %cst_116 {dimension_numbers = #tpu.dot_dimension_numbers<[1], [0], [0], [1], [0, 0, 1, 1], [], []>} : vector<32x32xbf16>, vector<32x384xbf16>, vector<32x384xf32> -> vector<32x384xf32>
      %c2_117 = arith.constant 2 : index
      %c1_118 = arith.constant 1 : index
      %c0_119 = arith.constant 0 : index
      %c0_120 = arith.constant 0 : index
      %142 = vector.load %arg5[%c2_117, %c1_118, %c0_119, %c0_120] : memref<3x3x32x32xbf16, #tpu.memory_space<vmem>>, vector<1x1x32x32xbf16>
      %143 = vector.shape_cast %142 : vector<1x1x32x32xbf16> to vector<32x32xbf16>
      %cst_121 = arith.constant dense<0.000000e+00> : vector<32x384xf32>
      %144 = tpu.matmul %143, %138, %cst_121 {dimension_numbers = #tpu.dot_dimension_numbers<[1], [0], [0], [1], [0, 0, 1, 1], [], []>} : vector<32x32xbf16>, vector<32x384xbf16>, vector<32x384xf32> -> vector<32x384xf32>
      %c2_122 = arith.constant 2 : index
      %c2_123 = arith.constant 2 : index
      %c0_124 = arith.constant 0 : index
      %c0_125 = arith.constant 0 : index
      %145 = vector.load %arg5[%c2_122, %c2_123, %c0_124, %c0_125] : memref<3x3x32x32xbf16, #tpu.memory_space<vmem>>, vector<1x1x32x32xbf16>
      %146 = vector.shape_cast %145 : vector<1x1x32x32xbf16> to vector<32x32xbf16>
      %cst_126 = arith.constant dense<0.000000e+00> : vector<32x384xf32>
      %147 = tpu.matmul %146, %138, %cst_126 {dimension_numbers = #tpu.dot_dimension_numbers<[1], [0], [0], [1], [0, 0, 1, 1], [], []>} : vector<32x32xbf16>, vector<32x384xbf16>, vector<32x384xf32> -> vector<32x384xf32>
      %c1_i32_127 = arith.constant 1 : i32
      %148 = tpu.dynamic_rotate %141 by %c1_i32_127 dim 1 : vector<32x384xf32>, i32 -> vector<32x384xf32>
      %149 = arith.addf %148, %144 : vector<32x384xf32>
      %c383_i32_128 = arith.constant 383 : i32
      %150 = tpu.dynamic_rotate %147 by %c383_i32_128 dim 1 : vector<32x384xf32>, i32 -> vector<32x384xf32>
      %151 = arith.addf %149, %150 : vector<32x384xf32>
      %c2_129 = arith.constant 2 : index
      %c0_130 = arith.constant 0 : index
      %c0_131 = arith.constant 0 : index
      %152 = vector.load %arg6[%c2_129, %c0_130, %c0_131] : memref<3x32x1xf32, #tpu.memory_space<vmem>>, vector<1x32x1xf32>
      %153 = vector.shape_cast %152 : vector<1x32x1xf32> to vector<32x1xf32>
      %154 = vector.broadcast %153 : vector<32x1xf32> to vector<32x384xf32>
      %155 = arith.mulf %151, %154 : vector<32x384xf32>
      %c2_132 = arith.constant 2 : index
      %c0_133 = arith.constant 0 : index
      %c0_134 = arith.constant 0 : index
      %156 = vector.load %arg7[%c2_132, %c0_133, %c0_134] : memref<3x32x1xf32, #tpu.memory_space<vmem>>, vector<1x32x1xf32>
      %157 = vector.shape_cast %156 : vector<1x32x1xf32> to vector<32x1xf32>
      %158 = vector.broadcast %157 : vector<32x1xf32> to vector<32x384xf32>
      %159 = arith.addf %155, %158 : vector<32x384xf32>
      %cst_135 = arith.constant 0.000000e+00 : f32
      %160 = vector.broadcast %cst_135 : f32 to vector<32x384xf32>
      %161 = arith.maximumf %159, %160 : vector<32x384xf32>
      %cst_136 = arith.constant 0.000000e+00 : f32
      %162 = vector.broadcast %cst_136 : f32 to vector<32x384xf32>
      %163 = arith.select %29, %161, %162 : vector<32x384xi1>, vector<32x384xf32>
      %164 = arith.truncf %163 : vector<32x384xf32> to vector<32x384xbf16>
      %c2_137 = arith.constant 2 : index
      %c0_138 = arith.constant 0 : index
      %c0_139 = arith.constant 0 : index
      %c0_140 = arith.constant 0 : index
      %165 = vector.load %arg8[%c2_137, %c0_138, %c0_139, %c0_140] : memref<3x3x32x32xbf16, #tpu.memory_space<vmem>>, vector<1x1x32x32xbf16>
      %166 = vector.shape_cast %165 : vector<1x1x32x32xbf16> to vector<32x32xbf16>
      %cst_141 = arith.constant dense<0.000000e+00> : vector<32x384xf32>
      %167 = tpu.matmul %166, %164, %cst_141 {dimension_numbers = #tpu.dot_dimension_numbers<[1], [0], [0], [1], [0, 0, 1, 1], [], []>} : vector<32x32xbf16>, vector<32x384xbf16>, vector<32x384xf32> -> vector<32x384xf32>
      %c2_142 = arith.constant 2 : index
      %c1_143 = arith.constant 1 : index
      %c0_144 = arith.constant 0 : index
      %c0_145 = arith.constant 0 : index
      %168 = vector.load %arg8[%c2_142, %c1_143, %c0_144, %c0_145] : memref<3x3x32x32xbf16, #tpu.memory_space<vmem>>, vector<1x1x32x32xbf16>
      %169 = vector.shape_cast %168 : vector<1x1x32x32xbf16> to vector<32x32xbf16>
      %cst_146 = arith.constant dense<0.000000e+00> : vector<32x384xf32>
      %170 = tpu.matmul %169, %164, %cst_146 {dimension_numbers = #tpu.dot_dimension_numbers<[1], [0], [0], [1], [0, 0, 1, 1], [], []>} : vector<32x32xbf16>, vector<32x384xbf16>, vector<32x384xf32> -> vector<32x384xf32>
      %c2_147 = arith.constant 2 : index
      %c2_148 = arith.constant 2 : index
      %c0_149 = arith.constant 0 : index
      %c0_150 = arith.constant 0 : index
      %171 = vector.load %arg8[%c2_147, %c2_148, %c0_149, %c0_150] : memref<3x3x32x32xbf16, #tpu.memory_space<vmem>>, vector<1x1x32x32xbf16>
      %172 = vector.shape_cast %171 : vector<1x1x32x32xbf16> to vector<32x32xbf16>
      %cst_151 = arith.constant dense<0.000000e+00> : vector<32x384xf32>
      %173 = tpu.matmul %172, %164, %cst_151 {dimension_numbers = #tpu.dot_dimension_numbers<[1], [0], [0], [1], [0, 0, 1, 1], [], []>} : vector<32x32xbf16>, vector<32x384xbf16>, vector<32x384xf32> -> vector<32x384xf32>
      %c1_i32_152 = arith.constant 1 : i32
      %174 = tpu.dynamic_rotate %167 by %c1_i32_152 dim 1 : vector<32x384xf32>, i32 -> vector<32x384xf32>
      %175 = arith.addf %174, %170 : vector<32x384xf32>
      %c383_i32_153 = arith.constant 383 : i32
      %176 = tpu.dynamic_rotate %173 by %c383_i32_153 dim 1 : vector<32x384xf32>, i32 -> vector<32x384xf32>
      %177 = arith.addf %175, %176 : vector<32x384xf32>
      %c2_154 = arith.constant 2 : index
      %c0_155 = arith.constant 0 : index
      %c0_156 = arith.constant 0 : index
      %178 = vector.load %arg9[%c2_154, %c0_155, %c0_156] : memref<3x32x1xf32, #tpu.memory_space<vmem>>, vector<1x32x1xf32>
      %179 = vector.shape_cast %178 : vector<1x32x1xf32> to vector<32x1xf32>
      %180 = vector.broadcast %179 : vector<32x1xf32> to vector<32x384xf32>
      %181 = arith.mulf %177, %180 : vector<32x384xf32>
      %c2_157 = arith.constant 2 : index
      %c0_158 = arith.constant 0 : index
      %c0_159 = arith.constant 0 : index
      %182 = vector.load %arg10[%c2_157, %c0_158, %c0_159] : memref<3x32x1xf32, #tpu.memory_space<vmem>>, vector<1x32x1xf32>
      %183 = vector.shape_cast %182 : vector<1x32x1xf32> to vector<32x1xf32>
      %184 = vector.broadcast %183 : vector<32x1xf32> to vector<32x384xf32>
      %185 = arith.addf %181, %184 : vector<32x384xf32>
      %186 = arith.addf %185, %137 : vector<32x384xf32>
      %cst_160 = arith.constant 0.000000e+00 : f32
      %187 = vector.broadcast %cst_160 : f32 to vector<32x384xf32>
      %188 = arith.maximumf %186, %187 : vector<32x384xf32>
      %cst_161 = arith.constant 0.000000e+00 : f32
      %189 = vector.broadcast %cst_161 : f32 to vector<32x384xf32>
      %190 = arith.select %29, %188, %189 : vector<32x384xi1>, vector<32x384xf32>
      %191 = vector.extract_strided_slice %190 {offsets = [0, 128], sizes = [32, 128], strides = [1, 1]} : vector<32x384xf32> to vector<32x128xf32>
      %c0_162 = arith.constant 0 : index
      %c0_163 = arith.constant 0 : index
      %c0_164 = arith.constant 0 : index
      %192 = vector.load %arg11[%c0_162, %c0_163, %c0_164] : memref<1x32x128xf32, #tpu.memory_space<vmem>>, vector<1x32x128xf32>
      %193 = vector.shape_cast %192 : vector<1x32x128xf32> to vector<32x128xf32>
      %194 = vector.shape_cast %191 : vector<32x128xf32> to vector<1x32x128xf32>
      tpu.vector_store %arg11[%c0_162, %c0_163, %c0_164], %194 {strides = array<i32>} : memref<1x32x128xf32, #tpu.memory_space<vmem>>, vector<1x32x128xf32>,
    } else {
    }
    return
  }
  func.func @transform_0(%arg0: i32, %arg1: i32) -> (i32, i32, i32) {
    %c0_i32 = arith.constant 0 : i32
    %c0_i32_0 = arith.constant 0 : i32
    return %arg0, %c0_i32, %arg1 : i32, i32, i32
  }
  func.func @transform_1(%arg0: i32, %arg1: i32) -> (i32, i32, i32) {
    %c1_i32 = arith.constant 1 : i32
    %0 = arith.muli %arg1, %c1_i32 : i32
    %c1_i32_0 = arith.constant 1 : i32
    %1 = arith.subi %0, %c1_i32_0 : i32
    %c0_i32 = arith.constant 0 : i32
    %2 = arith.maxsi %1, %c0_i32 : i32
    %c0_i32_1 = arith.constant 0 : i32
    %c0_i32_2 = arith.constant 0 : i32
    return %arg0, %c0_i32_1, %2 : i32, i32, i32
  }
  func.func @transform_2(%arg0: i32, %arg1: i32) -> (i32, i32, i32) {
    %c1_i32 = arith.constant 1 : i32
    %0 = arith.addi %arg1, %c1_i32 : i32
    %c1_i32_0 = arith.constant 1 : i32
    %1 = arith.muli %0, %c1_i32_0 : i32
    %c0_i32 = arith.constant 0 : i32
    %2 = arith.minsi %1, %c0_i32 : i32
    %c0_i32_1 = arith.constant 0 : i32
    %c0_i32_2 = arith.constant 0 : i32
    return %arg0, %c0_i32_1, %2 : i32, i32, i32
  }
  func.func @transform_3(%arg0: i32, %arg1: i32) -> (i32, i32, i32, i32) {
    %c0_i32 = arith.constant 0 : i32
    %c0_i32_0 = arith.constant 0 : i32
    %c0_i32_1 = arith.constant 0 : i32
    %c0_i32_2 = arith.constant 0 : i32
    %c0_i32_3 = arith.constant 0 : i32
    return %c0_i32, %c0_i32_0, %c0_i32_1, %c0_i32_2 : i32, i32, i32, i32
  }
  func.func @transform_4(%arg0: i32, %arg1: i32) -> (i32, i32, i32) {
    %c0_i32 = arith.constant 0 : i32
    %c0_i32_0 = arith.constant 0 : i32
    %c0_i32_1 = arith.constant 0 : i32
    %c0_i32_2 = arith.constant 0 : i32
    return %c0_i32, %c0_i32_0, %c0_i32_1 : i32, i32, i32
  }
  func.func @transform_5(%arg0: i32, %arg1: i32) -> (i32, i32, i32) {
    %c0_i32 = arith.constant 0 : i32
    %c0_i32_0 = arith.constant 0 : i32
    %c0_i32_1 = arith.constant 0 : i32
    %c0_i32_2 = arith.constant 0 : i32
    return %c0_i32, %c0_i32_0, %c0_i32_1 : i32, i32, i32
  }
  func.func @transform_6(%arg0: i32, %arg1: i32) -> (i32, i32, i32, i32) {
    %c0_i32 = arith.constant 0 : i32
    %c0_i32_0 = arith.constant 0 : i32
    %c0_i32_1 = arith.constant 0 : i32
    %c0_i32_2 = arith.constant 0 : i32
    %c0_i32_3 = arith.constant 0 : i32
    return %c0_i32, %c0_i32_0, %c0_i32_1, %c0_i32_2 : i32, i32, i32, i32
  }
  func.func @transform_7(%arg0: i32, %arg1: i32) -> (i32, i32, i32) {
    %c0_i32 = arith.constant 0 : i32
    %c0_i32_0 = arith.constant 0 : i32
    %c0_i32_1 = arith.constant 0 : i32
    %c0_i32_2 = arith.constant 0 : i32
    return %c0_i32, %c0_i32_0, %c0_i32_1 : i32, i32, i32
  }
  func.func @transform_8(%arg0: i32, %arg1: i32) -> (i32, i32, i32) {
    %c0_i32 = arith.constant 0 : i32
    %c0_i32_0 = arith.constant 0 : i32
    %c0_i32_1 = arith.constant 0 : i32
    %c0_i32_2 = arith.constant 0 : i32
    return %c0_i32, %c0_i32_0, %c0_i32_1 : i32, i32, i32
  }
  func.func @transform_9(%arg0: i32, %arg1: i32) -> (i32, i32, i32) {
    %c0_i32 = arith.constant 0 : i32
    %c0_i32_0 = arith.constant 0 : i32
    return %arg0, %c0_i32, %arg1 : i32, i32, i32
  }
}

</mosaic_0001>

<llo_original>
// kernel: tpu_custom_call.1
$region0: #{tpu_custom_call.1}
  #allocation0 [shape = 'u32[]', space=smem, size = 0x4, offset = 0x4, fixed_abs, tag = 'smem constant byte address 0x4 - core index']
  #allocation1 [shape = 'u32[72,128]{1,0:T(1,128)}', space=vmem, size = 0x9000, scoped, tag = 'internal scratch']
  %s0 = inlined_call_operand.vmem [shape: f32[2,32,16], index: 0, kind: input, shape index: {}]
  %s1 = inlined_call_operand.vmem [shape: f32[2,32,16], index: 1, kind: input, shape index: {}]
  %s2 = inlined_call_operand.vmem [shape: f32[2,32,16], index: 2, kind: input, shape index: {}]
  %s3 = inlined_call_operand.vmem [shape: bf16[3,3,32,32], index: 3, kind: input, shape index: {}]
  %s4 = inlined_call_operand.vmem [shape: f32[3,32,1], index: 4, kind: input, shape index: {}]
  %s5 = inlined_call_operand.vmem [shape: f32[3,32,1], index: 5, kind: input, shape index: {}]
  %s6 = inlined_call_operand.vmem [shape: bf16[3,3,32,32], index: 6, kind: input, shape index: {}]
  %s7 = inlined_call_operand.vmem [shape: f32[3,32,1], index: 7, kind: input, shape index: {}]
  %s8 = inlined_call_operand.vmem [shape: f32[3,32,1], index: 8, kind: input, shape index: {}]
  %s9 = inlined_call_operand.vmem [shape: f32[2,32,16], index: 9, kind: output, shape index: {}]
  %s10 = sld [smem:[#allocation0]]
  $region77: #{tpu_custom_call.1} parent=0
    _
  %s12 = ssub.s32 1, %s10
  %s13 = scalar_select 0, %s12, %s10
  loop: start=0, step=1, limit=4
  $region2: #{tpu_custom_call.1} parent=0 // loop_pre_header
    _
  $region3: #{tpu_custom_call.1} parent=0 // loop_header
    %s15 = sphi 0, %s19
    %p16 = scmp.ge.s32.totalorder %s15, 4
    %s22 = sphi 0, %s34
    %s23 = sphi 0, %s30
    %s24 = sphi 0, %s22
    %s25 = sphi 0, %s23
    %s26 = sphi 0, %s24
    %s27 = sphi 0, %s25
    %s39 = sphi 0, %s41
    %s42 = sphi 0, %s39
    %s43 = sphi 0, %s42
    %s59 = sphi 0, %s43
    %s73 = sphi 0, %s75
    %s76 = sphi 0, %s73
    %s77 = sphi 0, %s76
    %s93 = sphi 0, %s77
    %s107 = sphi 0, %s109
    %s110 = sphi 0, %s107
    %s111 = sphi 0, %s110
    %s127 = sphi 0, %s111
    %s131 = sphi 0, %s131
    %s133 = sphi 0, %s131
    %s134 = sphi 0, %s133
    %s148 = sphi 0, %s134
    %s152 = sphi 0, %s152
    %s154 = sphi 0, %s152
    %s155 = sphi 0, %s154
    %s169 = sphi 0, %s155
    %s173 = sphi 0, %s173
    %s175 = sphi 0, %s173
    %s176 = sphi 0, %s175
    %s190 = sphi 0, %s176
    %s194 = sphi 0, %s194
    %s196 = sphi 0, %s194
    %s197 = sphi 0, %s196
    %s211 = sphi 0, %s197
    %s215 = sphi 0, %s215
    %s217 = sphi 0, %s215
    %s218 = sphi 0, %s217
    %s232 = sphi 0, %s218
    %s236 = sphi 0, %s236
    %s238 = sphi 0, %s236
    %s239 = sphi 0, %s238
    %s253 = sphi 0, %s239
    %s261 = sphi 0, %s263
    %s264 = sphi 0, %s261
    %s265 = sphi 0, %s264
    %s281 = sphi 0, %s265
  $region4: #{tpu_custom_call.1} parent=0 // loop_header_branch
    %18 = sbr.rel (%p16) target = $region8
  $region5: #{tpu_custom_call.1} parent=0 // loop_body
    %s20 = ssub.s32 %s15, 1
    %s21 = ssub.s32 %s15, 2
    %s28 = sadd.s32 1, %s23
    %p29 = scmp.ge.s32.totalorder %s28, 1
    %s30 = scalar_select %p29, 0, %s28
    %s31 = sadd.s32 1, %s22
    %s32 = scalar_select %p29, %s31, %s22
    %p33 = scmp.ge.s32.totalorder %s32, 2
    %s34 = scalar_select %p33, 0, %s32
    %s35 = ssub.s32 %s22, %s34
    %s36 = ssub.s32 %s23, %s30
    %s37 = sor.u32 %s35, %s36
    %p38 = scmp.eq.s32.totalorder %s37, 0
    %s40 = sadd.s32 %s39, 1
    %s41 = scalar_select %p38, %s39, %s40
    %p44 = pneg %p38
    %p45 = scmp.eq.s32.totalorder %s15, 1
    %p46 = por %p44, %p45
    %p47 = scmp.ne.s32.totalorder %s39, %s42
    %p48 = scmp.eq.s32.totalorder %s15, 0
    %p49 = por %p47, %p48
    %p50 = scmp.ne.s32.totalorder %s39, %s42
    %p51 = scmp.eq.s32.totalorder %s20, 1
    %p52 = por %p50, %p51
    %p53 = scmp.ne.s32.totalorder %s42, %s43
    %p54 = scmp.eq.s32.totalorder %s20, 0
    %p55 = por %p53, %p54
    %p56 = scmp.ne.s32.totalorder %s42, %s43
    %p57 = scmp.eq.s32.totalorder %s21, 1
    %p58 = por %p56, %p57
    %p60 = scmp.ne.s32.totalorder %s43, %s59
    %p61 = scmp.eq.s32.totalorder %s21, 0
    %p62 = por %p60, %p61
    %s63 = ssub.s32 %s23, 1
    %p64 = scmp.gt.s32.totalorder %s63, 0
    %s65 = scalar_select %p64, %s63, 0
    %s66 = ssub.s32 %s30, 1
    %p67 = scmp.gt.s32.totalorder %s66, 0
    %s68 = scalar_select %p67, %s66, 0
    %s69 = ssub.s32 %s22, %s34
    %s70 = ssub.s32 %s65, %s68
    %s71 = sor.u32 %s69, %s70
    %p72 = scmp.eq.s32.totalorder %s71, 0
    %s74 = sadd.s32 %s73, 1
    %s75 = scalar_select %p72, %s73, %s74
    %p78 = pneg %p72
    %p79 = scmp.eq.s32.totalorder %s15, 1
    %p80 = por %p78, %p79
    %p81 = scmp.ne.s32.totalorder %s73, %s76
    %p82 = scmp.eq.s32.totalorder %s15, 0
    %p83 = por %p81, %p82
    %p84 = scmp.ne.s32.totalorder %s73, %s76
    %p85 = scmp.eq.s32.totalorder %s20, 1
    %p86 = por %p84, %p85
    %p87 = scmp.ne.s32.totalorder %s76, %s77
    %p88 = scmp.eq.s32.totalorder %s20, 0
    %p89 = por %p87, %p88
    %p90 = scmp.ne.s32.totalorder %s76, %s77
    %p91 = scmp.eq.s32.totalorder %s21, 1
    %p92 = por %p90, %p91
    %p94 = scmp.ne.s32.totalorder %s77, %s93
    %p95 = scmp.eq.s32.totalorder %s21, 0
    %p96 = por %p94, %p95
    %s97 = sadd.s32 %s23, 1
    %p98 = scmp.lt.s32.totalorder %s97, 0
    %s99 = scalar_select %p98, %s97, 0
    %s100 = sadd.s32 %s30, 1
    %p101 = scmp.lt.s32.totalorder %s100, 0
    %s102 = scalar_select %p101, %s100, 0
    %s103 = ssub.s32 %s22, %s34
    %s104 = ssub.s32 %s99, %s102
    %s105 = sor.u32 %s103, %s104
    %p106 = scmp.eq.s32.totalorder %s105, 0
    %s108 = sadd.s32 %s107, 1
    %s109 = scalar_select %p106, %s107, %s108
    %p112 = pneg %p106
    %p113 = scmp.eq.s32.totalorder %s15, 1
    %p114 = por %p112, %p113
    %p115 = scmp.ne.s32.totalorder %s107, %s110
    %p116 = scmp.eq.s32.totalorder %s15, 0
    %p117 = por %p115, %p116
    %p118 = scmp.ne.s32.totalorder %s107, %s110
    %p119 = scmp.eq.s32.totalorder %s20, 1
    %p120 = por %p118, %p119
    %p121 = scmp.ne.s32.totalorder %s110, %s111
    %p122 = scmp.eq.s32.totalorder %s20, 0
    %p123 = por %p121, %p122
    %p124 = scmp.ne.s32.totalorder %s110, %s111
    %p125 = scmp.eq.s32.totalorder %s21, 1
    %p126 = por %p124, %p125
    %p128 = scmp.ne.s32.totalorder %s111, %s127
    %p129 = scmp.eq.s32.totalorder %s21, 0
    %p130 = por %p128, %p129
    %s132 = sadd.s32 %s131, 1
    %p135 = scmp.eq.s32.totalorder %s15, 1
    %p136 = scmp.ne.s32.totalorder %s131, %s133
    %p137 = scmp.eq.s32.totalorder %s15, 0
    %p138 = por %p136, %p137
    %p139 = scmp.ne.s32.totalorder %s131, %s133
    %p140 = scmp.eq.s32.totalorder %s20, 1
    %p141 = por %p139, %p140
    %p142 = scmp.ne.s32.totalorder %s133, %s134
    %p143 = scmp.eq.s32.totalorder %s20, 0
    %p144 = por %p142, %p143
    %p145 = scmp.ne.s32.totalorder %s133, %s134
    %p146 = scmp.eq.s32.totalorder %s21, 1
    %p147 = por %p145, %p146
    %p149 = scmp.ne.s32.totalorder %s134, %s148
    %p150 = scmp.eq.s32.totalorder %s21, 0
    %p151 = por %p149, %p150
    %s153 = sadd.s32 %s152, 1
    %p156 = scmp.eq.s32.totalorder %s15, 1
    %p157 = scmp.ne.s32.totalorder %s152, %s154
    %p158 = scmp.eq.s32.totalorder %s15, 0
    %p159 = por %p157, %p158
    %p160 = scmp.ne.s32.totalorder %s152, %s154
    %p161 = scmp.eq.s32.totalorder %s20, 1
    %p162 = por %p160, %p161
    %p163 = scmp.ne.s32.totalorder %s154, %s155
    %p164 = scmp.eq.s32.totalorder %s20, 0
    %p165 = por %p163, %p164
    %p166 = scmp.ne.s32.totalorder %s154, %s155
    %p167 = scmp.eq.s32.totalorder %s21, 1
    %p168 = por %p166, %p167
    %p170 = scmp.ne.s32.totalorder %s155, %s169
    %p171 = scmp.eq.s32.totalorder %s21, 0
    %p172 = por %p170, %p171
    %s174 = sadd.s32 %s173, 1
    %p177 = scmp.eq.s32.totalorder %s15, 1
    %p178 = scmp.ne.s32.totalorder %s173, %s175
    %p179 = scmp.eq.s32.totalorder %s15, 0
    %p180 = por %p178, %p179
    %p181 = scmp.ne.s32.totalorder %s173, %s175
    %p182 = scmp.eq.s32.totalorder %s20, 1
    %p183 = por %p181, %p182
    %p184 = scmp.ne.s32.totalorder %s175, %s176
    %p185 = scmp.eq.s32.totalorder %s20, 0
    %p186 = por %p184, %p185
    %p187 = scmp.ne.s32.totalorder %s175, %s176
    %p188 = scmp.eq.s32.totalorder %s21, 1
    %p189 = por %p187, %p188
    %p191 = scmp.ne.s32.totalorder %s176, %s190
    %p192 = scmp.eq.s32.totalorder %s21, 0
    %p193 = por %p191, %p192
    %s195 = sadd.s32 %s194, 1
    %p198 = scmp.eq.s32.totalorder %s15, 1
    %p199 = scmp.ne.s32.totalorder %s194, %s196
    %p200 = scmp.eq.s32.totalorder %s15, 0
    %p201 = por %p199, %p200
    %p202 = scmp.ne.s32.totalorder %s194, %s196
    %p203 = scmp.eq.s32.totalorder %s20, 1
    %p204 = por %p202, %p203
    %p205 = scmp.ne.s32.totalorder %s196, %s197
    %p206 = scmp.eq.s32.totalorder %s20, 0
    %p207 = por %p205, %p206
    %p208 = scmp.ne.s32.totalorder %s196, %s197
    %p209 = scmp.eq.s32.totalorder %s21, 1
    %p210 = por %p208, %p209
    %p212 = scmp.ne.s32.totalorder %s197, %s211
    %p213 = scmp.eq.s32.totalorder %s21, 0
    %p214 = por %p212, %p213
    %s216 = sadd.s32 %s215, 1
    %p219 = scmp.eq.s32.totalorder %s15, 1
    %p220 = scmp.ne.s32.totalorder %s215, %s217
    %p221 = scmp.eq.s32.totalorder %s15, 0
    %p222 = por %p220, %p221
    %p223 = scmp.ne.s32.totalorder %s215, %s217
    %p224 = scmp.eq.s32.totalorder %s20, 1
    %p225 = por %p223, %p224
    %p226 = scmp.ne.s32.totalorder %s217, %s218
    %p227 = scmp.eq.s32.totalorder %s20, 0
    %p228 = por %p226, %p227
    %p229 = scmp.ne.s32.totalorder %s217, %s218
    %p230 = scmp.eq.s32.totalorder %s21, 1
    %p231 = por %p229, %p230
    %p233 = scmp.ne.s32.totalorder %s218, %s232
    %p234 = scmp.eq.s32.totalorder %s21, 0
    %p235 = por %p233, %p234
    %s237 = sadd.s32 %s236, 1
    %p240 = scmp.eq.s32.totalorder %s15, 1
    %p241 = scmp.ne.s32.totalorder %s236, %s238
    %p242 = scmp.eq.s32.totalorder %s15, 0
    %p243 = por %p241, %p242
    %p244 = scmp.ne.s32.totalorder %s236, %s238
    %p245 = scmp.eq.s32.totalorder %s20, 1
    %p246 = por %p244, %p245
    %p247 = scmp.ne.s32.totalorder %s238, %s239
    %p248 = scmp.eq.s32.totalorder %s20, 0
    %p249 = por %p247, %p248
    %p250 = scmp.ne.s32.totalorder %s238, %s239
    %p251 = scmp.eq.s32.totalorder %s21, 1
    %p252 = por %p250, %p251
    %p254 = scmp.ne.s32.totalorder %s239, %s253
    %p255 = scmp.eq.s32.totalorder %s21, 0
    %p256 = por %p254, %p255
    %s257 = ssub.s32 %s22, %s34
    %s258 = ssub.s32 %s23, %s30
    %s259 = sor.u32 %s257, %s258
    %p260 = scmp.eq.s32.totalorder %s259, 0
    %s262 = sadd.s32 %s261, 1
    %s263 = scalar_select %p260, %s261, %s262
    %p266 = pneg %p260
    %p267 = scmp.eq.s32.totalorder %s15, 1
    %p268 = por %p266, %p267
    %p269 = scmp.ne.s32.totalorder %s261, %s264
    %p270 = scmp.eq.s32.totalorder %s15, 0
    %p271 = por %p269, %p270
    %p272 = scmp.ne.s32.totalorder %s261, %s264
    %p273 = scmp.eq.s32.totalorder %s20, 1
    %p274 = por %p272, %p273
    %p275 = scmp.ne.s32.totalorder %s264, %s265
    %p276 = scmp.eq.s32.totalorder %s20, 0
    %p277 = por %p275, %p276
    %p278 = scmp.ne.s32.totalorder %s264, %s265
    %p279 = scmp.eq.s32.totalorder %s21, 1
    %p280 = por %p278, %p279
    %p282 = scmp.ne.s32.totalorder %s265, %s281
    %p283 = scmp.eq.s32.totalorder %s21, 0
    %p284 = por %p282, %p283
    %p285 = scmp.le.s32.totalorder 1, %s15
    %p286 = scmp.lt.s32.totalorder %s15, 3
    %p287 = pnand %p285, %p286
    %p288 = pneg %p287
    // Predicated region
    $region9: #{tpu_custom_call.1} parent=5 // pred_check
      _
    $region10: #{tpu_custom_call.1} parent=5 // pred_check_branch
      %290 = sbr.rel (%p287) target = $region12
    $region11: #{tpu_custom_call.1} parent=5 // pred_region
      %s291 = ssub.s32 %s15, 1
      // Predicated region
      $region13: #{tpu_custom_call.1} parent=11 // pred_check
        %p292 = pneg %p144
      $region14: #{tpu_custom_call.1} parent=11 // pred_check_branch
        %294 = sbr.rel (%p292) target = $region16
      $region15: #{tpu_custom_call.1} parent=11 // pred_region
        _
      $region16: #{tpu_custom_call.1} parent=11 // pred_fallthru
        _
      // Predicated region
      $region17: #{tpu_custom_call.1} parent=11 // pred_check
        %p295 = pneg %p165
      $region18: #{tpu_custom_call.1} parent=11 // pred_check_branch
        %297 = sbr.rel (%p295) target = $region20
      $region19: #{tpu_custom_call.1} parent=11 // pred_region
        _
      $region20: #{tpu_custom_call.1} parent=11 // pred_fallthru
        _
      // Predicated region
      $region21: #{tpu_custom_call.1} parent=11 // pred_check
        %p298 = pneg %p186
      $region22: #{tpu_custom_call.1} parent=11 // pred_check_branch
        %300 = sbr.rel (%p298) target = $region24
      $region23: #{tpu_custom_call.1} parent=11 // pred_region
        _
      $region24: #{tpu_custom_call.1} parent=11 // pred_fallthru
        _
      // Predicated region
      $region25: #{tpu_custom_call.1} parent=11 // pred_check
        %p301 = pneg %p207
      $region26: #{tpu_custom_call.1} parent=11 // pred_check_branch
        %303 = sbr.rel (%p301) target = $region28
      $region27: #{tpu_custom_call.1} parent=11 // pred_region
        _
      $region28: #{tpu_custom_call.1} parent=11 // pred_fallthru
        _
      // Predicated region
      $region29: #{tpu_custom_call.1} parent=11 // pred_check
        %p304 = pneg %p228
      $region30: #{tpu_custom_call.1} parent=11 // pred_check_branch
        %306 = sbr.rel (%p304) target = $region32
      $region31: #{tpu_custom_call.1} parent=11 // pred_region
        _
      $region32: #{tpu_custom_call.1} parent=11 // pred_fallthru
        _
      // Predicated region
      $region33: #{tpu_custom_call.1} parent=11 // pred_check
        %p307 = pneg %p249
      $region34: #{tpu_custom_call.1} parent=11 // pred_check_branch
        %309 = sbr.rel (%p307) target = $region36
      $region35: #{tpu_custom_call.1} parent=11 // pred_region
        _
      $region36: #{tpu_custom_call.1} parent=11 // pred_fallthru
        _
    $region12: #{tpu_custom_call.1} parent=5 // pred_fallthru
      _
    %p310 = scmp.lt.s32.totalorder %s15, 2
    // Predicated region
    $region37: #{tpu_custom_call.1} parent=5 // pred_check
      %p311 = pneg %p310
    $region38: #{tpu_custom_call.1} parent=5 // pred_check_branch
      %313 = sbr.rel (%p311) target = $region40
    $region39: #{tpu_custom_call.1} parent=5 // pred_region
      // Predicated region
      $region41: #{tpu_custom_call.1} parent=39 // pred_check
        %p314 = pneg %p49
      $region42: #{tpu_custom_call.1} parent=39 // pred_check_branch
        %316 = sbr.rel (%p314) target = $region44
      $region43: #{tpu_custom_call.1} parent=39 // pred_region
        %p317 = scmp.lt.s32.totalorder %s22, 1
        %s318 = scalar_select %p317, %s22, 1
        %p319 = scmp.lt.s32.totalorder %s23, 0
        %s320 = scalar_select %p319, %s23, 0
        %s321 = smul.addr %s318, 4
        %s322 = sadd.s32 %s320, %s321
        %s323 = smul.addr %s322, 8
        %s324 = scalar_lea.vmem %s0, %s323
      $region44: #{tpu_custom_call.1} parent=39 // pred_fallthru
        _
      // Predicated region
      $region45: #{tpu_custom_call.1} parent=39 // pred_check
        %p325 = pneg %p83
      $region46: #{tpu_custom_call.1} parent=39 // pred_check_branch
        %327 = sbr.rel (%p325) target = $region48
      $region47: #{tpu_custom_call.1} parent=39 // pred_region
        %s328 = ssub.s32 %s23, 1
        %p329 = scmp.gt.s32.totalorder %s328, 0
        %s330 = scalar_select %p329, %s328, 0
        %p331 = scmp.lt.s32.totalorder %s22, 1
        %s332 = scalar_select %p331, %s22, 1
        %p333 = scmp.lt.s32.totalorder %s330, 0
        %s334 = scalar_select %p333, %s330, 0
        %s335 = smul.addr %s332, 4
        %s336 = sadd.s32 %s334, %s335
        %s337 = smul.addr %s336, 8
        %s338 = scalar_lea.vmem %s1, %s337
        %s339 = ssub.s32 %s23, 1
        %p340 = scmp.gt.s32.totalorder %s339, 0
        %s341 = scalar_select %p340, %s339, 0
      $region48: #{tpu_custom_call.1} parent=39 // pred_fallthru
        _
      // Predicated region
      $region49: #{tpu_custom_call.1} parent=39 // pred_check
        %p342 = pneg %p117
      $region50: #{tpu_custom_call.1} parent=39 // pred_check_branch
        %344 = sbr.rel (%p342) target = $region52
      $region51: #{tpu_custom_call.1} parent=39 // pred_region
        %s345 = sadd.s32 %s23, 1
        %p346 = scmp.lt.s32.totalorder %s345, 0
        %s347 = scalar_select %p346, %s345, 0
        %p348 = scmp.lt.s32.totalorder %s22, 1
        %s349 = scalar_select %p348, %s22, 1
        %p350 = scmp.lt.s32.totalorder %s347, 0
        %s351 = scalar_select %p350, %s347, 0
        %s352 = smul.addr %s349, 4
        %s353 = sadd.s32 %s351, %s352
        %s354 = smul.addr %s353, 8
        %s355 = scalar_lea.vmem %s2, %s354
        %s356 = sadd.s32 %s23, 1
        %p357 = scmp.lt.s32.totalorder %s356, 0
        %s358 = scalar_select %p357, %s356, 0
      $region52: #{tpu_custom_call.1} parent=39 // pred_fallthru
        _
    $region40: #{tpu_custom_call.1} parent=5 // pred_fallthru
      _
    %p359 = scmp.le.s32.totalorder 1, %s15
    %p360 = scmp.lt.s32.totalorder %s15, 3
    %p361 = pnand %p359, %p360
    %p362 = pneg %p361
    // Predicated region
    $region53: #{tpu_custom_call.1} parent=5 // pred_check
      _
    $region54: #{tpu_custom_call.1} parent=5 // pred_check_branch
      %364 = sbr.rel (%p361) target = $region56
    $region55: #{tpu_custom_call.1} parent=5 // pred_region
      %s365 = ssub.s32 %s15, 1
      %p366 = scmp.lt.s32.totalorder %s24, 1
      %s367 = scalar_select %p366, %s24, 1
      %p368 = scmp.lt.s32.totalorder %s25, 0
      %s369 = scalar_select %p368, %s25, 0
      %s370 = smul.addr %s367, 4
      %s371 = sadd.s32 %s369, %s370
      %s372 = smul.addr %s371, 8
      %s373 = scalar_lea.vmem %s0, %s372
      %p374 = pneg %p55
      %p375 = pneg %p52
      %s376 = ssub.s32 %s25, 1
      %p377 = scmp.gt.s32.totalorder %s376, 0
      %s378 = scalar_select %p377, %s376, 0
      %p379 = scmp.lt.s32.totalorder %s24, 1
      %s380 = scalar_select %p379, %s24, 1
      %p381 = scmp.lt.s32.totalorder %s378, 0
      %s382 = scalar_select %p381, %s378, 0
      %s383 = smul.addr %s380, 4
      %s384 = sadd.s32 %s382, %s383
      %s385 = smul.addr %s384, 8
      %s386 = scalar_lea.vmem %s1, %s385
      %p387 = pneg %p89
      %p388 = pneg %p86
      %s389 = sadd.s32 %s25, 1
      %p390 = scmp.lt.s32.totalorder %s389, 0
      %s391 = scalar_select %p390, %s389, 0
      %p392 = scmp.lt.s32.totalorder %s24, 1
      %s393 = scalar_select %p392, %s24, 1
      %p394 = scmp.lt.s32.totalorder %s391, 0
      %s395 = scalar_select %p394, %s391, 0
      %s396 = smul.addr %s393, 4
      %s397 = sadd.s32 %s395, %s396
      %s398 = smul.addr %s397, 8
      %s399 = scalar_lea.vmem %s2, %s398
      %p400 = pneg %p123
      %p401 = pneg %p120
      %p402 = pneg %p144
      %p403 = pneg %p141
      %p404 = pneg %p165
      %p405 = pneg %p162
      %p406 = pneg %p186
      %p407 = pneg %p183
      %p408 = pneg %p207
      %p409 = pneg %p204
      %p410 = pneg %p228
      %p411 = pneg %p225
      %p412 = pneg %p249
      %p413 = pneg %p246
      %p414 = pneg %p277
      %p415 = pneg %p274
      %p416 = scmp.lt.s32.totalorder %s24, 1
      %s417 = scalar_select %p416, %s24, 1
      %p418 = scmp.lt.s32.totalorder %s25, 0
      %s419 = scalar_select %p418, %s25, 0
      %s420 = smul.addr %s417, 4
      %s421 = sadd.s32 %s419, %s420
      %s422 = smul.addr %s421, 8
      %s423 = scalar_lea.vmem %s9, %s422
      %p424 = scmp.lt.s32.totalorder %s24, 1
      %s425 = scalar_select %p424, %s24, 1
      %p426 = scmp.lt.s32.totalorder %s25, 0
      %s427 = scalar_select %p426, %s25, 0
      %s428 = smul.addr %s425, 4
      %s429 = sadd.s32 %s427, %s428
      %s430 = smul.addr %s429, 8
      %s431 = scalar_lea.vmem %s0, %s430
      %s432 = ssub.s32 %s25, 1
      %p433 = scmp.gt.s32.totalorder %s432, 0
      %s434 = scalar_select %p433, %s432, 0
      %p435 = scmp.lt.s32.totalorder %s24, 1
      %s436 = scalar_select %p435, %s24, 1
      %p437 = scmp.lt.s32.totalorder %s434, 0
      %s438 = scalar_select %p437, %s434, 0
      %s439 = smul.addr %s436, 4
      %s440 = sadd.s32 %s438, %s439
      %s441 = smul.addr %s440, 8
      %s442 = scalar_lea.vmem %s1, %s441
      %s443 = ssub.s32 %s25, 1
      %p444 = scmp.gt.s32.totalorder %s443, 0
      %s445 = scalar_select %p444, %s443, 0
      %s446 = sadd.s32 %s25, 1
      %p447 = scmp.lt.s32.totalorder %s446, 0
      %s448 = scalar_select %p447, %s446, 0
      %p449 = scmp.lt.s32.totalorder %s24, 1
      %s450 = scalar_select %p449, %s24, 1
      %p451 = scmp.lt.s32.totalorder %s448, 0
      %s452 = scalar_select %p451, %s448, 0
      %s453 = smul.addr %s450, 4
      %s454 = sadd.s32 %s452, %s453
      %s455 = smul.addr %s454, 8
      %s456 = scalar_lea.vmem %s2, %s455
      %s457 = sadd.s32 %s25, 1
      %p458 = scmp.lt.s32.totalorder %s457, 0
      %s459 = scalar_select %p458, %s457, 0
      %p460 = scmp.lt.s32.totalorder %s24, 1
      %s461 = scalar_select %p460, %s24, 1
      %p462 = scmp.lt.s32.totalorder %s25, 0
      %s463 = scalar_select %p462, %s25, 0
      %s464 = smul.addr %s461, 4
      %s465 = sadd.s32 %s463, %s464
      %s466 = smul.addr %s465, 8
      %s467 = scalar_lea.vmem %s9, %s466
      %v469 = vld [vmem:[%s442] sm:$0xff]
      %v470 = vld [vmem:[%s442 + $0x8] sm:$0xff]
      %v471 = vld [vmem:[%s442 + $0x10] sm:$0xff]
      %v472 = vld [vmem:[%s442 + $0x18] sm:$0xff]
      %v473 = vld [vmem:[%s431] sm:$0xff]
      %v474 = vld [vmem:[%s431 + $0x8] sm:$0xff]
      %v475 = vld [vmem:[%s431 + $0x10] sm:$0xff]
      %v476 = vld [vmem:[%s431 + $0x18] sm:$0xff]
      %v477 = vld [vmem:[%s456] sm:$0xff]
      %v478 = vld [vmem:[%s456 + $0x8] sm:$0xff]
      %v479 = vld [vmem:[%s456 + $0x10] sm:$0xff]
      %v480 = vld [vmem:[%s456 + $0x18] sm:$0xff]
      %p481 = scmp.gt.s32.totalorder %s25, 0
      %s482 = sadd.s32 %s25, 1
      %s483 = smul.u32 %s482, 128
      %s484 = sadd.s32 %s483, 128
      %p485 = scmp.le.s32.totalorder %s484, 16
      %p486 = pnand %p481, %p485
      %p487 = pneg %p486
      // Predicated region
      $region57: #{tpu_custom_call.1} parent=55 // pred_check
        _
      $region58: #{tpu_custom_call.1} parent=55 // pred_check_branch
        %489 = sbr.rel (%p486) target = $region60
      $region59: #{tpu_custom_call.1} parent=55 // pred_region
        %v490 = vpack.c.bf16 %v470, %v469
        %v491 = vpack.c.bf16 %v474, %v473
        %v492 = vpack.c.bf16 %v478, %v477
        %v493 = vpack.c.bf16 %v472, %v471
        %v494 = vpack.c.bf16 %v476, %v475
        %v495 = vpack.c.bf16 %v480, %v479
        %v496 = vld [vmem:[%s3] sm:$0xf]
        %v497 = vld [vmem:[%s3 + $0x4] sm:$0xf]
        %v498 = vld [vmem:[%s3 + $0x8] sm:$0xf]
        %v499 = vld [vmem:[%s3 + $0xc] sm:$0xf]
        %v504 = vunpack.c.l.b16 %v496
        %v505 = vunpack.c.l.b16 %v497
        %v506 = vunpack.c.l.b16 %v498
        %v507 = vunpack.c.l.b16 %v499
        %v508 = vpack.c.b16 %v505, %v504
        %v509 = vpack.c.b16 %v507, %v506
        %vm510 = vcmask 261120
        %v512 = vsel %vm510, %v508, 0
        %v515 = vsel %vm510, %v509, 0
        %517 = vmatpush.bf16.msra.mxu0 0
        %518 = vmatpush.bf16.msra.mxu0 0
        %519 = vmatpush.bf16.msra.mxu0 0
        %520 = vmatpush.bf16.msra.mxu0 0
        %521 = vmatpush.bf16.msra.mxu0 0
        %522 = vmatpush.bf16.msra.mxu0 0
        %523 = vmatpush.bf16.msra.mxu0 %v493
        %524 = vmatpush.bf16.msra.mxu0 %v490
        %525 = vmatmul.bf16.gmra.mxu0 %v512
        %v526 = vpop.f32.mrf.mxu0
        %v527 = vadd.f32 0.0, %v526
        %v528 = vpop.f32.mrf.mxu0
        %v529 = vadd.f32 0.0, %v528
        %530 = vmatmul.bf16.gmra.mxu0 %v515
        %v531 = vpop.f32.mrf.mxu0
        %v532 = vadd.f32 0.0, %v531
        %v533 = vpop.f32.mrf.mxu0
        %v534 = vadd.f32 0.0, %v533
        %535 = vdwg.mxu0
        %536 = vmatpush.bf16.msra.mxu0 0
        %537 = vmatpush.bf16.msra.mxu0 0
        %538 = vmatpush.bf16.msra.mxu0 0
        %539 = vmatpush.bf16.msra.mxu0 0
        %540 = vmatpush.bf16.msra.mxu0 0
        %541 = vmatpush.bf16.msra.mxu0 0
        %542 = vmatpush.bf16.msra.mxu0 %v494
        %543 = vmatpush.bf16.msra.mxu0 %v491
        %544 = vmatmul.bf16.gmra.mxu0 %v512
        %v545 = vpop.f32.mrf.mxu0
        %v546 = vadd.f32 0.0, %v545
        %v547 = vpop.f32.mrf.mxu0
        %v548 = vadd.f32 0.0, %v547
        %549 = vmatmul.bf16.gmra.mxu0 %v515
        %v550 = vpop.f32.mrf.mxu0
        %v551 = vadd.f32 0.0, %v550
        %v552 = vpop.f32.mrf.mxu0
        %v553 = vadd.f32 0.0, %v552
        %554 = vdwg.mxu0
        %555 = vmatpush.bf16.msra.mxu0 0
        %556 = vmatpush.bf16.msra.mxu0 0
        %557 = vmatpush.bf16.msra.mxu0 0
        %558 = vmatpush.bf16.msra.mxu0 0
        %559 = vmatpush.bf16.msra.mxu0 0
        %560 = vmatpush.bf16.msra.mxu0 0
        %561 = vmatpush.bf16.msra.mxu0 %v495
        %562 = vmatpush.bf16.msra.mxu0 %v492
        %563 = vmatmul.bf16.gmra.mxu0 %v512
        %v564 = vpop.f32.mrf.mxu0
        %v565 = vadd.f32 0.0, %v564
        %v566 = vpop.f32.mrf.mxu0
        %v567 = vadd.f32 0.0, %v566
        %568 = vmatmul.bf16.gmra.mxu0 %v515
        %v569 = vpop.f32.mrf.mxu0
        %v570 = vadd.f32 0.0, %v569
        %v571 = vpop.f32.mrf.mxu0
        %v572 = vadd.f32 0.0, %v571
        %573 = vdwg.mxu0
        %s574 = scalar_lea.vmem %s3, 16
        %v575 = vld [vmem:[%s574] sm:$0xf]
        %v576 = vld [vmem:[%s574 + $0x4] sm:$0xf]
        %v577 = vld [vmem:[%s574 + $0x8] sm:$0xf]
        %v578 = vld [vmem:[%s574 + $0xc] sm:$0xf]
        %v583 = vunpack.c.l.b16 %v575
        %v584 = vunpack.c.l.b16 %v576
        %v585 = vunpack.c.l.b16 %v577
        %v586 = vunpack.c.l.b16 %v578
        %v587 = vpack.c.b16 %v584, %v583
        %v588 = vpack.c.b16 %v586, %v585
        %v590 = vsel %vm510, %v587, 0
        %v593 = vsel %vm510, %v588, 0
        %595 = vmatpush.bf16.msra.mxu0 0
        %596 = vmatpush.bf16.msra.mxu0 0
        %597 = vmatpush.bf16.msra.mxu0 0
        %598 = vmatpush.bf16.msra.mxu0 0
        %599 = vmatpush.bf16.msra.mxu0 0
        %600 = vmatpush.bf16.msra.mxu0 0
        %601 = vmatpush.bf16.msra.mxu0 %v493
        %602 = vmatpush.bf16.msra.mxu0 %v490
        %603 = vmatmul.bf16.gmra.mxu0 %v590
        %v604 = vpop.f32.mrf.mxu0
        %v605 = vadd.f32 0.0, %v604
        %v606 = vpop.f32.mrf.mxu0
        %v607 = vadd.f32 0.0, %v606
        %608 = vmatmul.bf16.gmra.mxu0 %v593
        %v609 = vpop.f32.mrf.mxu0
        %v610 = vadd.f32 0.0, %v609
        %v611 = vpop.f32.mrf.mxu0
        %v612 = vadd.f32 0.0, %v611
        %613 = vdwg.mxu0
        %614 = vmatpush.bf16.msra.mxu0 0
        %615 = vmatpush.bf16.msra.mxu0 0
        %616 = vmatpush.bf16.msra.mxu0 0
        %617 = vmatpush.bf16.msra.mxu0 0
        %618 = vmatpush.bf16.msra.mxu0 0
        %619 = vmatpush.bf16.msra.mxu0 0
        %620 = vmatpush.bf16.msra.mxu0 %v494
        %621 = vmatpush.bf16.msra.mxu0 %v491
        %622 = vmatmul.bf16.gmra.mxu0 %v590
        %v623 = vpop.f32.mrf.mxu0
        %v624 = vadd.f32 0.0, %v623
        %v625 = vpop.f32.mrf.mxu0
        %v626 = vadd.f32 0.0, %v625
        %627 = vmatmul.bf16.gmra.mxu0 %v593
        %v628 = vpop.f32.mrf.mxu0
        %v629 = vadd.f32 0.0, %v628
        %v630 = vpop.f32.mrf.mxu0
        %v631 = vadd.f32 0.0, %v630
        %632 = vdwg.mxu0
        %633 = vmatpush.bf16.msra.mxu0 0
        %634 = vmatpush.bf16.msra.mxu0 0
        %635 = vmatpush.bf16.msra.mxu0 0
        %636 = vmatpush.bf16.msra.mxu0 0
        %637 = vmatpush.bf16.msra.mxu0 0
        %638 = vmatpush.bf16.msra.mxu0 0
        %639 = vmatpush.bf16.msra.mxu0 %v495
        %640 = vmatpush.bf16.msra.mxu0 %v492
        %641 = vmatmul.bf16.gmra.mxu0 %v590
        %v642 = vpop.f32.mrf.mxu0
        %v643 = vadd.f32 0.0, %v642
        %v644 = vpop.f32.mrf.mxu0
        %v645 = vadd.f32 0.0, %v644
        %646 = vmatmul.bf16.gmra.mxu0 %v593
        %v647 = vpop.f32.mrf.mxu0
        %v648 = vadd.f32 0.0, %v647
        %v649 = vpop.f32.mrf.mxu0
        %v650 = vadd.f32 0.0, %v649
        %651 = vdwg.mxu0
        %s652 = scalar_lea.vmem %s3, 32
        %v653 = vld [vmem:[%s652] sm:$0xf]
        %v654 = vld [vmem:[%s652 + $0x4] sm:$0xf]
        %v655 = vld [vmem:[%s652 + $0x8] sm:$0xf]
        %v656 = vld [vmem:[%s652 + $0xc] sm:$0xf]
        %v661 = vunpack.c.l.b16 %v653
        %v662 = vunpack.c.l.b16 %v654
        %v663 = vunpack.c.l.b16 %v655
        %v664 = vunpack.c.l.b16 %v656
        %v665 = vpack.c.b16 %v662, %v661
        %v666 = vpack.c.b16 %v664, %v663
        %v668 = vsel %vm510, %v665, 0
        %v671 = vsel %vm510, %v666, 0
        %673 = vmatpush.bf16.msra.mxu0 0
        %674 = vmatpush.bf16.msra.mxu0 0
        %675 = vmatpush.bf16.msra.mxu0 0
        %676 = vmatpush.bf16.msra.mxu0 0
        %677 = vmatpush.bf16.msra.mxu0 0
        %678 = vmatpush.bf16.msra.mxu0 0
        %679 = vmatpush.bf16.msra.mxu0 %v493
        %680 = vmatpush.bf16.msra.mxu0 %v490
        %681 = vmatmul.bf16.gmra.mxu0 %v668
        %v682 = vpop.f32.mrf.mxu0
        %v683 = vadd.f32 0.0, %v682
        %v684 = vpop.f32.mrf.mxu0
        %v685 = vadd.f32 0.0, %v684
        %686 = vmatmul.bf16.gmra.mxu0 %v671
        %v687 = vpop.f32.mrf.mxu0
        %v688 = vadd.f32 0.0, %v687
        %v689 = vpop.f32.mrf.mxu0
        %v690 = vadd.f32 0.0, %v689
        %691 = vdwg.mxu0
        %692 = vmatpush.bf16.msra.mxu0 0
        %693 = vmatpush.bf16.msra.mxu0 0
        %694 = vmatpush.bf16.msra.mxu0 0
        %695 = vmatpush.bf16.msra.mxu0 0
        %696 = vmatpush.bf16.msra.mxu0 0
        %697 = vmatpush.bf16.msra.mxu0 0
        %698 = vmatpush.bf16.msra.mxu0 %v494
        %699 = vmatpush.bf16.msra.mxu0 %v491
        %700 = vmatmul.bf16.gmra.mxu0 %v668
        %v701 = vpop.f32.mrf.mxu0
        %v702 = vadd.f32 0.0, %v701
        %v703 = vpop.f32.mrf.mxu0
        %v704 = vadd.f32 0.0, %v703
        %705 = vmatmul.bf16.gmra.mxu0 %v671
        %v706 = vpop.f32.mrf.mxu0
        %v707 = vadd.f32 0.0, %v706
        %v708 = vpop.f32.mrf.mxu0
        %v709 = vadd.f32 0.0, %v708
        %710 = vdwg.mxu0
        %711 = vmatpush.bf16.msra.mxu0 0
        %712 = vmatpush.bf16.msra.mxu0 0
        %713 = vmatpush.bf16.msra.mxu0 0
        %714 = vmatpush.bf16.msra.mxu0 0
        %715 = vmatpush.bf16.msra.mxu0 0
        %716 = vmatpush.bf16.msra.mxu0 0
        %717 = vmatpush.bf16.msra.mxu0 %v495
        %718 = vmatpush.bf16.msra.mxu0 %v492
        %719 = vmatmul.bf16.gmra.mxu0 %v668
        %v720 = vpop.f32.mrf.mxu0
        %v721 = vadd.f32 0.0, %v720
        %v722 = vpop.f32.mrf.mxu0
        %v723 = vadd.f32 0.0, %v722
        %724 = vmatmul.bf16.gmra.mxu0 %v671
        %v725 = vpop.f32.mrf.mxu0
        %v726 = vadd.f32 0.0, %v725
        %v727 = vpop.f32.mrf.mxu0
        %v728 = vadd.f32 0.0, %v727
        %729 = vdwg.mxu0
        %730 = vrot.lane.b32.xlu0 %v527, 1
        %v731 = vpop.permute.xlu0 %730
        %732 = vrot.lane.b32.xlu0 %v529, 1
        %v733 = vpop.permute.xlu0 %732
        %734 = vrot.lane.b32.xlu0 %v532, 1
        %v735 = vpop.permute.xlu0 %734
        %736 = vrot.lane.b32.xlu0 %v534, 1
        %v737 = vpop.permute.xlu0 %736
        %738 = vrot.lane.b32.xlu0 %v546, 1
        %v739 = vpop.permute.xlu0 %738
        %740 = vrot.lane.b32.xlu0 %v548, 1
        %v741 = vpop.permute.xlu0 %740
        %742 = vrot.lane.b32.xlu0 %v551, 1
        %v743 = vpop.permute.xlu0 %742
        %744 = vrot.lane.b32.xlu0 %v553, 1
        %v745 = vpop.permute.xlu0 %744
        %746 = vrot.lane.b32.xlu0 %v565, 1
        %v747 = vpop.permute.xlu0 %746
        %748 = vrot.lane.b32.xlu0 %v567, 1
        %v749 = vpop.permute.xlu0 %748
        %750 = vrot.lane.b32.xlu0 %v570, 1
        %v751 = vpop.permute.xlu0 %750
        %752 = vrot.lane.b32.xlu0 %v572, 1
        %v753 = vpop.permute.xlu0 %752
        %v754 = vlaneseq
        %v755 = vand.u32 %v754, 127
        %vm756 = vcmp.lt.s32.totalorder %v755, 1
        %v757 = vsel %vm756, %v739, %v747
        %v758 = vsel %vm756, %v741, %v749
        %v759 = vsel %vm756, %v743, %v751
        %v760 = vsel %vm756, %v745, %v753
        %v761 = vsel %vm756, %v731, %v739
        %v762 = vsel %vm756, %v733, %v741
        %v763 = vsel %vm756, %v735, %v743
        %v764 = vsel %vm756, %v737, %v745
        %v765 = vsel %vm756, %v747, %v731
        %v766 = vsel %vm756, %v749, %v733
        %v767 = vsel %vm756, %v751, %v735
        %v768 = vsel %vm756, %v753, %v737
        %v769 = vadd.f32 %v765, %v605
        %v770 = vadd.f32 %v761, %v624
        %v771 = vadd.f32 %v757, %v643
        %v772 = vadd.f32 %v766, %v607
        %v773 = vadd.f32 %v762, %v626
        %v774 = vadd.f32 %v758, %v645
        %v775 = vadd.f32 %v767, %v610
        %v776 = vadd.f32 %v763, %v629
        %v777 = vadd.f32 %v759, %v648
        %v778 = vadd.f32 %v768, %v612
        %v779 = vadd.f32 %v764, %v631
        %v780 = vadd.f32 %v760, %v650
        %781 = vrot.lane.b32.xlu0 %v683, 127
        %v782 = vpop.permute.xlu0 %781
        %783 = vrot.lane.b32.xlu0 %v685, 127
        %v784 = vpop.permute.xlu0 %783
        %785 = vrot.lane.b32.xlu0 %v688, 127
        %v786 = vpop.permute.xlu0 %785
        %787 = vrot.lane.b32.xlu0 %v690, 127
        %v788 = vpop.permute.xlu0 %787
        %789 = vrot.lane.b32.xlu0 %v702, 127
        %v790 = vpop.permute.xlu0 %789
        %791 = vrot.lane.b32.xlu0 %v704, 127
        %v792 = vpop.permute.xlu0 %791
        %793 = vrot.lane.b32.xlu0 %v707, 127
        %v794 = vpop.permute.xlu0 %793
        %795 = vrot.lane.b32.xlu0 %v709, 127
        %v796 = vpop.permute.xlu0 %795
        %797 = vrot.lane.b32.xlu0 %v721, 127
        %v798 = vpop.permute.xlu0 %797
        %799 = vrot.lane.b32.xlu0 %v723, 127
        %v800 = vpop.permute.xlu0 %799
        %801 = vrot.lane.b32.xlu0 %v726, 127
        %v802 = vpop.permute.xlu0 %801
        %803 = vrot.lane.b32.xlu0 %v728, 127
        %v804 = vpop.permute.xlu0 %803
        %vm805 = vcmp.lt.s32.totalorder %v755, 127
        %v806 = vsel %vm805, %v790, %v798
        %v807 = vsel %vm805, %v792, %v800
        %v808 = vsel %vm805, %v794, %v802
        %v809 = vsel %vm805, %v796, %v804
        %v810 = vsel %vm805, %v782, %v790
        %v811 = vsel %vm805, %v784, %v792
        %v812 = vsel %vm805, %v786, %v794
        %v813 = vsel %vm805, %v788, %v796
        %v814 = vsel %vm805, %v798, %v782
        %v815 = vsel %vm805, %v800, %v784
        %v816 = vsel %vm805, %v802, %v786
        %v817 = vsel %vm805, %v804, %v788
        %v818 = vadd.f32 %v769, %v810
        %v819 = vadd.f32 %v770, %v806
        %v820 = vadd.f32 %v771, %v814
        %v821 = vadd.f32 %v772, %v811
        %v822 = vadd.f32 %v773, %v807
        %v823 = vadd.f32 %v774, %v815
        %v824 = vadd.f32 %v775, %v812
        %v825 = vadd.f32 %v776, %v808
        %v826 = vadd.f32 %v777, %v816
        %v827 = vadd.f32 %v778, %v813
        %v828 = vadd.f32 %v779, %v809
        %v829 = vadd.f32 %v780, %v817
        %v830 = vld [vmem:[%s4] sm:$0xff]
        %v831 = vld [vmem:[%s4 + $0x8] sm:$0xff]
        %v832 = vld [vmem:[%s4 + $0x10] sm:$0xff]
        %v833 = vld [vmem:[%s4 + $0x18] sm:$0xff]
        %835 = vset.pattern.permute.xlu0 0
        %836 = vperm.xlu0 %835, %v830
        %v837 = vpop.permute.xlu0 %836
        %840 = vset.pattern.permute.xlu0 0
        %841 = vperm.xlu0 %840, %v831
        %v842 = vpop.permute.xlu0 %841
        %845 = vset.pattern.permute.xlu0 0
        %846 = vperm.xlu0 %845, %v832
        %v847 = vpop.permute.xlu0 %846
        %850 = vset.pattern.permute.xlu0 0
        %851 = vperm.xlu0 %850, %v833
        %v852 = vpop.permute.xlu0 %851
        %v854 = vmul.f32 %v818, %v837
        %v855 = vmul.f32 %v819, %v837
        %v856 = vmul.f32 %v820, %v837
        %v857 = vmul.f32 %v821, %v842
        %v858 = vmul.f32 %v822, %v842
        %v859 = vmul.f32 %v823, %v842
        %v860 = vmul.f32 %v824, %v847
        %v861 = vmul.f32 %v825, %v847
        %v862 = vmul.f32 %v826, %v847
        %v863 = vmul.f32 %v827, %v852
        %v864 = vmul.f32 %v828, %v852
        %v865 = vmul.f32 %v829, %v852
        %v866 = vld [vmem:[%s5] sm:$0xff]
        %v867 = vld [vmem:[%s5 + $0x8] sm:$0xff]
        %v868 = vld [vmem:[%s5 + $0x10] sm:$0xff]
        %v869 = vld [vmem:[%s5 + $0x18] sm:$0xff]
        %871 = vset.pattern.permute.xlu0 0
        %872 = vperm.xlu0 %871, %v866
        %v873 = vpop.permute.xlu0 %872
        %876 = vset.pattern.permute.xlu0 0
        %877 = vperm.xlu0 %876, %v867
        %v878 = vpop.permute.xlu0 %877
        %881 = vset.pattern.permute.xlu0 0
        %882 = vperm.xlu0 %881, %v868
        %v883 = vpop.permute.xlu0 %882
        %886 = vset.pattern.permute.xlu0 0
        %887 = vperm.xlu0 %886, %v869
        %v888 = vpop.permute.xlu0 %887
        %v890 = vadd.f32 %v854, %v873
        %v891 = vadd.f32 %v855, %v873
        %v892 = vadd.f32 %v856, %v873
        %v893 = vadd.f32 %v857, %v878
        %v894 = vadd.f32 %v858, %v878
        %v895 = vadd.f32 %v859, %v878
        %v896 = vadd.f32 %v860, %v883
        %v897 = vadd.f32 %v861, %v883
        %v898 = vadd.f32 %v862, %v883
        %v899 = vadd.f32 %v863, %v888
        %v900 = vadd.f32 %v864, %v888
        %v901 = vadd.f32 %v865, %v888
        %v902 = vmax.f32 %v890, 0.0
        %v903 = vmax.f32 %v891, 0.0
        %v904 = vmax.f32 %v892, 0.0
        %v905 = vmax.f32 %v893, 0.0
        %v906 = vmax.f32 %v894, 0.0
        %v907 = vmax.f32 %v895, 0.0
        %v908 = vmax.f32 %v896, 0.0
        %v909 = vmax.f32 %v897, 0.0
        %v910 = vmax.f32 %v898, 0.0
        %v911 = vmax.f32 %v899, 0.0
        %v912 = vmax.f32 %v900, 0.0
        %v913 = vmax.f32 %v901, 0.0
        %v914 = vpack.c.bf16 %v905, %v902
        %v915 = vpack.c.bf16 %v906, %v903
        %v916 = vpack.c.bf16 %v907, %v904
        %v917 = vpack.c.bf16 %v911, %v908
        %v918 = vpack.c.bf16 %v912, %v909
        %v919 = vpack.c.bf16 %v913, %v910
        %v920 = vld [vmem:[%s6] sm:$0xf]
        %v921 = vld [vmem:[%s6 + $0x4] sm:$0xf]
        %v922 = vld [vmem:[%s6 + $0x8] sm:$0xf]
        %v923 = vld [vmem:[%s6 + $0xc] sm:$0xf]
        %v928 = vunpack.c.l.b16 %v920
        %v929 = vunpack.c.l.b16 %v921
        %v930 = vunpack.c.l.b16 %v922
        %v931 = vunpack.c.l.b16 %v923
        %v932 = vpack.c.b16 %v929, %v928
        %v933 = vpack.c.b16 %v931, %v930
        %v935 = vsel %vm510, %v932, 0
        %v938 = vsel %vm510, %v933, 0
        %940 = vmatpush.bf16.msra.mxu0 0
        %941 = vmatpush.bf16.msra.mxu0 0
        %942 = vmatpush.bf16.msra.mxu0 0
        %943 = vmatpush.bf16.msra.mxu0 0
        %944 = vmatpush.bf16.msra.mxu0 0
        %945 = vmatpush.bf16.msra.mxu0 0
        %946 = vmatpush.bf16.msra.mxu0 %v917
        %947 = vmatpush.bf16.msra.mxu0 %v914
        %948 = vmatmul.bf16.gmra.mxu0 %v935
        %v949 = vpop.f32.mrf.mxu0
        %v950 = vadd.f32 0.0, %v949
        %v951 = vpop.f32.mrf.mxu0
        %v952 = vadd.f32 0.0, %v951
        %953 = vmatmul.bf16.gmra.mxu0 %v938
        %v954 = vpop.f32.mrf.mxu0
        %v955 = vadd.f32 0.0, %v954
        %v956 = vpop.f32.mrf.mxu0
        %v957 = vadd.f32 0.0, %v956
        %958 = vdwg.mxu0
        %959 = vmatpush.bf16.msra.mxu0 0
        %960 = vmatpush.bf16.msra.mxu0 0
        %961 = vmatpush.bf16.msra.mxu0 0
        %962 = vmatpush.bf16.msra.mxu0 0
        %963 = vmatpush.bf16.msra.mxu0 0
        %964 = vmatpush.bf16.msra.mxu0 0
        %965 = vmatpush.bf16.msra.mxu0 %v918
        %966 = vmatpush.bf16.msra.mxu0 %v915
        %967 = vmatmul.bf16.gmra.mxu0 %v935
        %v968 = vpop.f32.mrf.mxu0
        %v969 = vadd.f32 0.0, %v968
        %v970 = vpop.f32.mrf.mxu0
        %v971 = vadd.f32 0.0, %v970
        %972 = vmatmul.bf16.gmra.mxu0 %v938
        %v973 = vpop.f32.mrf.mxu0
        %v974 = vadd.f32 0.0, %v973
        %v975 = vpop.f32.mrf.mxu0
        %v976 = vadd.f32 0.0, %v975
        %977 = vdwg.mxu0
        %978 = vmatpush.bf16.msra.mxu0 0
        %979 = vmatpush.bf16.msra.mxu0 0
        %980 = vmatpush.bf16.msra.mxu0 0
        %981 = vmatpush.bf16.msra.mxu0 0
        %982 = vmatpush.bf16.msra.mxu0 0
        %983 = vmatpush.bf16.msra.mxu0 0
        %984 = vmatpush.bf16.msra.mxu0 %v919
        %985 = vmatpush.bf16.msra.mxu0 %v916
        %986 = vmatmul.bf16.gmra.mxu0 %v935
        %v987 = vpop.f32.mrf.mxu0
        %v988 = vadd.f32 0.0, %v987
        %v989 = vpop.f32.mrf.mxu0
        %v990 = vadd.f32 0.0, %v989
        %991 = vmatmul.bf16.gmra.mxu0 %v938
        %v992 = vpop.f32.mrf.mxu0
        %v993 = vadd.f32 0.0, %v992
        %v994 = vpop.f32.mrf.mxu0
        %v995 = vadd.f32 0.0, %v994
        %996 = vdwg.mxu0
        %s997 = scalar_lea.vmem %s6, 16
        %v998 = vld [vmem:[%s997] sm:$0xf]
        %v999 = vld [vmem:[%s997 + $0x4] sm:$0xf]
        %v1000 = vld [vmem:[%s997 + $0x8] sm:$0xf]
        %v1001 = vld [vmem:[%s997 + $0xc] sm:$0xf]
        %v1006 = vunpack.c.l.b16 %v998
        %v1007 = vunpack.c.l.b16 %v999
        %v1008 = vunpack.c.l.b16 %v1000
        %v1009 = vunpack.c.l.b16 %v1001
        %v1010 = vpack.c.b16 %v1007, %v1006
        %v1011 = vpack.c.b16 %v1009, %v1008
        %v1013 = vsel %vm510, %v1010, 0
        %v1016 = vsel %vm510, %v1011, 0
        %1018 = vmatpush.bf16.msra.mxu0 0
        %1019 = vmatpush.bf16.msra.mxu0 0
        %1020 = vmatpush.bf16.msra.mxu0 0
        %1021 = vmatpush.bf16.msra.mxu0 0
        %1022 = vmatpush.bf16.msra.mxu0 0
        %1023 = vmatpush.bf16.msra.mxu0 0
        %1024 = vmatpush.bf16.msra.mxu0 %v917
        %1025 = vmatpush.bf16.msra.mxu0 %v914
        %1026 = vmatmul.bf16.gmra.mxu0 %v1013
        %v1027 = vpop.f32.mrf.mxu0
        %v1028 = vadd.f32 0.0, %v1027
        %v1029 = vpop.f32.mrf.mxu0
        %v1030 = vadd.f32 0.0, %v1029
        %1031 = vmatmul.bf16.gmra.mxu0 %v1016
        %v1032 = vpop.f32.mrf.mxu0
        %v1033 = vadd.f32 0.0, %v1032
        %v1034 = vpop.f32.mrf.mxu0
        %v1035 = vadd.f32 0.0, %v1034
        %1036 = vdwg.mxu0
        %1037 = vmatpush.bf16.msra.mxu0 0
        %1038 = vmatpush.bf16.msra.mxu0 0
        %1039 = vmatpush.bf16.msra.mxu0 0
        %1040 = vmatpush.bf16.msra.mxu0 0
        %1041 = vmatpush.bf16.msra.mxu0 0
        %1042 = vmatpush.bf16.msra.mxu0 0
        %1043 = vmatpush.bf16.msra.mxu0 %v918
        %1044 = vmatpush.bf16.msra.mxu0 %v915
        %1045 = vmatmul.bf16.gmra.mxu0 %v1013
        %v1046 = vpop.f32.mrf.mxu0
        %v1047 = vadd.f32 0.0, %v1046
        %v1048 = vpop.f32.mrf.mxu0
        %v1049 = vadd.f32 0.0, %v1048
        %1050 = vmatmul.bf16.gmra.mxu0 %v1016
        %v1051 = vpop.f32.mrf.mxu0
        %v1052 = vadd.f32 0.0, %v1051
        %v1053 = vpop.f32.mrf.mxu0
        %v1054 = vadd.f32 0.0, %v1053
        %1055 = vdwg.mxu0
        %1056 = vmatpush.bf16.msra.mxu0 0
        %1057 = vmatpush.bf16.msra.mxu0 0
        %1058 = vmatpush.bf16.msra.mxu0 0
        %1059 = vmatpush.bf16.msra.mxu0 0
        %1060 = vmatpush.bf16.msra.mxu0 0
        %1061 = vmatpush.bf16.msra.mxu0 0
        %1062 = vmatpush.bf16.msra.mxu0 %v919
        %1063 = vmatpush.bf16.msra.mxu0 %v916
        %1064 = vmatmul.bf16.gmra.mxu0 %v1013
        %v1065 = vpop.f32.mrf.mxu0
        %v1066 = vadd.f32 0.0, %v1065
        %v1067 = vpop.f32.mrf.mxu0
        %v1068 = vadd.f32 0.0, %v1067
        %1069 = vmatmul.bf16.gmra.mxu0 %v1016
        %v1070 = vpop.f32.mrf.mxu0
        %v1071 = vadd.f32 0.0, %v1070
        %v1072 = vpop.f32.mrf.mxu0
        %v1073 = vadd.f32 0.0, %v1072
        %1074 = vdwg.mxu0
        %s1075 = scalar_lea.vmem %s6, 32
        %v1076 = vld [vmem:[%s1075] sm:$0xf]
        %v1077 = vld [vmem:[%s1075 + $0x4] sm:$0xf]
        %v1078 = vld [vmem:[%s1075 + $0x8] sm:$0xf]
        %v1079 = vld [vmem:[%s1075 + $0xc] sm:$0xf]
        %v1084 = vunpack.c.l.b16 %v1076
        %v1085 = vunpack.c.l.b16 %v1077
        %v1086 = vunpack.c.l.b16 %v1078
        %v1087 = vunpack.c.l.b16 %v1079
        %v1088 = vpack.c.b16 %v1085, %v1084
        %v1089 = vpack.c.b16 %v1087, %v1086
        %v1091 = vsel %vm510, %v1088, 0
        %v1094 = vsel %vm510, %v1089, 0
        %1096 = vmatpush.bf16.msra.mxu0 0
        %1097 = vmatpush.bf16.msra.mxu0 0
        %1098 = vmatpush.bf16.msra.mxu0 0
        %1099 = vmatpush.bf16.msra.mxu0 0
        %1100 = vmatpush.bf16.msra.mxu0 0
        %1101 = vmatpush.bf16.msra.mxu0 0
        %1102 = vmatpush.bf16.msra.mxu0 %v917
        %1103 = vmatpush.bf16.msra.mxu0 %v914
        %1104 = vmatmul.bf16.gmra.mxu0 %v1091
        %v1105 = vpop.f32.mrf.mxu0
        %v1106 = vadd.f32 0.0, %v1105
        %v1107 = vpop.f32.mrf.mxu0
        %v1108 = vadd.f32 0.0, %v1107
        %1109 = vmatmul.bf16.gmra.mxu0 %v1094
        %v1110 = vpop.f32.mrf.mxu0
        %v1111 = vadd.f32 0.0, %v1110
        %v1112 = vpop.f32.mrf.mxu0
        %v1113 = vadd.f32 0.0, %v1112
        %1114 = vdwg.mxu0
        %1115 = vmatpush.bf16.msra.mxu0 0
        %1116 = vmatpush.bf16.msra.mxu0 0
        %1117 = vmatpush.bf16.msra.mxu0 0
        %1118 = vmatpush.bf16.msra.mxu0 0
        %1119 = vmatpush.bf16.msra.mxu0 0
        %1120 = vmatpush.bf16.msra.mxu0 0
        %1121 = vmatpush.bf16.msra.mxu0 %v918
        %1122 = vmatpush.bf16.msra.mxu0 %v915
        %1123 = vmatmul.bf16.gmra.mxu0 %v1091
        %v1124 = vpop.f32.mrf.mxu0
        %v1125 = vadd.f32 0.0, %v1124
        %v1126 = vpop.f32.mrf.mxu0
        %v1127 = vadd.f32 0.0, %v1126
        %1128 = vmatmul.bf16.gmra.mxu0 %v1094
        %v1129 = vpop.f32.mrf.mxu0
        %v1130 = vadd.f32 0.0, %v1129
        %v1131 = vpop.f32.mrf.mxu0
        %v1132 = vadd.f32 0.0, %v1131
        %1133 = vdwg.mxu0
        %1134 = vmatpush.bf16.msra.mxu0 0
        %1135 = vmatpush.bf16.msra.mxu0 0
        %1136 = vmatpush.bf16.msra.mxu0 0
        %1137 = vmatpush.bf16.msra.mxu0 0
        %1138 = vmatpush.bf16.msra.mxu0 0
        %1139 = vmatpush.bf16.msra.mxu0 0
        %1140 = vmatpush.bf16.msra.mxu0 %v919
        %1141 = vmatpush.bf16.msra.mxu0 %v916
        %1142 = vmatmul.bf16.gmra.mxu0 %v1091
        %v1143 = vpop.f32.mrf.mxu0
        %v1144 = vadd.f32 0.0, %v1143
        %v1145 = vpop.f32.mrf.mxu0
        %v1146 = vadd.f32 0.0, %v1145
        %1147 = vmatmul.bf16.gmra.mxu0 %v1094
        %v1148 = vpop.f32.mrf.mxu0
        %v1149 = vadd.f32 0.0, %v1148
        %v1150 = vpop.f32.mrf.mxu0
        %v1151 = vadd.f32 0.0, %v1150
        %1152 = vdwg.mxu0
        %1153 = vrot.lane.b32.xlu0 %v950, 1
        %v1154 = vpop.permute.xlu0 %1153
        %1155 = vrot.lane.b32.xlu0 %v952, 1
        %v1156 = vpop.permute.xlu0 %1155
        %1157 = vrot.lane.b32.xlu0 %v955, 1
        %v1158 = vpop.permute.xlu0 %1157
        %1159 = vrot.lane.b32.xlu0 %v957, 1
        %v1160 = vpop.permute.xlu0 %1159
        %1161 = vrot.lane.b32.xlu0 %v969, 1
        %v1162 = vpop.permute.xlu0 %1161
        %1163 = vrot.lane.b32.xlu0 %v971, 1
        %v1164 = vpop.permute.xlu0 %1163
        %1165 = vrot.lane.b32.xlu0 %v974, 1
        %v1166 = vpop.permute.xlu0 %1165
        %1167 = vrot.lane.b32.xlu0 %v976, 1
        %v1168 = vpop.permute.xlu0 %1167
        %1169 = vrot.lane.b32.xlu0 %v988, 1
        %v1170 = vpop.permute.xlu0 %1169
        %1171 = vrot.lane.b32.xlu0 %v990, 1
        %v1172 = vpop.permute.xlu0 %1171
        %1173 = vrot.lane.b32.xlu0 %v993, 1
        %v1174 = vpop.permute.xlu0 %1173
        %1175 = vrot.lane.b32.xlu0 %v995, 1
        %v1176 = vpop.permute.xlu0 %1175
        %v1177 = vsel %vm756, %v1162, %v1170
        %v1178 = vsel %vm756, %v1164, %v1172
        %v1179 = vsel %vm756, %v1166, %v1174
        %v1180 = vsel %vm756, %v1168, %v1176
        %v1181 = vsel %vm756, %v1154, %v1162
        %v1182 = vsel %vm756, %v1156, %v1164
        %v1183 = vsel %vm756, %v1158, %v1166
        %v1184 = vsel %vm756, %v1160, %v1168
        %v1185 = vsel %vm756, %v1170, %v1154
        %v1186 = vsel %vm756, %v1172, %v1156
        %v1187 = vsel %vm756, %v1174, %v1158
        %v1188 = vsel %vm756, %v1176, %v1160
        %v1189 = vadd.f32 %v1185, %v1028
        %v1190 = vadd.f32 %v1181, %v1047
        %v1191 = vadd.f32 %v1177, %v1066
        %v1192 = vadd.f32 %v1186, %v1030
        %v1193 = vadd.f32 %v1182, %v1049
        %v1194 = vadd.f32 %v1178, %v1068
        %v1195 = vadd.f32 %v1187, %v1033
        %v1196 = vadd.f32 %v1183, %v1052
        %v1197 = vadd.f32 %v1179, %v1071
        %v1198 = vadd.f32 %v1188, %v1035
        %v1199 = vadd.f32 %v1184, %v1054
        %v1200 = vadd.f32 %v1180, %v1073
        %1201 = vrot.lane.b32.xlu0 %v1106, 127
        %v1202 = vpop.permute.xlu0 %1201
        %1203 = vrot.lane.b32.xlu0 %v1108, 127
        %v1204 = vpop.permute.xlu0 %1203
        %1205 = vrot.lane.b32.xlu0 %v1111, 127
        %v1206 = vpop.permute.xlu0 %1205
        %1207 = vrot.lane.b32.xlu0 %v1113, 127
        %v1208 = vpop.permute.xlu0 %1207
        %1209 = vrot.lane.b32.xlu0 %v1125, 127
        %v1210 = vpop.permute.xlu0 %1209
        %1211 = vrot.lane.b32.xlu0 %v1127, 127
        %v1212 = vpop.permute.xlu0 %1211
        %1213 = vrot.lane.b32.xlu0 %v1130, 127
        %v1214 = vpop.permute.xlu0 %1213
        %1215 = vrot.lane.b32.xlu0 %v1132, 127
        %v1216 = vpop.permute.xlu0 %1215
        %1217 = vrot.lane.b32.xlu0 %v1144, 127
        %v1218 = vpop.permute.xlu0 %1217
        %1219 = vrot.lane.b32.xlu0 %v1146, 127
        %v1220 = vpop.permute.xlu0 %1219
        %1221 = vrot.lane.b32.xlu0 %v1149, 127
        %v1222 = vpop.permute.xlu0 %1221
        %1223 = vrot.lane.b32.xlu0 %v1151, 127
        %v1224 = vpop.permute.xlu0 %1223
        %v1225 = vsel %vm805, %v1210, %v1218
        %v1226 = vsel %vm805, %v1212, %v1220
        %v1227 = vsel %vm805, %v1214, %v1222
        %v1228 = vsel %vm805, %v1216, %v1224
        %v1229 = vsel %vm805, %v1202, %v1210
        %v1230 = vsel %vm805, %v1204, %v1212
        %v1231 = vsel %vm805, %v1206, %v1214
        %v1232 = vsel %vm805, %v1208, %v1216
        %v1233 = vsel %vm805, %v1218, %v1202
        %v1234 = vsel %vm805, %v1220, %v1204
        %v1235 = vsel %vm805, %v1222, %v1206
        %v1236 = vsel %vm805, %v1224, %v1208
        %v1237 = vadd.f32 %v1189, %v1229
        %v1238 = vadd.f32 %v1190, %v1225
        %v1239 = vadd.f32 %v1191, %v1233
        %v1240 = vadd.f32 %v1192, %v1230
        %v1241 = vadd.f32 %v1193, %v1226
        %v1242 = vadd.f32 %v1194, %v1234
        %v1243 = vadd.f32 %v1195, %v1231
        %v1244 = vadd.f32 %v1196, %v1227
        %v1245 = vadd.f32 %v1197, %v1235
        %v1246 = vadd.f32 %v1198, %v1232
        %v1247 = vadd.f32 %v1199, %v1228
        %v1248 = vadd.f32 %v1200, %v1236
        %v1249 = vld [vmem:[%s7] sm:$0xff]
        %v1250 = vld [vmem:[%s7 + $0x8] sm:$0xff]
        %v1251 = vld [vmem:[%s7 + $0x10] sm:$0xff]
        %v1252 = vld [vmem:[%s7 + $0x18] sm:$0xff]
        %1254 = vset.pattern.permute.xlu0 0
        %1255 = vperm.xlu0 %1254, %v1249
        %v1256 = vpop.permute.xlu0 %1255
        %1259 = vset.pattern.permute.xlu0 0
        %1260 = vperm.xlu0 %1259, %v1250
        %v1261 = vpop.permute.xlu0 %1260
        %1264 = vset.pattern.permute.xlu0 0
        %1265 = vperm.xlu0 %1264, %v1251
        %v1266 = vpop.permute.xlu0 %1265
        %1269 = vset.pattern.permute.xlu0 0
        %1270 = vperm.xlu0 %1269, %v1252
        %v1271 = vpop.permute.xlu0 %1270
        %v1273 = vmul.f32 %v1237, %v1256
        %v1274 = vmul.f32 %v1238, %v1256
        %v1275 = vmul.f32 %v1239, %v1256
        %v1276 = vmul.f32 %v1240, %v1261
        %v1277 = vmul.f32 %v1241, %v1261
        %v1278 = vmul.f32 %v1242, %v1261
        %v1279 = vmul.f32 %v1243, %v1266
        %v1280 = vmul.f32 %v1244, %v1266
        %v1281 = vmul.f32 %v1245, %v1266
        %v1282 = vmul.f32 %v1246, %v1271
        %v1283 = vmul.f32 %v1247, %v1271
        %v1284 = vmul.f32 %v1248, %v1271
        %v1285 = vld [vmem:[%s8] sm:$0xff]
        %v1286 = vld [vmem:[%s8 + $0x8] sm:$0xff]
        %v1287 = vld [vmem:[%s8 + $0x10] sm:$0xff]
        %v1288 = vld [vmem:[%s8 + $0x18] sm:$0xff]
        %1290 = vset.pattern.permute.xlu0 0
        %1291 = vperm.xlu0 %1290, %v1285
        %v1292 = vpop.permute.xlu0 %1291
        %1295 = vset.pattern.permute.xlu0 0
        %1296 = vperm.xlu0 %1295, %v1286
        %v1297 = vpop.permute.xlu0 %1296
        %1300 = vset.pattern.permute.xlu0 0
        %1301 = vperm.xlu0 %1300, %v1287
        %v1302 = vpop.permute.xlu0 %1301
        %1305 = vset.pattern.permute.xlu0 0
        %1306 = vperm.xlu0 %1305, %v1288
        %v1307 = vpop.permute.xlu0 %1306
        %v1309 = vadd.f32 %v1273, %v1292
        %v1310 = vadd.f32 %v1274, %v1292
        %v1311 = vadd.f32 %v1275, %v1292
        %v1312 = vadd.f32 %v1276, %v1297
        %v1313 = vadd.f32 %v1277, %v1297
        %v1314 = vadd.f32 %v1278, %v1297
        %v1315 = vadd.f32 %v1279, %v1302
        %v1316 = vadd.f32 %v1280, %v1302
        %v1317 = vadd.f32 %v1281, %v1302
        %v1318 = vadd.f32 %v1282, %v1307
        %v1319 = vadd.f32 %v1283, %v1307
        %v1320 = vadd.f32 %v1284, %v1307
        %v1321 = vadd.f32 %v1309, %v469
        %v1322 = vadd.f32 %v1310, %v473
        %v1323 = vadd.f32 %v1311, %v477
        %v1324 = vadd.f32 %v1312, %v470
        %v1325 = vadd.f32 %v1313, %v474
        %v1326 = vadd.f32 %v1314, %v478
        %v1327 = vadd.f32 %v1315, %v471
        %v1328 = vadd.f32 %v1316, %v475
        %v1329 = vadd.f32 %v1317, %v479
        %v1330 = vadd.f32 %v1318, %v472
        %v1331 = vadd.f32 %v1319, %v476
        %v1332 = vadd.f32 %v1320, %v480
        %v1333 = vmax.f32 %v1321, 0.0
        %v1334 = vmax.f32 %v1322, 0.0
        %v1335 = vmax.f32 %v1323, 0.0
        %v1336 = vmax.f32 %v1324, 0.0
        %v1337 = vmax.f32 %v1325, 0.0
        %v1338 = vmax.f32 %v1326, 0.0
        %v1339 = vmax.f32 %v1327, 0.0
        %v1340 = vmax.f32 %v1328, 0.0
        %v1341 = vmax.f32 %v1329, 0.0
        %v1342 = vmax.f32 %v1330, 0.0
        %v1343 = vmax.f32 %v1331, 0.0
        %v1344 = vmax.f32 %v1332, 0.0
        %v1345 = vpack.c.bf16 %v1336, %v1333
        %v1346 = vpack.c.bf16 %v1337, %v1334
        %v1347 = vpack.c.bf16 %v1338, %v1335
        %v1348 = vpack.c.bf16 %v1342, %v1339
        %v1349 = vpack.c.bf16 %v1343, %v1340
        %v1350 = vpack.c.bf16 %v1344, %v1341
        %s1351 = scalar_lea.vmem %s3, 48
        %v1352 = vld [vmem:[%s1351] sm:$0xf]
        %v1353 = vld [vmem:[%s1351 + $0x4] sm:$0xf]
        %v1354 = vld [vmem:[%s1351 + $0x8] sm:$0xf]
        %v1355 = vld [vmem:[%s1351 + $0xc] sm:$0xf]
        %v1360 = vunpack.c.l.b16 %v1352
        %v1361 = vunpack.c.l.b16 %v1353
        %v1362 = vunpack.c.l.b16 %v1354
        %v1363 = vunpack.c.l.b16 %v1355
        %v1364 = vpack.c.b16 %v1361, %v1360
        %v1365 = vpack.c.b16 %v1363, %v1362
        %v1367 = vsel %vm510, %v1364, 0
        %v1370 = vsel %vm510, %v1365, 0
        %1372 = vmatpush.bf16.msra.mxu0 0
        %1373 = vmatpush.bf16.msra.mxu0 0
        %1374 = vmatpush.bf16.msra.mxu0 0
        %1375 = vmatpush.bf16.msra.mxu0 0
        %1376 = vmatpush.bf16.msra.mxu0 0
        %1377 = vmatpush.bf16.msra.mxu0 0
        %1378 = vmatpush.bf16.msra.mxu0 %v1348
        %1379 = vmatpush.bf16.msra.mxu0 %v1345
        %1380 = vmatmul.bf16.gmra.mxu0 %v1367
        %v1381 = vpop.f32.mrf.mxu0
        %v1382 = vadd.f32 0.0, %v1381
        %v1383 = vpop.f32.mrf.mxu0
        %v1384 = vadd.f32 0.0, %v1383
        %1385 = vmatmul.bf16.gmra.mxu0 %v1370
        %v1386 = vpop.f32.mrf.mxu0
        %v1387 = vadd.f32 0.0, %v1386
        %v1388 = vpop.f32.mrf.mxu0
        %v1389 = vadd.f32 0.0, %v1388
        %1390 = vdwg.mxu0
        %1391 = vmatpush.bf16.msra.mxu0 0
        %1392 = vmatpush.bf16.msra.mxu0 0
        %1393 = vmatpush.bf16.msra.mxu0 0
        %1394 = vmatpush.bf16.msra.mxu0 0
        %1395 = vmatpush.bf16.msra.mxu0 0
        %1396 = vmatpush.bf16.msra.mxu0 0
        %1397 = vmatpush.bf16.msra.mxu0 %v1349
        %1398 = vmatpush.bf16.msra.mxu0 %v1346
        %1399 = vmatmul.bf16.gmra.mxu0 %v1367
        %v1400 = vpop.f32.mrf.mxu0
        %v1401 = vadd.f32 0.0, %v1400
        %v1402 = vpop.f32.mrf.mxu0
        %v1403 = vadd.f32 0.0, %v1402
        %1404 = vmatmul.bf16.gmra.mxu0 %v1370
        %v1405 = vpop.f32.mrf.mxu0
        %v1406 = vadd.f32 0.0, %v1405
        %v1407 = vpop.f32.mrf.mxu0
        %v1408 = vadd.f32 0.0, %v1407
        %1409 = vdwg.mxu0
        %1410 = vmatpush.bf16.msra.mxu0 0
        %1411 = vmatpush.bf16.msra.mxu0 0
        %1412 = vmatpush.bf16.msra.mxu0 0
        %1413 = vmatpush.bf16.msra.mxu0 0
        %1414 = vmatpush.bf16.msra.mxu0 0
        %1415 = vmatpush.bf16.msra.mxu0 0
        %1416 = vmatpush.bf16.msra.mxu0 %v1350
        %1417 = vmatpush.bf16.msra.mxu0 %v1347
        %1418 = vmatmul.bf16.gmra.mxu0 %v1367
        %v1419 = vpop.f32.mrf.mxu0
        %v1420 = vadd.f32 0.0, %v1419
        %v1421 = vpop.f32.mrf.mxu0
        %v1422 = vadd.f32 0.0, %v1421
        %1423 = vmatmul.bf16.gmra.mxu0 %v1370
        %v1424 = vpop.f32.mrf.mxu0
        %v1425 = vadd.f32 0.0, %v1424
        %v1426 = vpop.f32.mrf.mxu0
        %v1427 = vadd.f32 0.0, %v1426
        %1428 = vdwg.mxu0
        %s1429 = scalar_lea.vmem %s3, 64
        %v1430 = vld [vmem:[%s1429] sm:$0xf]
        %v1431 = vld [vmem:[%s1429 + $0x4] sm:$0xf]
        %v1432 = vld [vmem:[%s1429 + $0x8] sm:$0xf]
        %v1433 = vld [vmem:[%s1429 + $0xc] sm:$0xf]
        %v1438 = vunpack.c.l.b16 %v1430
        %v1439 = vunpack.c.l.b16 %v1431
        %v1440 = vunpack.c.l.b16 %v1432
        %v1441 = vunpack.c.l.b16 %v1433
        %v1442 = vpack.c.b16 %v1439, %v1438
        %v1443 = vpack.c.b16 %v1441, %v1440
        %v1445 = vsel %vm510, %v1442, 0
        %v1448 = vsel %vm510, %v1443, 0
        %1450 = vmatpush.bf16.msra.mxu0 0
        %1451 = vmatpush.bf16.msra.mxu0 0
        %1452 = vmatpush.bf16.msra.mxu0 0
        %1453 = vmatpush.bf16.msra.mxu0 0
        %1454 = vmatpush.bf16.msra.mxu0 0
        %1455 = vmatpush.bf16.msra.mxu0 0
        %1456 = vmatpush.bf16.msra.mxu0 %v1348
        %1457 = vmatpush.bf16.msra.mxu0 %v1345
        %1458 = vmatmul.bf16.gmra.mxu0 %v1445
        %v1459 = vpop.f32.mrf.mxu0
        %v1460 = vadd.f32 0.0, %v1459
        %v1461 = vpop.f32.mrf.mxu0
        %v1462 = vadd.f32 0.0, %v1461
        %1463 = vmatmul.bf16.gmra.mxu0 %v1448
        %v1464 = vpop.f32.mrf.mxu0
        %v1465 = vadd.f32 0.0, %v1464
        %v1466 = vpop.f32.mrf.mxu0
        %v1467 = vadd.f32 0.0, %v1466
        %1468 = vdwg.mxu0
        %1469 = vmatpush.bf16.msra.mxu0 0
        %1470 = vmatpush.bf16.msra.mxu0 0
        %1471 = vmatpush.bf16.msra.mxu0 0
        %1472 = vmatpush.bf16.msra.mxu0 0
        %1473 = vmatpush.bf16.msra.mxu0 0
        %1474 = vmatpush.bf16.msra.mxu0 0
        %1475 = vmatpush.bf16.msra.mxu0 %v1349
        %1476 = vmatpush.bf16.msra.mxu0 %v1346
        %1477 = vmatmul.bf16.gmra.mxu0 %v1445
        %v1478 = vpop.f32.mrf.mxu0
        %v1479 = vadd.f32 0.0, %v1478
        %v1480 = vpop.f32.mrf.mxu0
        %v1481 = vadd.f32 0.0, %v1480
        %1482 = vmatmul.bf16.gmra.mxu0 %v1448
        %v1483 = vpop.f32.mrf.mxu0
        %v1484 = vadd.f32 0.0, %v1483
        %v1485 = vpop.f32.mrf.mxu0
        %v1486 = vadd.f32 0.0, %v1485
        %1487 = vdwg.mxu0
        %1488 = vmatpush.bf16.msra.mxu0 0
        %1489 = vmatpush.bf16.msra.mxu0 0
        %1490 = vmatpush.bf16.msra.mxu0 0
        %1491 = vmatpush.bf16.msra.mxu0 0
        %1492 = vmatpush.bf16.msra.mxu0 0
        %1493 = vmatpush.bf16.msra.mxu0 0
        %1494 = vmatpush.bf16.msra.mxu0 %v1350
        %1495 = vmatpush.bf16.msra.mxu0 %v1347
        %1496 = vmatmul.bf16.gmra.mxu0 %v1445
        %v1497 = vpop.f32.mrf.mxu0
        %v1498 = vadd.f32 0.0, %v1497
        %v1499 = vpop.f32.mrf.mxu0
        %v1500 = vadd.f32 0.0, %v1499
        %1501 = vmatmul.bf16.gmra.mxu0 %v1448
        %v1502 = vpop.f32.mrf.mxu0
        %v1503 = vadd.f32 0.0, %v1502
        %v1504 = vpop.f32.mrf.mxu0
        %v1505 = vadd.f32 0.0, %v1504
        %1506 = vdwg.mxu0
        %s1507 = scalar_lea.vmem %s3, 80
        %v1508 = vld [vmem:[%s1507] sm:$0xf]
        %v1509 = vld [vmem:[%s1507 + $0x4] sm:$0xf]
        %v1510 = vld [vmem:[%s1507 + $0x8] sm:$0xf]
        %v1511 = vld [vmem:[%s1507 + $0xc] sm:$0xf]
        %v1516 = vunpack.c.l.b16 %v1508
        %v1517 = vunpack.c.l.b16 %v1509
        %v1518 = vunpack.c.l.b16 %v1510
        %v1519 = vunpack.c.l.b16 %v1511
        %v1520 = vpack.c.b16 %v1517, %v1516
        %v1521 = vpack.c.b16 %v1519, %v1518
        %v1523 = vsel %vm510, %v1520, 0
        %v1526 = vsel %vm510, %v1521, 0
        %1528 = vmatpush.bf16.msra.mxu0 0
        %1529 = vmatpush.bf16.msra.mxu0 0
        %1530 = vmatpush.bf16.msra.mxu0 0
        %1531 = vmatpush.bf16.msra.mxu0 0
        %1532 = vmatpush.bf16.msra.mxu0 0
        %1533 = vmatpush.bf16.msra.mxu0 0
        %1534 = vmatpush.bf16.msra.mxu0 %v1348
        %1535 = vmatpush.bf16.msra.mxu0 %v1345
        %1536 = vmatmul.bf16.gmra.mxu0 %v1523
        %v1537 = vpop.f32.mrf.mxu0
        %v1538 = vadd.f32 0.0, %v1537
        %v1539 = vpop.f32.mrf.mxu0
        %v1540 = vadd.f32 0.0, %v1539
        %1541 = vmatmul.bf16.gmra.mxu0 %v1526
        %v1542 = vpop.f32.mrf.mxu0
        %v1543 = vadd.f32 0.0, %v1542
        %v1544 = vpop.f32.mrf.mxu0
        %v1545 = vadd.f32 0.0, %v1544
        %1546 = vdwg.mxu0
        %1547 = vmatpush.bf16.msra.mxu0 0
        %1548 = vmatpush.bf16.msra.mxu0 0
        %1549 = vmatpush.bf16.msra.mxu0 0
        %1550 = vmatpush.bf16.msra.mxu0 0
        %1551 = vmatpush.bf16.msra.mxu0 0
        %1552 = vmatpush.bf16.msra.mxu0 0
        %1553 = vmatpush.bf16.msra.mxu0 %v1349
        %1554 = vmatpush.bf16.msra.mxu0 %v1346
        %1555 = vmatmul.bf16.gmra.mxu0 %v1523
        %v1556 = vpop.f32.mrf.mxu0
        %v1557 = vadd.f32 0.0, %v1556
        %v1558 = vpop.f32.mrf.mxu0
        %v1559 = vadd.f32 0.0, %v1558
        %1560 = vmatmul.bf16.gmra.mxu0 %v1526
        %v1561 = vpop.f32.mrf.mxu0
        %v1562 = vadd.f32 0.0, %v1561
        %v1563 = vpop.f32.mrf.mxu0
        %v1564 = vadd.f32 0.0, %v1563
        %1565 = vdwg.mxu0
        %1566 = vmatpush.bf16.msra.mxu0 0
        %1567 = vmatpush.bf16.msra.mxu0 0
        %1568 = vmatpush.bf16.msra.mxu0 0
        %1569 = vmatpush.bf16.msra.mxu0 0
        %1570 = vmatpush.bf16.msra.mxu0 0
        %1571 = vmatpush.bf16.msra.mxu0 0
        %1572 = vmatpush.bf16.msra.mxu0 %v1350
        %1573 = vmatpush.bf16.msra.mxu0 %v1347
        %1574 = vmatmul.bf16.gmra.mxu0 %v1523
        %v1575 = vpop.f32.mrf.mxu0
        %v1576 = vadd.f32 0.0, %v1575
        %v1577 = vpop.f32.mrf.mxu0
        %v1578 = vadd.f32 0.0, %v1577
        %1579 = vmatmul.bf16.gmra.mxu0 %v1526
        %v1580 = vpop.f32.mrf.mxu0
        %v1581 = vadd.f32 0.0, %v1580
        %v1582 = vpop.f32.mrf.mxu0
        %v1583 = vadd.f32 0.0, %v1582
        %1584 = vdwg.mxu0
        %1585 = vrot.lane.b32.xlu0 %v1382, 1
        %v1586 = vpop.permute.xlu0 %1585
        %1587 = vrot.lane.b32.xlu0 %v1384, 1
        %v1588 = vpop.permute.xlu0 %1587
        %1589 = vrot.lane.b32.xlu0 %v1387, 1
        %v1590 = vpop.permute.xlu0 %1589
        %1591 = vrot.lane.b32.xlu0 %v1389, 1
        %v1592 = vpop.permute.xlu0 %1591
        %1593 = vrot.lane.b32.xlu0 %v1401, 1
        %v1594 = vpop.permute.xlu0 %1593
        %1595 = vrot.lane.b32.xlu0 %v1403, 1
        %v1596 = vpop.permute.xlu0 %1595
        %1597 = vrot.lane.b32.xlu0 %v1406, 1
        %v1598 = vpop.permute.xlu0 %1597
        %1599 = vrot.lane.b32.xlu0 %v1408, 1
        %v1600 = vpop.permute.xlu0 %1599
        %1601 = vrot.lane.b32.xlu0 %v1420, 1
        %v1602 = vpop.permute.xlu0 %1601
        %1603 = vrot.lane.b32.xlu0 %v1422, 1
        %v1604 = vpop.permute.xlu0 %1603
        %1605 = vrot.lane.b32.xlu0 %v1425, 1
        %v1606 = vpop.permute.xlu0 %1605
        %1607 = vrot.lane.b32.xlu0 %v1427, 1
        %v1608 = vpop.permute.xlu0 %1607
        %v1609 = vsel %vm756, %v1594, %v1602
        %v1610 = vsel %vm756, %v1596, %v1604
        %v1611 = vsel %vm756, %v1598, %v1606
        %v1612 = vsel %vm756, %v1600, %v1608
        %v1613 = vsel %vm756, %v1586, %v1594
        %v1614 = vsel %vm756, %v1588, %v1596
        %v1615 = vsel %vm756, %v1590, %v1598
        %v1616 = vsel %vm756, %v1592, %v1600
        %v1617 = vsel %vm756, %v1602, %v1586
        %v1618 = vsel %vm756, %v1604, %v1588
        %v1619 = vsel %vm756, %v1606, %v1590
        %v1620 = vsel %vm756, %v1608, %v1592
        %v1621 = vadd.f32 %v1617, %v1460
        %v1622 = vadd.f32 %v1613, %v1479
        %v1623 = vadd.f32 %v1609, %v1498
        %v1624 = vadd.f32 %v1618, %v1462
        %v1625 = vadd.f32 %v1614, %v1481
        %v1626 = vadd.f32 %v1610, %v1500
        %v1627 = vadd.f32 %v1619, %v1465
        %v1628 = vadd.f32 %v1615, %v1484
        %v1629 = vadd.f32 %v1611, %v1503
        %v1630 = vadd.f32 %v1620, %v1467
        %v1631 = vadd.f32 %v1616, %v1486
        %v1632 = vadd.f32 %v1612, %v1505
        %1633 = vrot.lane.b32.xlu0 %v1538, 127
        %v1634 = vpop.permute.xlu0 %1633
        %1635 = vrot.lane.b32.xlu0 %v1540, 127
        %v1636 = vpop.permute.xlu0 %1635
        %1637 = vrot.lane.b32.xlu0 %v1543, 127
        %v1638 = vpop.permute.xlu0 %1637
        %1639 = vrot.lane.b32.xlu0 %v1545, 127
        %v1640 = vpop.permute.xlu0 %1639
        %1641 = vrot.lane.b32.xlu0 %v1557, 127
        %v1642 = vpop.permute.xlu0 %1641
        %1643 = vrot.lane.b32.xlu0 %v1559, 127
        %v1644 = vpop.permute.xlu0 %1643
        %1645 = vrot.lane.b32.xlu0 %v1562, 127
        %v1646 = vpop.permute.xlu0 %1645
        %1647 = vrot.lane.b32.xlu0 %v1564, 127
        %v1648 = vpop.permute.xlu0 %1647
        %1649 = vrot.lane.b32.xlu0 %v1576, 127
        %v1650 = vpop.permute.xlu0 %1649
        %1651 = vrot.lane.b32.xlu0 %v1578, 127
        %v1652 = vpop.permute.xlu0 %1651
        %1653 = vrot.lane.b32.xlu0 %v1581, 127
        %v1654 = vpop.permute.xlu0 %1653
        %1655 = vrot.lane.b32.xlu0 %v1583, 127
        %v1656 = vpop.permute.xlu0 %1655
        %v1657 = vsel %vm805, %v1642, %v1650
        %v1658 = vsel %vm805, %v1644, %v1652
        %v1659 = vsel %vm805, %v1646, %v1654
        %v1660 = vsel %vm805, %v1648, %v1656
        %v1661 = vsel %vm805, %v1634, %v1642
        %v1662 = vsel %vm805, %v1636, %v1644
        %v1663 = vsel %vm805, %v1638, %v1646
        %v1664 = vsel %vm805, %v1640, %v1648
        %v1665 = vsel %vm805, %v1650, %v1634
        %v1666 = vsel %vm805, %v1652, %v1636
        %v1667 = vsel %vm805, %v1654, %v1638
        %v1668 = vsel %vm805, %v1656, %v1640
        %v1669 = vadd.f32 %v1621, %v1661
        %v1670 = vadd.f32 %v1622, %v1657
        %v1671 = vadd.f32 %v1623, %v1665
        %v1672 = vadd.f32 %v1624, %v1662
        %v1673 = vadd.f32 %v1625, %v1658
        %v1674 = vadd.f32 %v1626, %v1666
        %v1675 = vadd.f32 %v1627, %v1663
        %v1676 = vadd.f32 %v1628, %v1659
        %v1677 = vadd.f32 %v1629, %v1667
        %v1678 = vadd.f32 %v1630, %v1664
        %v1679 = vadd.f32 %v1631, %v1660
        %v1680 = vadd.f32 %v1632, %v1668
        %s1681 = scalar_lea.vmem %s4, 32
        %v1682 = vld [vmem:[%s1681] sm:$0xff]
        %v1683 = vld [vmem:[%s1681 + $0x8] sm:$0xff]
        %v1684 = vld [vmem:[%s1681 + $0x10] sm:$0xff]
        %v1685 = vld [vmem:[%s1681 + $0x18] sm:$0xff]
        %1687 = vset.pattern.permute.xlu0 0
        %1688 = vperm.xlu0 %1687, %v1682
        %v1689 = vpop.permute.xlu0 %1688
        %1692 = vset.pattern.permute.xlu0 0
        %1693 = vperm.xlu0 %1692, %v1683
        %v1694 = vpop.permute.xlu0 %1693
        %1697 = vset.pattern.permute.xlu0 0
        %1698 = vperm.xlu0 %1697, %v1684
        %v1699 = vpop.permute.xlu0 %1698
        %1702 = vset.pattern.permute.xlu0 0
        %1703 = vperm.xlu0 %1702, %v1685
        %v1704 = vpop.permute.xlu0 %1703
        %v1706 = vmul.f32 %v1669, %v1689
        %v1707 = vmul.f32 %v1670, %v1689
        %v1708 = vmul.f32 %v1671, %v1689
        %v1709 = vmul.f32 %v1672, %v1694
        %v1710 = vmul.f32 %v1673, %v1694
        %v1711 = vmul.f32 %v1674, %v1694
        %v1712 = vmul.f32 %v1675, %v1699
        %v1713 = vmul.f32 %v1676, %v1699
        %v1714 = vmul.f32 %v1677, %v1699
        %v1715 = vmul.f32 %v1678, %v1704
        %v1716 = vmul.f32 %v1679, %v1704
        %v1717 = vmul.f32 %v1680, %v1704
        %s1718 = scalar_lea.vmem %s5, 32
        %v1719 = vld [vmem:[%s1718] sm:$0xff]
        %v1720 = vld [vmem:[%s1718 + $0x8] sm:$0xff]
        %v1721 = vld [vmem:[%s1718 + $0x10] sm:$0xff]
        %v1722 = vld [vmem:[%s1718 + $0x18] sm:$0xff]
        %1724 = vset.pattern.permute.xlu0 0
        %1725 = vperm.xlu0 %1724, %v1719
        %v1726 = vpop.permute.xlu0 %1725
        %1729 = vset.pattern.permute.xlu0 0
        %1730 = vperm.xlu0 %1729, %v1720
        %v1731 = vpop.permute.xlu0 %1730
        %1734 = vset.pattern.permute.xlu0 0
        %1735 = vperm.xlu0 %1734, %v1721
        %v1736 = vpop.permute.xlu0 %1735
        %1739 = vset.pattern.permute.xlu0 0
        %1740 = vperm.xlu0 %1739, %v1722
        %v1741 = vpop.permute.xlu0 %1740
        %v1743 = vadd.f32 %v1706, %v1726
        %v1744 = vadd.f32 %v1707, %v1726
        %v1745 = vadd.f32 %v1708, %v1726
        %v1746 = vadd.f32 %v1709, %v1731
        %v1747 = vadd.f32 %v1710, %v1731
        %v1748 = vadd.f32 %v1711, %v1731
        %v1749 = vadd.f32 %v1712, %v1736
        %v1750 = vadd.f32 %v1713, %v1736
        %v1751 = vadd.f32 %v1714, %v1736
        %v1752 = vadd.f32 %v1715, %v1741
        %v1753 = vadd.f32 %v1716, %v1741
        %v1754 = vadd.f32 %v1717, %v1741
        %v1755 = vmax.f32 %v1743, 0.0
        %v1756 = vmax.f32 %v1744, 0.0
        %v1757 = vmax.f32 %v1745, 0.0
        %v1758 = vmax.f32 %v1746, 0.0
        %v1759 = vmax.f32 %v1747, 0.0
        %v1760 = vmax.f32 %v1748, 0.0
        %v1761 = vmax.f32 %v1749, 0.0
        %v1762 = vmax.f32 %v1750, 0.0
        %v1763 = vmax.f32 %v1751, 0.0
        %v1764 = vmax.f32 %v1752, 0.0
        %v1765 = vmax.f32 %v1753, 0.0
        %v1766 = vmax.f32 %v1754, 0.0
        %v1767 = vpack.c.bf16 %v1758, %v1755
        %v1768 = vpack.c.bf16 %v1759, %v1756
        %v1769 = vpack.c.bf16 %v1760, %v1757
        %v1770 = vpack.c.bf16 %v1764, %v1761
        %v1771 = vpack.c.bf16 %v1765, %v1762
        %v1772 = vpack.c.bf16 %v1766, %v1763
        %s1773 = scalar_lea.vmem %s6, 48
        %v1774 = vld [vmem:[%s1773] sm:$0xf]
        %v1775 = vld [vmem:[%s1773 + $0x4] sm:$0xf]
        %v1776 = vld [vmem:[%s1773 + $0x8] sm:$0xf]
        %v1777 = vld [vmem:[%s1773 + $0xc] sm:$0xf]
        %v1782 = vunpack.c.l.b16 %v1774
        %v1783 = vunpack.c.l.b16 %v1775
        %v1784 = vunpack.c.l.b16 %v1776
        %v1785 = vunpack.c.l.b16 %v1777
        %v1786 = vpack.c.b16 %v1783, %v1782
        %v1787 = vpack.c.b16 %v1785, %v1784
        %v1789 = vsel %vm510, %v1786, 0
        %v1792 = vsel %vm510, %v1787, 0
        %1794 = vmatpush.bf16.msra.mxu0 0
        %1795 = vmatpush.bf16.msra.mxu0 0
        %1796 = vmatpush.bf16.msra.mxu0 0
        %1797 = vmatpush.bf16.msra.mxu0 0
        %1798 = vmatpush.bf16.msra.mxu0 0
        %1799 = vmatpush.bf16.msra.mxu0 0
        %1800 = vmatpush.bf16.msra.mxu0 %v1770
        %1801 = vmatpush.bf16.msra.mxu0 %v1767
        %1802 = vmatmul.bf16.gmra.mxu0 %v1789
        %v1803 = vpop.f32.mrf.mxu0
        %v1804 = vadd.f32 0.0, %v1803
        %v1805 = vpop.f32.mrf.mxu0
        %v1806 = vadd.f32 0.0, %v1805
        %1807 = vmatmul.bf16.gmra.mxu0 %v1792
        %v1808 = vpop.f32.mrf.mxu0
        %v1809 = vadd.f32 0.0, %v1808
        %v1810 = vpop.f32.mrf.mxu0
        %v1811 = vadd.f32 0.0, %v1810
        %1812 = vdwg.mxu0
        %1813 = vmatpush.bf16.msra.mxu0 0
        %1814 = vmatpush.bf16.msra.mxu0 0
        %1815 = vmatpush.bf16.msra.mxu0 0
        %1816 = vmatpush.bf16.msra.mxu0 0
        %1817 = vmatpush.bf16.msra.mxu0 0
        %1818 = vmatpush.bf16.msra.mxu0 0
        %1819 = vmatpush.bf16.msra.mxu0 %v1771
        %1820 = vmatpush.bf16.msra.mxu0 %v1768
        %1821 = vmatmul.bf16.gmra.mxu0 %v1789
        %v1822 = vpop.f32.mrf.mxu0
        %v1823 = vadd.f32 0.0, %v1822
        %v1824 = vpop.f32.mrf.mxu0
        %v1825 = vadd.f32 0.0, %v1824
        %1826 = vmatmul.bf16.gmra.mxu0 %v1792
        %v1827 = vpop.f32.mrf.mxu0
        %v1828 = vadd.f32 0.0, %v1827
        %v1829 = vpop.f32.mrf.mxu0
        %v1830 = vadd.f32 0.0, %v1829
        %1831 = vdwg.mxu0
        %1832 = vmatpush.bf16.msra.mxu0 0
        %1833 = vmatpush.bf16.msra.mxu0 0
        %1834 = vmatpush.bf16.msra.mxu0 0
        %1835 = vmatpush.bf16.msra.mxu0 0
        %1836 = vmatpush.bf16.msra.mxu0 0
        %1837 = vmatpush.bf16.msra.mxu0 0
        %1838 = vmatpush.bf16.msra.mxu0 %v1772
        %1839 = vmatpush.bf16.msra.mxu0 %v1769
        %1840 = vmatmul.bf16.gmra.mxu0 %v1789
        %v1841 = vpop.f32.mrf.mxu0
        %v1842 = vadd.f32 0.0, %v1841
        %v1843 = vpop.f32.mrf.mxu0
        %v1844 = vadd.f32 0.0, %v1843
        %1845 = vmatmul.bf16.gmra.mxu0 %v1792
        %v1846 = vpop.f32.mrf.mxu0
        %v1847 = vadd.f32 0.0, %v1846
        %v1848 = vpop.f32.mrf.mxu0
        %v1849 = vadd.f32 0.0, %v1848
        %1850 = vdwg.mxu0
        %s1851 = scalar_lea.vmem %s6, 64
        %v1852 = vld [vmem:[%s1851] sm:$0xf]
        %v1853 = vld [vmem:[%s1851 + $0x4] sm:$0xf]
        %v1854 = vld [vmem:[%s1851 + $0x8] sm:$0xf]
        %v1855 = vld [vmem:[%s1851 + $0xc] sm:$0xf]
        %v1860 = vunpack.c.l.b16 %v1852
        %v1861 = vunpack.c.l.b16 %v1853
        %v1862 = vunpack.c.l.b16 %v1854
        %v1863 = vunpack.c.l.b16 %v1855
        %v1864 = vpack.c.b16 %v1861, %v1860
        %v1865 = vpack.c.b16 %v1863, %v1862
        %v1867 = vsel %vm510, %v1864, 0
        %v1870 = vsel %vm510, %v1865, 0
        %1872 = vmatpush.bf16.msra.mxu0 0
        %1873 = vmatpush.bf16.msra.mxu0 0
        %1874 = vmatpush.bf16.msra.mxu0 0
        %1875 = vmatpush.bf16.msra.mxu0 0
        %1876 = vmatpush.bf16.msra.mxu0 0
        %1877 = vmatpush.bf16.msra.mxu0 0
        %1878 = vmatpush.bf16.msra.mxu0 %v1770
        %1879 = vmatpush.bf16.msra.mxu0 %v1767
        %1880 = vmatmul.bf16.gmra.mxu0 %v1867
        %v1881 = vpop.f32.mrf.mxu0
        %v1882 = vadd.f32 0.0, %v1881
        %v1883 = vpop.f32.mrf.mxu0
        %v1884 = vadd.f32 0.0, %v1883
        %1885 = vmatmul.bf16.gmra.mxu0 %v1870
        %v1886 = vpop.f32.mrf.mxu0
        %v1887 = vadd.f32 0.0, %v1886
        %v1888 = vpop.f32.mrf.mxu0
        %v1889 = vadd.f32 0.0, %v1888
        %1890 = vdwg.mxu0
        %1891 = vmatpush.bf16.msra.mxu0 0
        %1892 = vmatpush.bf16.msra.mxu0 0
        %1893 = vmatpush.bf16.msra.mxu0 0
        %1894 = vmatpush.bf16.msra.mxu0 0
        %1895 = vmatpush.bf16.msra.mxu0 0
        %1896 = vmatpush.bf16.msra.mxu0 0
        %1897 = vmatpush.bf16.msra.mxu0 %v1771
        %1898 = vmatpush.bf16.msra.mxu0 %v1768
        %1899 = vmatmul.bf16.gmra.mxu0 %v1867
        %v1900 = vpop.f32.mrf.mxu0
        %v1901 = vadd.f32 0.0, %v1900
        %v1902 = vpop.f32.mrf.mxu0
        %v1903 = vadd.f32 0.0, %v1902
        %1904 = vmatmul.bf16.gmra.mxu0 %v1870
        %v1905 = vpop.f32.mrf.mxu0
        %v1906 = vadd.f32 0.0, %v1905
        %v1907 = vpop.f32.mrf.mxu0
        %v1908 = vadd.f32 0.0, %v1907
        %1909 = vdwg.mxu0
        %1910 = vmatpush.bf16.msra.mxu0 0
        %1911 = vmatpush.bf16.msra.mxu0 0
        %1912 = vmatpush.bf16.msra.mxu0 0
        %1913 = vmatpush.bf16.msra.mxu0 0
        %1914 = vmatpush.bf16.msra.mxu0 0
        %1915 = vmatpush.bf16.msra.mxu0 0
        %1916 = vmatpush.bf16.msra.mxu0 %v1772
        %1917 = vmatpush.bf16.msra.mxu0 %v1769
        %1918 = vmatmul.bf16.gmra.mxu0 %v1867
        %v1919 = vpop.f32.mrf.mxu0
        %v1920 = vadd.f32 0.0, %v1919
        %v1921 = vpop.f32.mrf.mxu0
        %v1922 = vadd.f32 0.0, %v1921
        %1923 = vmatmul.bf16.gmra.mxu0 %v1870
        %v1924 = vpop.f32.mrf.mxu0
        %v1925 = vadd.f32 0.0, %v1924
        %v1926 = vpop.f32.mrf.mxu0
        %v1927 = vadd.f32 0.0, %v1926
        %1928 = vdwg.mxu0
        %s1929 = scalar_lea.vmem %s6, 80
        %v1930 = vld [vmem:[%s1929] sm:$0xf]
        %v1931 = vld [vmem:[%s1929 + $0x4] sm:$0xf]
        %v1932 = vld [vmem:[%s1929 + $0x8] sm:$0xf]
        %v1933 = vld [vmem:[%s1929 + $0xc] sm:$0xf]
        %v1938 = vunpack.c.l.b16 %v1930
        %v1939 = vunpack.c.l.b16 %v1931
        %v1940 = vunpack.c.l.b16 %v1932
        %v1941 = vunpack.c.l.b16 %v1933
        %v1942 = vpack.c.b16 %v1939, %v1938
        %v1943 = vpack.c.b16 %v1941, %v1940
        %v1945 = vsel %vm510, %v1942, 0
        %v1948 = vsel %vm510, %v1943, 0
        %1950 = vmatpush.bf16.msra.mxu0 0
        %1951 = vmatpush.bf16.msra.mxu0 0
        %1952 = vmatpush.bf16.msra.mxu0 0
        %1953 = vmatpush.bf16.msra.mxu0 0
        %1954 = vmatpush.bf16.msra.mxu0 0
        %1955 = vmatpush.bf16.msra.mxu0 0
        %1956 = vmatpush.bf16.msra.mxu0 %v1770
        %1957 = vmatpush.bf16.msra.mxu0 %v1767
        %1958 = vmatmul.bf16.gmra.mxu0 %v1945
        %v1959 = vpop.f32.mrf.mxu0
        %v1960 = vadd.f32 0.0, %v1959
        %v1961 = vpop.f32.mrf.mxu0
        %v1962 = vadd.f32 0.0, %v1961
        %1963 = vmatmul.bf16.gmra.mxu0 %v1948
        %v1964 = vpop.f32.mrf.mxu0
        %v1965 = vadd.f32 0.0, %v1964
        %v1966 = vpop.f32.mrf.mxu0
        %v1967 = vadd.f32 0.0, %v1966
        %1968 = vdwg.mxu0
        %1969 = vmatpush.bf16.msra.mxu0 0
        %1970 = vmatpush.bf16.msra.mxu0 0
        %1971 = vmatpush.bf16.msra.mxu0 0
        %1972 = vmatpush.bf16.msra.mxu0 0
        %1973 = vmatpush.bf16.msra.mxu0 0
        %1974 = vmatpush.bf16.msra.mxu0 0
        %1975 = vmatpush.bf16.msra.mxu0 %v1771
        %1976 = vmatpush.bf16.msra.mxu0 %v1768
        %1977 = vmatmul.bf16.gmra.mxu0 %v1945
        %v1978 = vpop.f32.mrf.mxu0
        %v1979 = vadd.f32 0.0, %v1978
        %v1980 = vpop.f32.mrf.mxu0
        %v1981 = vadd.f32 0.0, %v1980
        %1982 = vmatmul.bf16.gmra.mxu0 %v1948
        %v1983 = vpop.f32.mrf.mxu0
        %v1984 = vadd.f32 0.0, %v1983
        %v1985 = vpop.f32.mrf.mxu0
        %v1986 = vadd.f32 0.0, %v1985
        %1987 = vdwg.mxu0
        %1988 = vmatpush.bf16.msra.mxu0 0
        %1989 = vmatpush.bf16.msra.mxu0 0
        %1990 = vmatpush.bf16.msra.mxu0 0
        %1991 = vmatpush.bf16.msra.mxu0 0
        %1992 = vmatpush.bf16.msra.mxu0 0
        %1993 = vmatpush.bf16.msra.mxu0 0
        %1994 = vmatpush.bf16.msra.mxu0 %v1772
        %1995 = vmatpush.bf16.msra.mxu0 %v1769
        %1996 = vmatmul.bf16.gmra.mxu0 %v1945
        %v1997 = vpop.f32.mrf.mxu0
        %v1998 = vadd.f32 0.0, %v1997
        %v1999 = vpop.f32.mrf.mxu0
        %v2000 = vadd.f32 0.0, %v1999
        %2001 = vmatmul.bf16.gmra.mxu0 %v1948
        %v2002 = vpop.f32.mrf.mxu0
        %v2003 = vadd.f32 0.0, %v2002
        %v2004 = vpop.f32.mrf.mxu0
        %v2005 = vadd.f32 0.0, %v2004
        %2006 = vdwg.mxu0
        %2007 = vrot.lane.b32.xlu0 %v1804, 1
        %v2008 = vpop.permute.xlu0 %2007
        %2009 = vrot.lane.b32.xlu0 %v1806, 1
        %v2010 = vpop.permute.xlu0 %2009
        %2011 = vrot.lane.b32.xlu0 %v1809, 1
        %v2012 = vpop.permute.xlu0 %2011
        %2013 = vrot.lane.b32.xlu0 %v1811, 1
        %v2014 = vpop.permute.xlu0 %2013
        %2015 = vrot.lane.b32.xlu0 %v1823, 1
        %v2016 = vpop.permute.xlu0 %2015
        %2017 = vrot.lane.b32.xlu0 %v1825, 1
        %v2018 = vpop.permute.xlu0 %2017
        %2019 = vrot.lane.b32.xlu0 %v1828, 1
        %v2020 = vpop.permute.xlu0 %2019
        %2021 = vrot.lane.b32.xlu0 %v1830, 1
        %v2022 = vpop.permute.xlu0 %2021
        %2023 = vrot.lane.b32.xlu0 %v1842, 1
        %v2024 = vpop.permute.xlu0 %2023
        %2025 = vrot.lane.b32.xlu0 %v1844, 1
        %v2026 = vpop.permute.xlu0 %2025
        %2027 = vrot.lane.b32.xlu0 %v1847, 1
        %v2028 = vpop.permute.xlu0 %2027
        %2029 = vrot.lane.b32.xlu0 %v1849, 1
        %v2030 = vpop.permute.xlu0 %2029
        %v2031 = vsel %vm756, %v2016, %v2024
        %v2032 = vsel %vm756, %v2018, %v2026
        %v2033 = vsel %vm756, %v2020, %v2028
        %v2034 = vsel %vm756, %v2022, %v2030
        %v2035 = vsel %vm756, %v2008, %v2016
        %v2036 = vsel %vm756, %v2010, %v2018
        %v2037 = vsel %vm756, %v2012, %v2020
        %v2038 = vsel %vm756, %v2014, %v2022
        %v2039 = vsel %vm756, %v2024, %v2008
        %v2040 = vsel %vm756, %v2026, %v2010
        %v2041 = vsel %vm756, %v2028, %v2012
        %v2042 = vsel %vm756, %v2030, %v2014
        %v2043 = vadd.f32 %v2039, %v1882
        %v2044 = vadd.f32 %v2035, %v1901
        %v2045 = vadd.f32 %v2031, %v1920
        %v2046 = vadd.f32 %v2040, %v1884
        %v2047 = vadd.f32 %v2036, %v1903
        %v2048 = vadd.f32 %v2032, %v1922
        %v2049 = vadd.f32 %v2041, %v1887
        %v2050 = vadd.f32 %v2037, %v1906
        %v2051 = vadd.f32 %v2033, %v1925
        %v2052 = vadd.f32 %v2042, %v1889
        %v2053 = vadd.f32 %v2038, %v1908
        %v2054 = vadd.f32 %v2034, %v1927
        %2055 = vrot.lane.b32.xlu0 %v1960, 127
        %v2056 = vpop.permute.xlu0 %2055
        %2057 = vrot.lane.b32.xlu0 %v1962, 127
        %v2058 = vpop.permute.xlu0 %2057
        %2059 = vrot.lane.b32.xlu0 %v1965, 127
        %v2060 = vpop.permute.xlu0 %2059
        %2061 = vrot.lane.b32.xlu0 %v1967, 127
        %v2062 = vpop.permute.xlu0 %2061
        %2063 = vrot.lane.b32.xlu0 %v1979, 127
        %v2064 = vpop.permute.xlu0 %2063
        %2065 = vrot.lane.b32.xlu0 %v1981, 127
        %v2066 = vpop.permute.xlu0 %2065
        %2067 = vrot.lane.b32.xlu0 %v1984, 127
        %v2068 = vpop.permute.xlu0 %2067
        %2069 = vrot.lane.b32.xlu0 %v1986, 127
        %v2070 = vpop.permute.xlu0 %2069
        %2071 = vrot.lane.b32.xlu0 %v1998, 127
        %v2072 = vpop.permute.xlu0 %2071
        %2073 = vrot.lane.b32.xlu0 %v2000, 127
        %v2074 = vpop.permute.xlu0 %2073
        %2075 = vrot.lane.b32.xlu0 %v2003, 127
        %v2076 = vpop.permute.xlu0 %2075
        %2077 = vrot.lane.b32.xlu0 %v2005, 127
        %v2078 = vpop.permute.xlu0 %2077
        %v2079 = vsel %vm805, %v2064, %v2072
        %v2080 = vsel %vm805, %v2066, %v2074
        %v2081 = vsel %vm805, %v2068, %v2076
        %v2082 = vsel %vm805, %v2070, %v2078
        %v2083 = vsel %vm805, %v2056, %v2064
        %v2084 = vsel %vm805, %v2058, %v2066
        %v2085 = vsel %vm805, %v2060, %v2068
        %v2086 = vsel %vm805, %v2062, %v2070
        %v2087 = vsel %vm805, %v2072, %v2056
        %v2088 = vsel %vm805, %v2074, %v2058
        %v2089 = vsel %vm805, %v2076, %v2060
        %v2090 = vsel %vm805, %v2078, %v2062
        %v2091 = vadd.f32 %v2043, %v2083
        %v2092 = vadd.f32 %v2044, %v2079
        %v2093 = vadd.f32 %v2045, %v2087
        %v2094 = vadd.f32 %v2046, %v2084
        %v2095 = vadd.f32 %v2047, %v2080
        %v2096 = vadd.f32 %v2048, %v2088
        %v2097 = vadd.f32 %v2049, %v2085
        %v2098 = vadd.f32 %v2050, %v2081
        %v2099 = vadd.f32 %v2051, %v2089
        %v2100 = vadd.f32 %v2052, %v2086
        %v2101 = vadd.f32 %v2053, %v2082
        %v2102 = vadd.f32 %v2054, %v2090
        %s2103 = scalar_lea.vmem %s7, 32
        %v2104 = vld [vmem:[%s2103] sm:$0xff]
        %v2105 = vld [vmem:[%s2103 + $0x8] sm:$0xff]
        %v2106 = vld [vmem:[%s2103 + $0x10] sm:$0xff]
        %v2107 = vld [vmem:[%s2103 + $0x18] sm:$0xff]
        %2109 = vset.pattern.permute.xlu0 0
        %2110 = vperm.xlu0 %2109, %v2104
        %v2111 = vpop.permute.xlu0 %2110
        %2114 = vset.pattern.permute.xlu0 0
        %2115 = vperm.xlu0 %2114, %v2105
        %v2116 = vpop.permute.xlu0 %2115
        %2119 = vset.pattern.permute.xlu0 0
        %2120 = vperm.xlu0 %2119, %v2106
        %v2121 = vpop.permute.xlu0 %2120
        %2124 = vset.pattern.permute.xlu0 0
        %2125 = vperm.xlu0 %2124, %v2107
        %v2126 = vpop.permute.xlu0 %2125
        %v2128 = vmul.f32 %v2091, %v2111
        %v2129 = vmul.f32 %v2092, %v2111
        %v2130 = vmul.f32 %v2093, %v2111
        %v2131 = vmul.f32 %v2094, %v2116
        %v2132 = vmul.f32 %v2095, %v2116
        %v2133 = vmul.f32 %v2096, %v2116
        %v2134 = vmul.f32 %v2097, %v2121
        %v2135 = vmul.f32 %v2098, %v2121
        %v2136 = vmul.f32 %v2099, %v2121
        %v2137 = vmul.f32 %v2100, %v2126
        %v2138 = vmul.f32 %v2101, %v2126
        %v2139 = vmul.f32 %v2102, %v2126
        %s2140 = scalar_lea.vmem %s8, 32
        %v2141 = vld [vmem:[%s2140] sm:$0xff]
        %v2142 = vld [vmem:[%s2140 + $0x8] sm:$0xff]
        %v2143 = vld [vmem:[%s2140 + $0x10] sm:$0xff]
        %v2144 = vld [vmem:[%s2140 + $0x18] sm:$0xff]
        %2146 = vset.pattern.permute.xlu0 0
        %2147 = vperm.xlu0 %2146, %v2141
        %v2148 = vpop.permute.xlu0 %2147
        %2151 = vset.pattern.permute.xlu0 0
        %2152 = vperm.xlu0 %2151, %v2142
        %v2153 = vpop.permute.xlu0 %2152
        %2156 = vset.pattern.permute.xlu0 0
        %2157 = vperm.xlu0 %2156, %v2143
        %v2158 = vpop.permute.xlu0 %2157
        %2161 = vset.pattern.permute.xlu0 0
        %2162 = vperm.xlu0 %2161, %v2144
        %v2163 = vpop.permute.xlu0 %2162
        %v2165 = vadd.f32 %v2128, %v2148
        %v2166 = vadd.f32 %v2129, %v2148
        %v2167 = vadd.f32 %v2130, %v2148
        %v2168 = vadd.f32 %v2131, %v2153
        %v2169 = vadd.f32 %v2132, %v2153
        %v2170 = vadd.f32 %v2133, %v2153
        %v2171 = vadd.f32 %v2134, %v2158
        %v2172 = vadd.f32 %v2135, %v2158
        %v2173 = vadd.f32 %v2136, %v2158
        %v2174 = vadd.f32 %v2137, %v2163
        %v2175 = vadd.f32 %v2138, %v2163
        %v2176 = vadd.f32 %v2139, %v2163
        %v2177 = vadd.f32 %v2165, %v1333
        %v2178 = vadd.f32 %v2166, %v1334
        %v2179 = vadd.f32 %v2167, %v1335
        %v2180 = vadd.f32 %v2168, %v1336
        %v2181 = vadd.f32 %v2169, %v1337
        %v2182 = vadd.f32 %v2170, %v1338
        %v2183 = vadd.f32 %v2171, %v1339
        %v2184 = vadd.f32 %v2172, %v1340
        %v2185 = vadd.f32 %v2173, %v1341
        %v2186 = vadd.f32 %v2174, %v1342
        %v2187 = vadd.f32 %v2175, %v1343
        %v2188 = vadd.f32 %v2176, %v1344
        %v2189 = vmax.f32 %v2177, 0.0
        %v2190 = vmax.f32 %v2178, 0.0
        %v2191 = vmax.f32 %v2179, 0.0
        %v2192 = vmax.f32 %v2180, 0.0
        %v2193 = vmax.f32 %v2181, 0.0
        %v2194 = vmax.f32 %v2182, 0.0
        %v2195 = vmax.f32 %v2183, 0.0
        %v2196 = vmax.f32 %v2184, 0.0
        %v2197 = vmax.f32 %v2185, 0.0
        %v2198 = vmax.f32 %v2186, 0.0
        %v2199 = vmax.f32 %v2187, 0.0
        %v2200 = vmax.f32 %v2188, 0.0
        %v2201 = vpack.c.bf16 %v2192, %v2189
        %v2202 = vpack.c.bf16 %v2193, %v2190
        %v2203 = vpack.c.bf16 %v2194, %v2191
        %v2204 = vpack.c.bf16 %v2198, %v2195
        %v2205 = vpack.c.bf16 %v2199, %v2196
        %v2206 = vpack.c.bf16 %v2200, %v2197
        %s2207 = scalar_lea.vmem %s3, 96
        %v2208 = vld [vmem:[%s2207] sm:$0xf]
        %v2209 = vld [vmem:[%s2207 + $0x4] sm:$0xf]
        %v2210 = vld [vmem:[%s2207 + $0x8] sm:$0xf]
        %v2211 = vld [vmem:[%s2207 + $0xc] sm:$0xf]
        %v2216 = vunpack.c.l.b16 %v2208
        %v2217 = vunpack.c.l.b16 %v2209
        %v2218 = vunpack.c.l.b16 %v2210
        %v2219 = vunpack.c.l.b16 %v2211
        %v2220 = vpack.c.b16 %v2217, %v2216
        %v2221 = vpack.c.b16 %v2219, %v2218
        %v2223 = vsel %vm510, %v2220, 0
        %v2226 = vsel %vm510, %v2221, 0
        %2228 = vmatpush.bf16.msra.mxu0 0
        %2229 = vmatpush.bf16.msra.mxu0 0
        %2230 = vmatpush.bf16.msra.mxu0 0
        %2231 = vmatpush.bf16.msra.mxu0 0
        %2232 = vmatpush.bf16.msra.mxu0 0
        %2233 = vmatpush.bf16.msra.mxu0 0
        %2234 = vmatpush.bf16.msra.mxu0 %v2204
        %2235 = vmatpush.bf16.msra.mxu0 %v2201
        %2236 = vmatmul.bf16.gmra.mxu0 %v2223
        %v2237 = vpop.f32.mrf.mxu0
        %v2238 = vadd.f32 0.0, %v2237
        %v2239 = vpop.f32.mrf.mxu0
        %v2240 = vadd.f32 0.0, %v2239
        %2241 = vmatmul.bf16.gmra.mxu0 %v2226
        %v2242 = vpop.f32.mrf.mxu0
        %v2243 = vadd.f32 0.0, %v2242
        %v2244 = vpop.f32.mrf.mxu0
        %v2245 = vadd.f32 0.0, %v2244
        %2246 = vdwg.mxu0
        %2247 = vmatpush.bf16.msra.mxu0 0
        %2248 = vmatpush.bf16.msra.mxu0 0
        %2249 = vmatpush.bf16.msra.mxu0 0
        %2250 = vmatpush.bf16.msra.mxu0 0
        %2251 = vmatpush.bf16.msra.mxu0 0
        %2252 = vmatpush.bf16.msra.mxu0 0
        %2253 = vmatpush.bf16.msra.mxu0 %v2205
        %2254 = vmatpush.bf16.msra.mxu0 %v2202
        %2255 = vmatmul.bf16.gmra.mxu0 %v2223
        %v2256 = vpop.f32.mrf.mxu0
        %v2257 = vadd.f32 0.0, %v2256
        %v2258 = vpop.f32.mrf.mxu0
        %v2259 = vadd.f32 0.0, %v2258
        %2260 = vmatmul.bf16.gmra.mxu0 %v2226
        %v2261 = vpop.f32.mrf.mxu0
        %v2262 = vadd.f32 0.0, %v2261
        %v2263 = vpop.f32.mrf.mxu0
        %v2264 = vadd.f32 0.0, %v2263
        %2265 = vdwg.mxu0
        %2266 = vmatpush.bf16.msra.mxu0 0
        %2267 = vmatpush.bf16.msra.mxu0 0
        %2268 = vmatpush.bf16.msra.mxu0 0
        %2269 = vmatpush.bf16.msra.mxu0 0
        %2270 = vmatpush.bf16.msra.mxu0 0
        %2271 = vmatpush.bf16.msra.mxu0 0
        %2272 = vmatpush.bf16.msra.mxu0 %v2206
        %2273 = vmatpush.bf16.msra.mxu0 %v2203
        %2274 = vmatmul.bf16.gmra.mxu0 %v2223
        %v2275 = vpop.f32.mrf.mxu0
        %v2276 = vadd.f32 0.0, %v2275
        %v2277 = vpop.f32.mrf.mxu0
        %v2278 = vadd.f32 0.0, %v2277
        %2279 = vmatmul.bf16.gmra.mxu0 %v2226
        %v2280 = vpop.f32.mrf.mxu0
        %v2281 = vadd.f32 0.0, %v2280
        %v2282 = vpop.f32.mrf.mxu0
        %v2283 = vadd.f32 0.0, %v2282
        %2284 = vdwg.mxu0
        %s2285 = scalar_lea.vmem %s3, 112
        %v2286 = vld [vmem:[%s2285] sm:$0xf]
        %v2287 = vld [vmem:[%s2285 + $0x4] sm:$0xf]
        %v2288 = vld [vmem:[%s2285 + $0x8] sm:$0xf]
        %v2289 = vld [vmem:[%s2285 + $0xc] sm:$0xf]
        %v2294 = vunpack.c.l.b16 %v2286
        %v2295 = vunpack.c.l.b16 %v2287
        %v2296 = vunpack.c.l.b16 %v2288
        %v2297 = vunpack.c.l.b16 %v2289
        %v2298 = vpack.c.b16 %v2295, %v2294
        %v2299 = vpack.c.b16 %v2297, %v2296
        %v2301 = vsel %vm510, %v2298, 0
        %v2304 = vsel %vm510, %v2299, 0
        %2306 = vmatpush.bf16.msra.mxu0 0
        %2307 = vmatpush.bf16.msra.mxu0 0
        %2308 = vmatpush.bf16.msra.mxu0 0
        %2309 = vmatpush.bf16.msra.mxu0 0
        %2310 = vmatpush.bf16.msra.mxu0 0
        %2311 = vmatpush.bf16.msra.mxu0 0
        %2312 = vmatpush.bf16.msra.mxu0 %v2204
        %2313 = vmatpush.bf16.msra.mxu0 %v2201
        %2314 = vmatmul.bf16.gmra.mxu0 %v2301
        %v2315 = vpop.f32.mrf.mxu0
        %v2316 = vadd.f32 0.0, %v2315
        %v2317 = vpop.f32.mrf.mxu0
        %v2318 = vadd.f32 0.0, %v2317
        %2319 = vmatmul.bf16.gmra.mxu0 %v2304
        %v2320 = vpop.f32.mrf.mxu0
        %v2321 = vadd.f32 0.0, %v2320
        %v2322 = vpop.f32.mrf.mxu0
        %v2323 = vadd.f32 0.0, %v2322
        %2324 = vdwg.mxu0
        %2325 = vmatpush.bf16.msra.mxu0 0
        %2326 = vmatpush.bf16.msra.mxu0 0
        %2327 = vmatpush.bf16.msra.mxu0 0
        %2328 = vmatpush.bf16.msra.mxu0 0
        %2329 = vmatpush.bf16.msra.mxu0 0
        %2330 = vmatpush.bf16.msra.mxu0 0
        %2331 = vmatpush.bf16.msra.mxu0 %v2205
        %2332 = vmatpush.bf16.msra.mxu0 %v2202
        %2333 = vmatmul.bf16.gmra.mxu0 %v2301
        %v2334 = vpop.f32.mrf.mxu0
        %v2335 = vadd.f32 0.0, %v2334
        %v2336 = vpop.f32.mrf.mxu0
        %v2337 = vadd.f32 0.0, %v2336
        %2338 = vmatmul.bf16.gmra.mxu0 %v2304
        %v2339 = vpop.f32.mrf.mxu0
        %v2340 = vadd.f32 0.0, %v2339
        %v2341 = vpop.f32.mrf.mxu0
        %v2342 = vadd.f32 0.0, %v2341
        %2343 = vdwg.mxu0
        %2344 = vmatpush.bf16.msra.mxu0 0
        %2345 = vmatpush.bf16.msra.mxu0 0
        %2346 = vmatpush.bf16.msra.mxu0 0
        %2347 = vmatpush.bf16.msra.mxu0 0
        %2348 = vmatpush.bf16.msra.mxu0 0
        %2349 = vmatpush.bf16.msra.mxu0 0
        %2350 = vmatpush.bf16.msra.mxu0 %v2206
        %2351 = vmatpush.bf16.msra.mxu0 %v2203
        %2352 = vmatmul.bf16.gmra.mxu0 %v2301
        %v2353 = vpop.f32.mrf.mxu0
        %v2354 = vadd.f32 0.0, %v2353
        %v2355 = vpop.f32.mrf.mxu0
        %v2356 = vadd.f32 0.0, %v2355
        %2357 = vmatmul.bf16.gmra.mxu0 %v2304
        %v2358 = vpop.f32.mrf.mxu0
        %v2359 = vadd.f32 0.0, %v2358
        %v2360 = vpop.f32.mrf.mxu0
        %v2361 = vadd.f32 0.0, %v2360
        %2362 = vdwg.mxu0
        %s2363 = scalar_lea.vmem %s3, 128
        %v2364 = vld [vmem:[%s2363] sm:$0xf]
        %v2365 = vld [vmem:[%s2363 + $0x4] sm:$0xf]
        %v2366 = vld [vmem:[%s2363 + $0x8] sm:$0xf]
        %v2367 = vld [vmem:[%s2363 + $0xc] sm:$0xf]
        %v2372 = vunpack.c.l.b16 %v2364
        %v2373 = vunpack.c.l.b16 %v2365
        %v2374 = vunpack.c.l.b16 %v2366
        %v2375 = vunpack.c.l.b16 %v2367
        %v2376 = vpack.c.b16 %v2373, %v2372
        %v2377 = vpack.c.b16 %v2375, %v2374
        %v2379 = vsel %vm510, %v2376, 0
        %v2382 = vsel %vm510, %v2377, 0
        %2384 = vmatpush.bf16.msra.mxu0 0
        %2385 = vmatpush.bf16.msra.mxu0 0
        %2386 = vmatpush.bf16.msra.mxu0 0
        %2387 = vmatpush.bf16.msra.mxu0 0
        %2388 = vmatpush.bf16.msra.mxu0 0
        %2389 = vmatpush.bf16.msra.mxu0 0
        %2390 = vmatpush.bf16.msra.mxu0 %v2204
        %2391 = vmatpush.bf16.msra.mxu0 %v2201
        %2392 = vmatmul.bf16.gmra.mxu0 %v2379
        %v2393 = vpop.f32.mrf.mxu0
        %v2394 = vadd.f32 0.0, %v2393
        %v2395 = vpop.f32.mrf.mxu0
        %v2396 = vadd.f32 0.0, %v2395
        %2397 = vmatmul.bf16.gmra.mxu0 %v2382
        %v2398 = vpop.f32.mrf.mxu0
        %v2399 = vadd.f32 0.0, %v2398
        %v2400 = vpop.f32.mrf.mxu0
        %v2401 = vadd.f32 0.0, %v2400
        %2402 = vdwg.mxu0
        %2403 = vmatpush.bf16.msra.mxu0 0
        %2404 = vmatpush.bf16.msra.mxu0 0
        %2405 = vmatpush.bf16.msra.mxu0 0
        %2406 = vmatpush.bf16.msra.mxu0 0
        %2407 = vmatpush.bf16.msra.mxu0 0
        %2408 = vmatpush.bf16.msra.mxu0 0
        %2409 = vmatpush.bf16.msra.mxu0 %v2205
        %2410 = vmatpush.bf16.msra.mxu0 %v2202
        %2411 = vmatmul.bf16.gmra.mxu0 %v2379
        %v2412 = vpop.f32.mrf.mxu0
        %v2413 = vadd.f32 0.0, %v2412
        %v2414 = vpop.f32.mrf.mxu0
        %v2415 = vadd.f32 0.0, %v2414
        %2416 = vmatmul.bf16.gmra.mxu0 %v2382
        %v2417 = vpop.f32.mrf.mxu0
        %v2418 = vadd.f32 0.0, %v2417
        %v2419 = vpop.f32.mrf.mxu0
        %v2420 = vadd.f32 0.0, %v2419
        %2421 = vdwg.mxu0
        %2422 = vmatpush.bf16.msra.mxu0 0
        %2423 = vmatpush.bf16.msra.mxu0 0
        %2424 = vmatpush.bf16.msra.mxu0 0
        %2425 = vmatpush.bf16.msra.mxu0 0
        %2426 = vmatpush.bf16.msra.mxu0 0
        %2427 = vmatpush.bf16.msra.mxu0 0
        %2428 = vmatpush.bf16.msra.mxu0 %v2206
        %2429 = vmatpush.bf16.msra.mxu0 %v2203
        %2430 = vmatmul.bf16.gmra.mxu0 %v2379
        %v2431 = vpop.f32.mrf.mxu0
        %v2432 = vadd.f32 0.0, %v2431
        %v2433 = vpop.f32.mrf.mxu0
        %v2434 = vadd.f32 0.0, %v2433
        %2435 = vmatmul.bf16.gmra.mxu0 %v2382
        %v2436 = vpop.f32.mrf.mxu0
        %v2437 = vadd.f32 0.0, %v2436
        %v2438 = vpop.f32.mrf.mxu0
        %v2439 = vadd.f32 0.0, %v2438
        %2440 = vdwg.mxu0
        %2441 = vrot.lane.b32.xlu0 %v2238, 1
        %v2442 = vpop.permute.xlu0 %2441
        %2443 = vrot.lane.b32.xlu0 %v2240, 1
        %v2444 = vpop.permute.xlu0 %2443
        %2445 = vrot.lane.b32.xlu0 %v2243, 1
        %v2446 = vpop.permute.xlu0 %2445
        %2447 = vrot.lane.b32.xlu0 %v2245, 1
        %v2448 = vpop.permute.xlu0 %2447
        %2449 = vrot.lane.b32.xlu0 %v2257, 1
        %v2450 = vpop.permute.xlu0 %2449
        %2451 = vrot.lane.b32.xlu0 %v2259, 1
        %v2452 = vpop.permute.xlu0 %2451
        %2453 = vrot.lane.b32.xlu0 %v2262, 1
        %v2454 = vpop.permute.xlu0 %2453
        %2455 = vrot.lane.b32.xlu0 %v2264, 1
        %v2456 = vpop.permute.xlu0 %2455
        %2457 = vrot.lane.b32.xlu0 %v2276, 1
        %v2458 = vpop.permute.xlu0 %2457
        %2459 = vrot.lane.b32.xlu0 %v2278, 1
        %v2460 = vpop.permute.xlu0 %2459
        %2461 = vrot.lane.b32.xlu0 %v2281, 1
        %v2462 = vpop.permute.xlu0 %2461
        %2463 = vrot.lane.b32.xlu0 %v2283, 1
        %v2464 = vpop.permute.xlu0 %2463
        %v2465 = vsel %vm756, %v2450, %v2458
        %v2466 = vsel %vm756, %v2452, %v2460
        %v2467 = vsel %vm756, %v2454, %v2462
        %v2468 = vsel %vm756, %v2456, %v2464
        %v2469 = vsel %vm756, %v2442, %v2450
        %v2470 = vsel %vm756, %v2444, %v2452
        %v2471 = vsel %vm756, %v2446, %v2454
        %v2472 = vsel %vm756, %v2448, %v2456
        %v2473 = vsel %vm756, %v2458, %v2442
        %v2474 = vsel %vm756, %v2460, %v2444
        %v2475 = vsel %vm756, %v2462, %v2446
        %v2476 = vsel %vm756, %v2464, %v2448
        %v2477 = vadd.f32 %v2473, %v2316
        %v2478 = vadd.f32 %v2469, %v2335
        %v2479 = vadd.f32 %v2465, %v2354
        %v2480 = vadd.f32 %v2474, %v2318
        %v2481 = vadd.f32 %v2470, %v2337
        %v2482 = vadd.f32 %v2466, %v2356
        %v2483 = vadd.f32 %v2475, %v2321
        %v2484 = vadd.f32 %v2471, %v2340
        %v2485 = vadd.f32 %v2467, %v2359
        %v2486 = vadd.f32 %v2476, %v2323
        %v2487 = vadd.f32 %v2472, %v2342
        %v2488 = vadd.f32 %v2468, %v2361
        %2489 = vrot.lane.b32.xlu0 %v2394, 127
        %v2490 = vpop.permute.xlu0 %2489
        %2491 = vrot.lane.b32.xlu0 %v2396, 127
        %v2492 = vpop.permute.xlu0 %2491
        %2493 = vrot.lane.b32.xlu0 %v2399, 127
        %v2494 = vpop.permute.xlu0 %2493
        %2495 = vrot.lane.b32.xlu0 %v2401, 127
        %v2496 = vpop.permute.xlu0 %2495
        %2497 = vrot.lane.b32.xlu0 %v2413, 127
        %v2498 = vpop.permute.xlu0 %2497
        %2499 = vrot.lane.b32.xlu0 %v2415, 127
        %v2500 = vpop.permute.xlu0 %2499
        %2501 = vrot.lane.b32.xlu0 %v2418, 127
        %v2502 = vpop.permute.xlu0 %2501
        %2503 = vrot.lane.b32.xlu0 %v2420, 127
        %v2504 = vpop.permute.xlu0 %2503
        %2505 = vrot.lane.b32.xlu0 %v2432, 127
        %v2506 = vpop.permute.xlu0 %2505
        %2507 = vrot.lane.b32.xlu0 %v2434, 127
        %v2508 = vpop.permute.xlu0 %2507
        %2509 = vrot.lane.b32.xlu0 %v2437, 127
        %v2510 = vpop.permute.xlu0 %2509
        %2511 = vrot.lane.b32.xlu0 %v2439, 127
        %v2512 = vpop.permute.xlu0 %2511
        %v2513 = vsel %vm805, %v2498, %v2506
        %v2514 = vsel %vm805, %v2500, %v2508
        %v2515 = vsel %vm805, %v2502, %v2510
        %v2516 = vsel %vm805, %v2504, %v2512
        %v2517 = vsel %vm805, %v2490, %v2498
        %v2518 = vsel %vm805, %v2492, %v2500
        %v2519 = vsel %vm805, %v2494, %v2502
        %v2520 = vsel %vm805, %v2496, %v2504
        %v2521 = vsel %vm805, %v2506, %v2490
        %v2522 = vsel %vm805, %v2508, %v2492
        %v2523 = vsel %vm805, %v2510, %v2494
        %v2524 = vsel %vm805, %v2512, %v2496
        %v2525 = vadd.f32 %v2477, %v2517
        %v2526 = vadd.f32 %v2478, %v2513
        %v2527 = vadd.f32 %v2479, %v2521
        %v2528 = vadd.f32 %v2480, %v2518
        %v2529 = vadd.f32 %v2481, %v2514
        %v2530 = vadd.f32 %v2482, %v2522
        %v2531 = vadd.f32 %v2483, %v2519
        %v2532 = vadd.f32 %v2484, %v2515
        %v2533 = vadd.f32 %v2485, %v2523
        %v2534 = vadd.f32 %v2486, %v2520
        %v2535 = vadd.f32 %v2487, %v2516
        %v2536 = vadd.f32 %v2488, %v2524
        %s2537 = scalar_lea.vmem %s4, 64
        %v2538 = vld [vmem:[%s2537] sm:$0xff]
        %v2539 = vld [vmem:[%s2537 + $0x8] sm:$0xff]
        %v2540 = vld [vmem:[%s2537 + $0x10] sm:$0xff]
        %v2541 = vld [vmem:[%s2537 + $0x18] sm:$0xff]
        %2543 = vset.pattern.permute.xlu0 0
        %2544 = vperm.xlu0 %2543, %v2538
        %v2545 = vpop.permute.xlu0 %2544
        %2548 = vset.pattern.permute.xlu0 0
        %2549 = vperm.xlu0 %2548, %v2539
        %v2550 = vpop.permute.xlu0 %2549
        %2553 = vset.pattern.permute.xlu0 0
        %2554 = vperm.xlu0 %2553, %v2540
        %v2555 = vpop.permute.xlu0 %2554
        %2558 = vset.pattern.permute.xlu0 0
        %2559 = vperm.xlu0 %2558, %v2541
        %v2560 = vpop.permute.xlu0 %2559
        %v2562 = vmul.f32 %v2525, %v2545
        %v2563 = vmul.f32 %v2526, %v2545
        %v2564 = vmul.f32 %v2527, %v2545
        %v2565 = vmul.f32 %v2528, %v2550
        %v2566 = vmul.f32 %v2529, %v2550
        %v2567 = vmul.f32 %v2530, %v2550
        %v2568 = vmul.f32 %v2531, %v2555
        %v2569 = vmul.f32 %v2532, %v2555
        %v2570 = vmul.f32 %v2533, %v2555
        %v2571 = vmul.f32 %v2534, %v2560
        %v2572 = vmul.f32 %v2535, %v2560
        %v2573 = vmul.f32 %v2536, %v2560
        %s2574 = scalar_lea.vmem %s5, 64
        %v2575 = vld [vmem:[%s2574] sm:$0xff]
        %v2576 = vld [vmem:[%s2574 + $0x8] sm:$0xff]
        %v2577 = vld [vmem:[%s2574 + $0x10] sm:$0xff]
        %v2578 = vld [vmem:[%s2574 + $0x18] sm:$0xff]
        %2580 = vset.pattern.permute.xlu0 0
        %2581 = vperm.xlu0 %2580, %v2575
        %v2582 = vpop.permute.xlu0 %2581
        %2585 = vset.pattern.permute.xlu0 0
        %2586 = vperm.xlu0 %2585, %v2576
        %v2587 = vpop.permute.xlu0 %2586
        %2590 = vset.pattern.permute.xlu0 0
        %2591 = vperm.xlu0 %2590, %v2577
        %v2592 = vpop.permute.xlu0 %2591
        %2595 = vset.pattern.permute.xlu0 0
        %2596 = vperm.xlu0 %2595, %v2578
        %v2597 = vpop.permute.xlu0 %2596
        %v2599 = vadd.f32 %v2562, %v2582
        %v2600 = vadd.f32 %v2563, %v2582
        %v2601 = vadd.f32 %v2564, %v2582
        %v2602 = vadd.f32 %v2565, %v2587
        %v2603 = vadd.f32 %v2566, %v2587
        %v2604 = vadd.f32 %v2567, %v2587
        %v2605 = vadd.f32 %v2568, %v2592
        %v2606 = vadd.f32 %v2569, %v2592
        %v2607 = vadd.f32 %v2570, %v2592
        %v2608 = vadd.f32 %v2571, %v2597
        %v2609 = vadd.f32 %v2572, %v2597
        %v2610 = vadd.f32 %v2573, %v2597
        %v2611 = vmax.f32 %v2599, 0.0
        %v2612 = vmax.f32 %v2600, 0.0
        %v2613 = vmax.f32 %v2601, 0.0
        %v2614 = vmax.f32 %v2602, 0.0
        %v2615 = vmax.f32 %v2603, 0.0
        %v2616 = vmax.f32 %v2604, 0.0
        %v2617 = vmax.f32 %v2605, 0.0
        %v2618 = vmax.f32 %v2606, 0.0
        %v2619 = vmax.f32 %v2607, 0.0
        %v2620 = vmax.f32 %v2608, 0.0
        %v2621 = vmax.f32 %v2609, 0.0
        %v2622 = vmax.f32 %v2610, 0.0
        %v2623 = vpack.c.bf16 %v2614, %v2611
        %v2624 = vpack.c.bf16 %v2615, %v2612
        %v2625 = vpack.c.bf16 %v2616, %v2613
        %v2626 = vpack.c.bf16 %v2620, %v2617
        %v2627 = vpack.c.bf16 %v2621, %v2618
        %v2628 = vpack.c.bf16 %v2622, %v2619
        %s2629 = scalar_lea.vmem %s6, 96
        %v2630 = vld [vmem:[%s2629] sm:$0xf]
        %v2631 = vld [vmem:[%s2629 + $0x4] sm:$0xf]
        %v2632 = vld [vmem:[%s2629 + $0x8] sm:$0xf]
        %v2633 = vld [vmem:[%s2629 + $0xc] sm:$0xf]
        %v2638 = vunpack.c.l.b16 %v2630
        %v2639 = vunpack.c.l.b16 %v2631
        %v2640 = vunpack.c.l.b16 %v2632
        %v2641 = vunpack.c.l.b16 %v2633
        %v2642 = vpack.c.b16 %v2639, %v2638
        %v2643 = vpack.c.b16 %v2641, %v2640
        %v2645 = vsel %vm510, %v2642, 0
        %v2648 = vsel %vm510, %v2643, 0
        %2650 = vmatpush.bf16.msra.mxu0 0
        %2651 = vmatpush.bf16.msra.mxu0 0
        %2652 = vmatpush.bf16.msra.mxu0 0
        %2653 = vmatpush.bf16.msra.mxu0 0
        %2654 = vmatpush.bf16.msra.mxu0 0
        %2655 = vmatpush.bf16.msra.mxu0 0
        %2656 = vmatpush.bf16.msra.mxu0 %v2626
        %2657 = vmatpush.bf16.msra.mxu0 %v2623
        %2658 = vmatmul.bf16.gmra.mxu0 %v2645
        %v2659 = vpop.f32.mrf.mxu0
        %v2660 = vadd.f32 0.0, %v2659
        %v2661 = vpop.f32.mrf.mxu0
        %v2662 = vadd.f32 0.0, %v2661
        %2663 = vmatmul.bf16.gmra.mxu0 %v2648
        %v2664 = vpop.f32.mrf.mxu0
        %v2665 = vadd.f32 0.0, %v2664
        %v2666 = vpop.f32.mrf.mxu0
        %v2667 = vadd.f32 0.0, %v2666
        %2668 = vdwg.mxu0
        %2669 = vmatpush.bf16.msra.mxu0 0
        %2670 = vmatpush.bf16.msra.mxu0 0
        %2671 = vmatpush.bf16.msra.mxu0 0
        %2672 = vmatpush.bf16.msra.mxu0 0
        %2673 = vmatpush.bf16.msra.mxu0 0
        %2674 = vmatpush.bf16.msra.mxu0 0
        %2675 = vmatpush.bf16.msra.mxu0 %v2627
        %2676 = vmatpush.bf16.msra.mxu0 %v2624
        %2677 = vmatmul.bf16.gmra.mxu0 %v2645
        %v2678 = vpop.f32.mrf.mxu0
        %v2679 = vadd.f32 0.0, %v2678
        %v2680 = vpop.f32.mrf.mxu0
        %v2681 = vadd.f32 0.0, %v2680
        %2682 = vmatmul.bf16.gmra.mxu0 %v2648
        %v2683 = vpop.f32.mrf.mxu0
        %v2684 = vadd.f32 0.0, %v2683
        %v2685 = vpop.f32.mrf.mxu0
        %v2686 = vadd.f32 0.0, %v2685
        %2687 = vdwg.mxu0
        %s2688 = scalar_lea.vmem %s6, 112
        %v2689 = vld [vmem:[%s2688] sm:$0xf]
        %v2690 = vld [vmem:[%s2688 + $0x4] sm:$0xf]
        %v2691 = vld [vmem:[%s2688 + $0x8] sm:$0xf]
        %v2692 = vld [vmem:[%s2688 + $0xc] sm:$0xf]
        %v2697 = vunpack.c.l.b16 %v2689
        %v2698 = vunpack.c.l.b16 %v2690
        %v2699 = vunpack.c.l.b16 %v2691
        %v2700 = vunpack.c.l.b16 %v2692
        %v2701 = vpack.c.b16 %v2698, %v2697
        %v2702 = vpack.c.b16 %v2700, %v2699
        %v2704 = vsel %vm510, %v2701, 0
        %v2707 = vsel %vm510, %v2702, 0
        %2709 = vmatpush.bf16.msra.mxu0 0
        %2710 = vmatpush.bf16.msra.mxu0 0
        %2711 = vmatpush.bf16.msra.mxu0 0
        %2712 = vmatpush.bf16.msra.mxu0 0
        %2713 = vmatpush.bf16.msra.mxu0 0
        %2714 = vmatpush.bf16.msra.mxu0 0
        %2715 = vmatpush.bf16.msra.mxu0 %v2627
        %2716 = vmatpush.bf16.msra.mxu0 %v2624
        %2717 = vmatmul.bf16.gmra.mxu0 %v2704
        %v2718 = vpop.f32.mrf.mxu0
        %v2719 = vadd.f32 0.0, %v2718
        %v2720 = vpop.f32.mrf.mxu0
        %v2721 = vadd.f32 0.0, %v2720
        %2722 = vmatmul.bf16.gmra.mxu0 %v2707
        %v2723 = vpop.f32.mrf.mxu0
        %v2724 = vadd.f32 0.0, %v2723
        %v2725 = vpop.f32.mrf.mxu0
        %v2726 = vadd.f32 0.0, %v2725
        %2727 = vdwg.mxu0
        %s2728 = scalar_lea.vmem %s6, 128
        %v2729 = vld [vmem:[%s2728] sm:$0xf]
        %v2730 = vld [vmem:[%s2728 + $0x4] sm:$0xf]
        %v2731 = vld [vmem:[%s2728 + $0x8] sm:$0xf]
        %v2732 = vld [vmem:[%s2728 + $0xc] sm:$0xf]
        %v2737 = vunpack.c.l.b16 %v2729
        %v2738 = vunpack.c.l.b16 %v2730
        %v2739 = vunpack.c.l.b16 %v2731
        %v2740 = vunpack.c.l.b16 %v2732
        %v2741 = vpack.c.b16 %v2738, %v2737
        %v2742 = vpack.c.b16 %v2740, %v2739
        %v2744 = vsel %vm510, %v2741, 0
        %v2747 = vsel %vm510, %v2742, 0
        %2749 = vmatpush.bf16.msra.mxu0 0
        %2750 = vmatpush.bf16.msra.mxu0 0
        %2751 = vmatpush.bf16.msra.mxu0 0
        %2752 = vmatpush.bf16.msra.mxu0 0
        %2753 = vmatpush.bf16.msra.mxu0 0
        %2754 = vmatpush.bf16.msra.mxu0 0
        %2755 = vmatpush.bf16.msra.mxu0 %v2627
        %2756 = vmatpush.bf16.msra.mxu0 %v2624
        %2757 = vmatmul.bf16.gmra.mxu0 %v2744
        %v2758 = vpop.f32.mrf.mxu0
        %v2759 = vadd.f32 0.0, %v2758
        %v2760 = vpop.f32.mrf.mxu0
        %v2761 = vadd.f32 0.0, %v2760
        %2762 = vmatmul.bf16.gmra.mxu0 %v2747
        %v2763 = vpop.f32.mrf.mxu0
        %v2764 = vadd.f32 0.0, %v2763
        %v2765 = vpop.f32.mrf.mxu0
        %v2766 = vadd.f32 0.0, %v2765
        %2767 = vdwg.mxu0
        %2768 = vmatpush.bf16.msra.mxu0 0
        %2769 = vmatpush.bf16.msra.mxu0 0
        %2770 = vmatpush.bf16.msra.mxu0 0
        %2771 = vmatpush.bf16.msra.mxu0 0
        %2772 = vmatpush.bf16.msra.mxu0 0
        %2773 = vmatpush.bf16.msra.mxu0 0
        %2774 = vmatpush.bf16.msra.mxu0 %v2628
        %2775 = vmatpush.bf16.msra.mxu0 %v2625
        %2776 = vmatmul.bf16.gmra.mxu0 %v2744
        %v2777 = vpop.f32.mrf.mxu0
        %v2778 = vadd.f32 0.0, %v2777
        %v2779 = vpop.f32.mrf.mxu0
        %v2780 = vadd.f32 0.0, %v2779
        %2781 = vmatmul.bf16.gmra.mxu0 %v2747
        %v2782 = vpop.f32.mrf.mxu0
        %v2783 = vadd.f32 0.0, %v2782
        %v2784 = vpop.f32.mrf.mxu0
        %v2785 = vadd.f32 0.0, %v2784
        %2786 = vdwg.mxu0
        %2787 = vrot.lane.b32.xlu0 %v2660, 1
        %v2788 = vpop.permute.xlu0 %2787
        %2789 = vrot.lane.b32.xlu0 %v2662, 1
        %v2790 = vpop.permute.xlu0 %2789
        %2791 = vrot.lane.b32.xlu0 %v2665, 1
        %v2792 = vpop.permute.xlu0 %2791
        %2793 = vrot.lane.b32.xlu0 %v2667, 1
        %v2794 = vpop.permute.xlu0 %2793
        %2795 = vrot.lane.b32.xlu0 %v2679, 1
        %v2796 = vpop.permute.xlu0 %2795
        %2797 = vrot.lane.b32.xlu0 %v2681, 1
        %v2798 = vpop.permute.xlu0 %2797
        %2799 = vrot.lane.b32.xlu0 %v2684, 1
        %v2800 = vpop.permute.xlu0 %2799
        %2801 = vrot.lane.b32.xlu0 %v2686, 1
        %v2802 = vpop.permute.xlu0 %2801
        %v2803 = vsel %vm756, %v2788, %v2796
        %v2804 = vsel %vm756, %v2790, %v2798
        %v2805 = vsel %vm756, %v2792, %v2800
        %v2806 = vsel %vm756, %v2794, %v2802
        %v2807 = vadd.f32 %v2803, %v2719
        %v2808 = vadd.f32 %v2804, %v2721
        %v2809 = vadd.f32 %v2805, %v2724
        %v2810 = vadd.f32 %v2806, %v2726
        %2811 = vrot.lane.b32.xlu0 %v2759, 127
        %v2812 = vpop.permute.xlu0 %2811
        %2813 = vrot.lane.b32.xlu0 %v2761, 127
        %v2814 = vpop.permute.xlu0 %2813
        %2815 = vrot.lane.b32.xlu0 %v2764, 127
        %v2816 = vpop.permute.xlu0 %2815
        %2817 = vrot.lane.b32.xlu0 %v2766, 127
        %v2818 = vpop.permute.xlu0 %2817
        %2819 = vrot.lane.b32.xlu0 %v2778, 127
        %v2820 = vpop.permute.xlu0 %2819
        %2821 = vrot.lane.b32.xlu0 %v2780, 127
        %v2822 = vpop.permute.xlu0 %2821
        %2823 = vrot.lane.b32.xlu0 %v2783, 127
        %v2824 = vpop.permute.xlu0 %2823
        %2825 = vrot.lane.b32.xlu0 %v2785, 127
        %v2826 = vpop.permute.xlu0 %2825
        %v2827 = vsel %vm805, %v2812, %v2820
        %v2828 = vsel %vm805, %v2814, %v2822
        %v2829 = vsel %vm805, %v2816, %v2824
        %v2830 = vsel %vm805, %v2818, %v2826
        %v2831 = vadd.f32 %v2807, %v2827
        %v2832 = vadd.f32 %v2808, %v2828
        %v2833 = vadd.f32 %v2809, %v2829
        %v2834 = vadd.f32 %v2810, %v2830
        %s2835 = scalar_lea.vmem %s7, 64
        %v2836 = vld [vmem:[%s2835] sm:$0xff]
        %v2837 = vld [vmem:[%s2835 + $0x8] sm:$0xff]
        %v2838 = vld [vmem:[%s2835 + $0x10] sm:$0xff]
        %v2839 = vld [vmem:[%s2835 + $0x18] sm:$0xff]
        %2841 = vset.pattern.permute.xlu0 0
        %2842 = vperm.xlu0 %2841, %v2836
        %v2843 = vpop.permute.xlu0 %2842
        %2846 = vset.pattern.permute.xlu0 0
        %2847 = vperm.xlu0 %2846, %v2837
        %v2848 = vpop.permute.xlu0 %2847
        %2851 = vset.pattern.permute.xlu0 0
        %2852 = vperm.xlu0 %2851, %v2838
        %v2853 = vpop.permute.xlu0 %2852
        %2856 = vset.pattern.permute.xlu0 0
        %2857 = vperm.xlu0 %2856, %v2839
        %v2858 = vpop.permute.xlu0 %2857
        %v2860 = vmul.f32 %v2831, %v2843
        %v2861 = vmul.f32 %v2832, %v2848
        %v2862 = vmul.f32 %v2833, %v2853
        %v2863 = vmul.f32 %v2834, %v2858
        %s2864 = scalar_lea.vmem %s8, 64
        %v2865 = vld [vmem:[%s2864] sm:$0xff]
        %v2866 = vld [vmem:[%s2864 + $0x8] sm:$0xff]
        %v2867 = vld [vmem:[%s2864 + $0x10] sm:$0xff]
        %v2868 = vld [vmem:[%s2864 + $0x18] sm:$0xff]
        %2870 = vset.pattern.permute.xlu0 0
        %2871 = vperm.xlu0 %2870, %v2865
        %v2872 = vpop.permute.xlu0 %2871
        %2875 = vset.pattern.permute.xlu0 0
        %2876 = vperm.xlu0 %2875, %v2866
        %v2877 = vpop.permute.xlu0 %2876
        %2880 = vset.pattern.permute.xlu0 0
        %2881 = vperm.xlu0 %2880, %v2867
        %v2882 = vpop.permute.xlu0 %2881
        %2885 = vset.pattern.permute.xlu0 0
        %2886 = vperm.xlu0 %2885, %v2868
        %v2887 = vpop.permute.xlu0 %2886
        %v2889 = vadd.f32 %v2860, %v2872
        %v2890 = vadd.f32 %v2861, %v2877
        %v2891 = vadd.f32 %v2862, %v2882
        %v2892 = vadd.f32 %v2863, %v2887
        %v2893 = vadd.f32 %v2889, %v2190
        %v2894 = vadd.f32 %v2890, %v2193
        %v2895 = vadd.f32 %v2891, %v2196
        %v2896 = vadd.f32 %v2892, %v2199
        %v2897 = vmax.f32 %v2893, 0.0
        %v2898 = vmax.f32 %v2894, 0.0
        %v2899 = vmax.f32 %v2895, 0.0
        %v2900 = vmax.f32 %v2896, 0.0
        %2901 = vst [vmem:[%s467] sm:$0xff] %v2897
        %2902 = vst [vmem:[%s467 + $0x8] sm:$0xff] %v2898
        %2903 = vst [vmem:[%s467 + $0x10] sm:$0xff] %v2899
        %2904 = vst [vmem:[%s467 + $0x18] sm:$0xff] %v2900
      $region60: #{tpu_custom_call.1} parent=55 // pred_fallthru
        _
      %p2905 = pneg %p487
      // Predicated region
      $region61: #{tpu_custom_call.1} parent=55 // pred_check
        _
      $region62: #{tpu_custom_call.1} parent=55 // pred_check_branch
        %2907 = sbr.rel (%p487) target = $region64
      $region63: #{tpu_custom_call.1} parent=55 // pred_region
        %v2908 = vlaneseq
        %v2909 = vand.u32 %v2908, 127
        %v2910 = vadd.s32 %v2909, 128
        %v2911 = vadd.s32 %v2909, 256
        %s2912 = smul.u32 %s25, 128
        %s2913 = ssub.s32 %s2912, 128
        %v2914 = vstv %s2913
        %v2915 = vadd.s32 %v2909, %v2914
        %v2916 = vadd.s32 %v2910, %v2914
        %v2917 = vadd.s32 %v2911, %v2914
        %vm2918 = vcmp.ge.s32.totalorder %v2915, 0
        %vm2919 = vcmp.ge.s32.totalorder %v2916, 0
        %vm2920 = vcmp.ge.s32.totalorder %v2917, 0
        %vm2921 = vcmp.lt.s32.totalorder %v2915, 16
        %vm2922 = vcmp.lt.s32.totalorder %v2916, 16
        %vm2923 = vcmp.lt.s32.totalorder %v2917, 16
        %vm2924 = vmand %vm2918, %vm2921
        %vm2925 = vmand %vm2919, %vm2922
        %vm2926 = vmand %vm2920, %vm2923
        %v2927 = vsel %vm2924, 1, 0
        %v2928 = vsel %vm2925, 1, 0
        %v2929 = vsel %vm2926, 1, 0
        %vm2930 = vcmp.eq.s32.totalorder %v2927, 1
        %vm2931 = vcmp.eq.s32.totalorder %v2928, 1
        %vm2932 = vcmp.eq.s32.totalorder %v2929, 1
        %v2933 = vsel %vm2930, %v469, 0.0
        %v2934 = vsel %vm2931, %v473, 0.0
        %v2935 = vsel %vm2932, %v477, 0.0
        %v2936 = vsel %vm2930, %v470, 0.0
        %v2937 = vsel %vm2931, %v474, 0.0
        %v2938 = vsel %vm2932, %v478, 0.0
        %v2939 = vsel %vm2930, %v471, 0.0
        %v2940 = vsel %vm2931, %v475, 0.0
        %v2941 = vsel %vm2932, %v479, 0.0
        %v2942 = vsel %vm2930, %v472, 0.0
        %v2943 = vsel %vm2931, %v476, 0.0
        %v2944 = vsel %vm2932, %v480, 0.0
        %v2945 = vpack.c.bf16 %v2936, %v2933
        %v2946 = vpack.c.bf16 %v2937, %v2934
        %v2947 = vpack.c.bf16 %v2938, %v2935
        %v2948 = vpack.c.bf16 %v2942, %v2939
        %v2949 = vpack.c.bf16 %v2943, %v2940
        %v2950 = vpack.c.bf16 %v2944, %v2941
        %v2951 = vld [vmem:[%s3] sm:$0xf]
        %v2952 = vld [vmem:[%s3 + $0x4] sm:$0xf]
        %v2953 = vld [vmem:[%s3 + $0x8] sm:$0xf]
        %v2954 = vld [vmem:[%s3 + $0xc] sm:$0xf]
        %v2959 = vunpack.c.l.b16 %v2951
        %v2960 = vunpack.c.l.b16 %v2952
        %v2961 = vunpack.c.l.b16 %v2953
        %v2962 = vunpack.c.l.b16 %v2954
        %v2963 = vpack.c.b16 %v2960, %v2959
        %v2964 = vpack.c.b16 %v2962, %v2961
        %vm2965 = vcmask 261120
        %v2967 = vsel %vm2965, %v2963, 0
        %v2970 = vsel %vm2965, %v2964, 0
        %2972 = vmatpush.bf16.msra.mxu0 0
        %2973 = vmatpush.bf16.msra.mxu0 0
        %2974 = vmatpush.bf16.msra.mxu0 0
        %2975 = vmatpush.bf16.msra.mxu0 0
        %2976 = vmatpush.bf16.msra.mxu0 0
        %2977 = vmatpush.bf16.msra.mxu0 0
        %2978 = vmatpush.bf16.msra.mxu0 %v2948
        %2979 = vmatpush.bf16.msra.mxu0 %v2945
        %2980 = vmatmul.bf16.gmra.mxu0 %v2967
        %v2981 = vpop.f32.mrf.mxu0
        %v2982 = vadd.f32 0.0, %v2981
        %v2983 = vpop.f32.mrf.mxu0
        %v2984 = vadd.f32 0.0, %v2983
        %2985 = vmatmul.bf16.gmra.mxu0 %v2970
        %v2986 = vpop.f32.mrf.mxu0
        %v2987 = vadd.f32 0.0, %v2986
        %v2988 = vpop.f32.mrf.mxu0
        %v2989 = vadd.f32 0.0, %v2988
        %2990 = vdwg.mxu0
        %2991 = vmatpush.bf16.msra.mxu0 0
        %2992 = vmatpush.bf16.msra.mxu0 0
        %2993 = vmatpush.bf16.msra.mxu0 0
        %2994 = vmatpush.bf16.msra.mxu0 0
        %2995 = vmatpush.bf16.msra.mxu0 0
        %2996 = vmatpush.bf16.msra.mxu0 0
        %2997 = vmatpush.bf16.msra.mxu0 %v2949
        %2998 = vmatpush.bf16.msra.mxu0 %v2946
        %2999 = vmatmul.bf16.gmra.mxu0 %v2967
        %v3000 = vpop.f32.mrf.mxu0
        %v3001 = vadd.f32 0.0, %v3000
        %v3002 = vpop.f32.mrf.mxu0
        %v3003 = vadd.f32 0.0, %v3002
        %3004 = vmatmul.bf16.gmra.mxu0 %v2970
        %v3005 = vpop.f32.mrf.mxu0
        %v3006 = vadd.f32 0.0, %v3005
        %v3007 = vpop.f32.mrf.mxu0
        %v3008 = vadd.f32 0.0, %v3007
        %3009 = vdwg.mxu0
        %3010 = vmatpush.bf16.msra.mxu0 0
        %3011 = vmatpush.bf16.msra.mxu0 0
        %3012 = vmatpush.bf16.msra.mxu0 0
        %3013 = vmatpush.bf16.msra.mxu0 0
        %3014 = vmatpush.bf16.msra.mxu0 0
        %3015 = vmatpush.bf16.msra.mxu0 0
        %3016 = vmatpush.bf16.msra.mxu0 %v2950
        %3017 = vmatpush.bf16.msra.mxu0 %v2947
        %3018 = vmatmul.bf16.gmra.mxu0 %v2967
        %v3019 = vpop.f32.mrf.mxu0
        %v3020 = vadd.f32 0.0, %v3019
        %v3021 = vpop.f32.mrf.mxu0
        %v3022 = vadd.f32 0.0, %v3021
        %3023 = vmatmul.bf16.gmra.mxu0 %v2970
        %v3024 = vpop.f32.mrf.mxu0
        %v3025 = vadd.f32 0.0, %v3024
        %v3026 = vpop.f32.mrf.mxu0
        %v3027 = vadd.f32 0.0, %v3026
        %3028 = vdwg.mxu0
        %s3029 = scalar_lea.vmem %s3, 16
        %v3030 = vld [vmem:[%s3029] sm:$0xf]
        %v3031 = vld [vmem:[%s3029 + $0x4] sm:$0xf]
        %v3032 = vld [vmem:[%s3029 + $0x8] sm:$0xf]
        %v3033 = vld [vmem:[%s3029 + $0xc] sm:$0xf]
        %v3038 = vunpack.c.l.b16 %v3030
        %v3039 = vunpack.c.l.b16 %v3031
        %v3040 = vunpack.c.l.b16 %v3032
        %v3041 = vunpack.c.l.b16 %v3033
        %v3042 = vpack.c.b16 %v3039, %v3038
        %v3043 = vpack.c.b16 %v3041, %v3040
        %v3045 = vsel %vm2965, %v3042, 0
        %v3048 = vsel %vm2965, %v3043, 0
        %3050 = vmatpush.bf16.msra.mxu0 0
        %3051 = vmatpush.bf16.msra.mxu0 0
        %3052 = vmatpush.bf16.msra.mxu0 0
        %3053 = vmatpush.bf16.msra.mxu0 0
        %3054 = vmatpush.bf16.msra.mxu0 0
        %3055 = vmatpush.bf16.msra.mxu0 0
        %3056 = vmatpush.bf16.msra.mxu0 %v2948
        %3057 = vmatpush.bf16.msra.mxu0 %v2945
        %3058 = vmatmul.bf16.gmra.mxu0 %v3045
        %v3059 = vpop.f32.mrf.mxu0
        %v3060 = vadd.f32 0.0, %v3059
        %v3061 = vpop.f32.mrf.mxu0
        %v3062 = vadd.f32 0.0, %v3061
        %3063 = vmatmul.bf16.gmra.mxu0 %v3048
        %v3064 = vpop.f32.mrf.mxu0
        %v3065 = vadd.f32 0.0, %v3064
        %v3066 = vpop.f32.mrf.mxu0
        %v3067 = vadd.f32 0.0, %v3066
        %3068 = vdwg.mxu0
        %3069 = vmatpush.bf16.msra.mxu0 0
        %3070 = vmatpush.bf16.msra.mxu0 0
        %3071 = vmatpush.bf16.msra.mxu0 0
        %3072 = vmatpush.bf16.msra.mxu0 0
        %3073 = vmatpush.bf16.msra.mxu0 0
        %3074 = vmatpush.bf16.msra.mxu0 0
        %3075 = vmatpush.bf16.msra.mxu0 %v2949
        %3076 = vmatpush.bf16.msra.mxu0 %v2946
        %3077 = vmatmul.bf16.gmra.mxu0 %v3045
        %v3078 = vpop.f32.mrf.mxu0
        %v3079 = vadd.f32 0.0, %v3078
        %v3080 = vpop.f32.mrf.mxu0
        %v3081 = vadd.f32 0.0, %v3080
        %3082 = vmatmul.bf16.gmra.mxu0 %v3048
        %v3083 = vpop.f32.mrf.mxu0
        %v3084 = vadd.f32 0.0, %v3083
        %v3085 = vpop.f32.mrf.mxu0
        %v3086 = vadd.f32 0.0, %v3085
        %3087 = vdwg.mxu0
        %3088 = vmatpush.bf16.msra.mxu0 0
        %3089 = vmatpush.bf16.msra.mxu0 0
        %3090 = vmatpush.bf16.msra.mxu0 0
        %3091 = vmatpush.bf16.msra.mxu0 0
        %3092 = vmatpush.bf16.msra.mxu0 0
        %3093 = vmatpush.bf16.msra.mxu0 0
        %3094 = vmatpush.bf16.msra.mxu0 %v2950
        %3095 = vmatpush.bf16.msra.mxu0 %v2947
        %3096 = vmatmul.bf16.gmra.mxu0 %v3045
        %v3097 = vpop.f32.mrf.mxu0
        %v3098 = vadd.f32 0.0, %v3097
        %v3099 = vpop.f32.mrf.mxu0
        %v3100 = vadd.f32 0.0, %v3099
        %3101 = vmatmul.bf16.gmra.mxu0 %v3048
        %v3102 = vpop.f32.mrf.mxu0
        %v3103 = vadd.f32 0.0, %v3102
        %v3104 = vpop.f32.mrf.mxu0
        %v3105 = vadd.f32 0.0, %v3104
        %3106 = vdwg.mxu0
        %s3107 = scalar_lea.vmem %s3, 32
        %v3108 = vld [vmem:[%s3107] sm:$0xf]
        %v3109 = vld [vmem:[%s3107 + $0x4] sm:$0xf]
        %v3110 = vld [vmem:[%s3107 + $0x8] sm:$0xf]
        %v3111 = vld [vmem:[%s3107 + $0xc] sm:$0xf]
        %v3116 = vunpack.c.l.b16 %v3108
        %v3117 = vunpack.c.l.b16 %v3109
        %v3118 = vunpack.c.l.b16 %v3110
        %v3119 = vunpack.c.l.b16 %v3111
        %v3120 = vpack.c.b16 %v3117, %v3116
        %v3121 = vpack.c.b16 %v3119, %v3118
        %v3123 = vsel %vm2965, %v3120, 0
        %v3126 = vsel %vm2965, %v3121, 0
        %3128 = vmatpush.bf16.msra.mxu0 0
        %3129 = vmatpush.bf16.msra.mxu0 0
        %3130 = vmatpush.bf16.msra.mxu0 0
        %3131 = vmatpush.bf16.msra.mxu0 0
        %3132 = vmatpush.bf16.msra.mxu0 0
        %3133 = vmatpush.bf16.msra.mxu0 0
        %3134 = vmatpush.bf16.msra.mxu0 %v2948
        %3135 = vmatpush.bf16.msra.mxu0 %v2945
        %3136 = vmatmul.bf16.gmra.mxu0 %v3123
        %v3137 = vpop.f32.mrf.mxu0
        %v3138 = vadd.f32 0.0, %v3137
        %v3139 = vpop.f32.mrf.mxu0
        %v3140 = vadd.f32 0.0, %v3139
        %3141 = vmatmul.bf16.gmra.mxu0 %v3126
        %v3142 = vpop.f32.mrf.mxu0
        %v3143 = vadd.f32 0.0, %v3142
        %v3144 = vpop.f32.mrf.mxu0
        %v3145 = vadd.f32 0.0, %v3144
        %3146 = vdwg.mxu0
        %3147 = vmatpush.bf16.msra.mxu0 0
        %3148 = vmatpush.bf16.msra.mxu0 0
        %3149 = vmatpush.bf16.msra.mxu0 0
        %3150 = vmatpush.bf16.msra.mxu0 0
        %3151 = vmatpush.bf16.msra.mxu0 0
        %3152 = vmatpush.bf16.msra.mxu0 0
        %3153 = vmatpush.bf16.msra.mxu0 %v2949
        %3154 = vmatpush.bf16.msra.mxu0 %v2946
        %3155 = vmatmul.bf16.gmra.mxu0 %v3123
        %v3156 = vpop.f32.mrf.mxu0
        %v3157 = vadd.f32 0.0, %v3156
        %v3158 = vpop.f32.mrf.mxu0
        %v3159 = vadd.f32 0.0, %v3158
        %3160 = vmatmul.bf16.gmra.mxu0 %v3126
        %v3161 = vpop.f32.mrf.mxu0
        %v3162 = vadd.f32 0.0, %v3161
        %v3163 = vpop.f32.mrf.mxu0
        %v3164 = vadd.f32 0.0, %v3163
        %3165 = vdwg.mxu0
        %3166 = vmatpush.bf16.msra.mxu0 0
        %3167 = vmatpush.bf16.msra.mxu0 0
        %3168 = vmatpush.bf16.msra.mxu0 0
        %3169 = vmatpush.bf16.msra.mxu0 0
        %3170 = vmatpush.bf16.msra.mxu0 0
        %3171 = vmatpush.bf16.msra.mxu0 0
        %3172 = vmatpush.bf16.msra.mxu0 %v2950
        %3173 = vmatpush.bf16.msra.mxu0 %v2947
        %3174 = vmatmul.bf16.gmra.mxu0 %v3123
        %v3175 = vpop.f32.mrf.mxu0
        %v3176 = vadd.f32 0.0, %v3175
        %v3177 = vpop.f32.mrf.mxu0
        %v3178 = vadd.f32 0.0, %v3177
        %3179 = vmatmul.bf16.gmra.mxu0 %v3126
        %v3180 = vpop.f32.mrf.mxu0
        %v3181 = vadd.f32 0.0, %v3180
        %v3182 = vpop.f32.mrf.mxu0
        %v3183 = vadd.f32 0.0, %v3182
        %3184 = vdwg.mxu0
        %3185 = vrot.lane.b32.xlu0 %v2982, 1
        %v3186 = vpop.permute.xlu0 %3185
        %3187 = vrot.lane.b32.xlu0 %v2984, 1
        %v3188 = vpop.permute.xlu0 %3187
        %3189 = vrot.lane.b32.xlu0 %v2987, 1
        %v3190 = vpop.permute.xlu0 %3189
        %3191 = vrot.lane.b32.xlu0 %v2989, 1
        %v3192 = vpop.permute.xlu0 %3191
        %3193 = vrot.lane.b32.xlu0 %v3001, 1
        %v3194 = vpop.permute.xlu0 %3193
        %3195 = vrot.lane.b32.xlu0 %v3003, 1
        %v3196 = vpop.permute.xlu0 %3195
        %3197 = vrot.lane.b32.xlu0 %v3006, 1
        %v3198 = vpop.permute.xlu0 %3197
        %3199 = vrot.lane.b32.xlu0 %v3008, 1
        %v3200 = vpop.permute.xlu0 %3199
        %3201 = vrot.lane.b32.xlu0 %v3020, 1
        %v3202 = vpop.permute.xlu0 %3201
        %3203 = vrot.lane.b32.xlu0 %v3022, 1
        %v3204 = vpop.permute.xlu0 %3203
        %3205 = vrot.lane.b32.xlu0 %v3025, 1
        %v3206 = vpop.permute.xlu0 %3205
        %3207 = vrot.lane.b32.xlu0 %v3027, 1
        %v3208 = vpop.permute.xlu0 %3207
        %vm3209 = vcmp.lt.s32.totalorder %v2909, 1
        %v3210 = vsel %vm3209, %v3194, %v3202
        %v3211 = vsel %vm3209, %v3196, %v3204
        %v3212 = vsel %vm3209, %v3198, %v3206
        %v3213 = vsel %vm3209, %v3200, %v3208
        %v3214 = vsel %vm3209, %v3186, %v3194
        %v3215 = vsel %vm3209, %v3188, %v3196
        %v3216 = vsel %vm3209, %v3190, %v3198
        %v3217 = vsel %vm3209, %v3192, %v3200
        %v3218 = vsel %vm3209, %v3202, %v3186
        %v3219 = vsel %vm3209, %v3204, %v3188
        %v3220 = vsel %vm3209, %v3206, %v3190
        %v3221 = vsel %vm3209, %v3208, %v3192
        %v3222 = vadd.f32 %v3218, %v3060
        %v3223 = vadd.f32 %v3214, %v3079
        %v3224 = vadd.f32 %v3210, %v3098
        %v3225 = vadd.f32 %v3219, %v3062
        %v3226 = vadd.f32 %v3215, %v3081
        %v3227 = vadd.f32 %v3211, %v3100
        %v3228 = vadd.f32 %v3220, %v3065
        %v3229 = vadd.f32 %v3216, %v3084
        %v3230 = vadd.f32 %v3212, %v3103
        %v3231 = vadd.f32 %v3221, %v3067
        %v3232 = vadd.f32 %v3217, %v3086
        %v3233 = vadd.f32 %v3213, %v3105
        %3234 = vrot.lane.b32.xlu0 %v3138, 127
        %v3235 = vpop.permute.xlu0 %3234
        %3236 = vrot.lane.b32.xlu0 %v3140, 127
        %v3237 = vpop.permute.xlu0 %3236
        %3238 = vrot.lane.b32.xlu0 %v3143, 127
        %v3239 = vpop.permute.xlu0 %3238
        %3240 = vrot.lane.b32.xlu0 %v3145, 127
        %v3241 = vpop.permute.xlu0 %3240
        %3242 = vrot.lane.b32.xlu0 %v3157, 127
        %v3243 = vpop.permute.xlu0 %3242
        %3244 = vrot.lane.b32.xlu0 %v3159, 127
        %v3245 = vpop.permute.xlu0 %3244
        %3246 = vrot.lane.b32.xlu0 %v3162, 127
        %v3247 = vpop.permute.xlu0 %3246
        %3248 = vrot.lane.b32.xlu0 %v3164, 127
        %v3249 = vpop.permute.xlu0 %3248
        %3250 = vrot.lane.b32.xlu0 %v3176, 127
        %v3251 = vpop.permute.xlu0 %3250
        %3252 = vrot.lane.b32.xlu0 %v3178, 127
        %v3253 = vpop.permute.xlu0 %3252
        %3254 = vrot.lane.b32.xlu0 %v3181, 127
        %v3255 = vpop.permute.xlu0 %3254
        %3256 = vrot.lane.b32.xlu0 %v3183, 127
        %v3257 = vpop.permute.xlu0 %3256
        %vm3258 = vcmp.lt.s32.totalorder %v2909, 127
        %v3259 = vsel %vm3258, %v3243, %v3251
        %v3260 = vsel %vm3258, %v3245, %v3253
        %v3261 = vsel %vm3258, %v3247, %v3255
        %v3262 = vsel %vm3258, %v3249, %v3257
        %v3263 = vsel %vm3258, %v3235, %v3243
        %v3264 = vsel %vm3258, %v3237, %v3245
        %v3265 = vsel %vm3258, %v3239, %v3247
        %v3266 = vsel %vm3258, %v3241, %v3249
        %v3267 = vsel %vm3258, %v3251, %v3235
        %v3268 = vsel %vm3258, %v3253, %v3237
        %v3269 = vsel %vm3258, %v3255, %v3239
        %v3270 = vsel %vm3258, %v3257, %v3241
        %v3271 = vadd.f32 %v3222, %v3263
        %v3272 = vadd.f32 %v3223, %v3259
        %v3273 = vadd.f32 %v3224, %v3267
        %v3274 = vadd.f32 %v3225, %v3264
        %v3275 = vadd.f32 %v3226, %v3260
        %v3276 = vadd.f32 %v3227, %v3268
        %v3277 = vadd.f32 %v3228, %v3265
        %v3278 = vadd.f32 %v3229, %v3261
        %v3279 = vadd.f32 %v3230, %v3269
        %v3280 = vadd.f32 %v3231, %v3266
        %v3281 = vadd.f32 %v3232, %v3262
        %v3282 = vadd.f32 %v3233, %v3270
        %v3283 = vld [vmem:[%s4] sm:$0xff]
        %v3284 = vld [vmem:[%s4 + $0x8] sm:$0xff]
        %v3285 = vld [vmem:[%s4 + $0x10] sm:$0xff]
        %v3286 = vld [vmem:[%s4 + $0x18] sm:$0xff]
        %3288 = vset.pattern.permute.xlu0 0
        %3289 = vperm.xlu0 %3288, %v3283
        %v3290 = vpop.permute.xlu0 %3289
        %3293 = vset.pattern.permute.xlu0 0
        %3294 = vperm.xlu0 %3293, %v3284
        %v3295 = vpop.permute.xlu0 %3294
        %3298 = vset.pattern.permute.xlu0 0
        %3299 = vperm.xlu0 %3298, %v3285
        %v3300 = vpop.permute.xlu0 %3299
        %3303 = vset.pattern.permute.xlu0 0
        %3304 = vperm.xlu0 %3303, %v3286
        %v3305 = vpop.permute.xlu0 %3304
        %v3307 = vmul.f32 %v3271, %v3290
        %v3308 = vmul.f32 %v3272, %v3290
        %v3309 = vmul.f32 %v3273, %v3290
        %v3310 = vmul.f32 %v3274, %v3295
        %v3311 = vmul.f32 %v3275, %v3295
        %v3312 = vmul.f32 %v3276, %v3295
        %v3313 = vmul.f32 %v3277, %v3300
        %v3314 = vmul.f32 %v3278, %v3300
        %v3315 = vmul.f32 %v3279, %v3300
        %v3316 = vmul.f32 %v3280, %v3305
        %v3317 = vmul.f32 %v3281, %v3305
        %v3318 = vmul.f32 %v3282, %v3305
        %v3319 = vld [vmem:[%s5] sm:$0xff]
        %v3320 = vld [vmem:[%s5 + $0x8] sm:$0xff]
        %v3321 = vld [vmem:[%s5 + $0x10] sm:$0xff]
        %v3322 = vld [vmem:[%s5 + $0x18] sm:$0xff]
        %3324 = vset.pattern.permute.xlu0 0
        %3325 = vperm.xlu0 %3324, %v3319
        %v3326 = vpop.permute.xlu0 %3325
        %3329 = vset.pattern.permute.xlu0 0
        %3330 = vperm.xlu0 %3329, %v3320
        %v3331 = vpop.permute.xlu0 %3330
        %3334 = vset.pattern.permute.xlu0 0
        %3335 = vperm.xlu0 %3334, %v3321
        %v3336 = vpop.permute.xlu0 %3335
        %3339 = vset.pattern.permute.xlu0 0
        %3340 = vperm.xlu0 %3339, %v3322
        %v3341 = vpop.permute.xlu0 %3340
        %v3343 = vadd.f32 %v3307, %v3326
        %v3344 = vadd.f32 %v3308, %v3326
        %v3345 = vadd.f32 %v3309, %v3326
        %v3346 = vadd.f32 %v3310, %v3331
        %v3347 = vadd.f32 %v3311, %v3331
        %v3348 = vadd.f32 %v3312, %v3331
        %v3349 = vadd.f32 %v3313, %v3336
        %v3350 = vadd.f32 %v3314, %v3336
        %v3351 = vadd.f32 %v3315, %v3336
        %v3352 = vadd.f32 %v3316, %v3341
        %v3353 = vadd.f32 %v3317, %v3341
        %v3354 = vadd.f32 %v3318, %v3341
        %v3355 = vmax.f32 %v3343, 0.0
        %v3356 = vmax.f32 %v3344, 0.0
        %v3357 = vmax.f32 %v3345, 0.0
        %v3358 = vmax.f32 %v3346, 0.0
        %v3359 = vmax.f32 %v3347, 0.0
        %v3360 = vmax.f32 %v3348, 0.0
        %v3361 = vmax.f32 %v3349, 0.0
        %v3362 = vmax.f32 %v3350, 0.0
        %v3363 = vmax.f32 %v3351, 0.0
        %v3364 = vmax.f32 %v3352, 0.0
        %v3365 = vmax.f32 %v3353, 0.0
        %v3366 = vmax.f32 %v3354, 0.0
        %v3367 = vsel %vm2930, %v3355, 0.0
        %v3368 = vsel %vm2931, %v3356, 0.0
        %v3369 = vsel %vm2932, %v3357, 0.0
        %v3370 = vsel %vm2930, %v3358, 0.0
        %v3371 = vsel %vm2931, %v3359, 0.0
        %v3372 = vsel %vm2932, %v3360, 0.0
        %v3373 = vsel %vm2930, %v3361, 0.0
        %v3374 = vsel %vm2931, %v3362, 0.0
        %v3375 = vsel %vm2932, %v3363, 0.0
        %v3376 = vsel %vm2930, %v3364, 0.0
        %v3377 = vsel %vm2931, %v3365, 0.0
        %v3378 = vsel %vm2932, %v3366, 0.0
        %v3379 = vpack.c.bf16 %v3370, %v3367
        %v3380 = vpack.c.bf16 %v3371, %v3368
        %v3381 = vpack.c.bf16 %v3372, %v3369
        %v3382 = vpack.c.bf16 %v3376, %v3373
        %v3383 = vpack.c.bf16 %v3377, %v3374
        %v3384 = vpack.c.bf16 %v3378, %v3375
        %v3385 = vld [vmem:[%s6] sm:$0xf]
        %v3386 = vld [vmem:[%s6 + $0x4] sm:$0xf]
        %v3387 = vld [vmem:[%s6 + $0x8] sm:$0xf]
        %v3388 = vld [vmem:[%s6 + $0xc] sm:$0xf]
        %v3393 = vunpack.c.l.b16 %v3385
        %v3394 = vunpack.c.l.b16 %v3386
        %v3395 = vunpack.c.l.b16 %v3387
        %v3396 = vunpack.c.l.b16 %v3388
        %v3397 = vpack.c.b16 %v3394, %v3393
        %v3398 = vpack.c.b16 %v3396, %v3395
        %v3400 = vsel %vm2965, %v3397, 0
        %v3403 = vsel %vm2965, %v3398, 0
        %3405 = vmatpush.bf16.msra.mxu0 0
        %3406 = vmatpush.bf16.msra.mxu0 0
        %3407 = vmatpush.bf16.msra.mxu0 0
        %3408 = vmatpush.bf16.msra.mxu0 0
        %3409 = vmatpush.bf16.msra.mxu0 0
        %3410 = vmatpush.bf16.msra.mxu0 0
        %3411 = vmatpush.bf16.msra.mxu0 %v3382
        %3412 = vmatpush.bf16.msra.mxu0 %v3379
        %3413 = vmatmul.bf16.gmra.mxu0 %v3400
        %v3414 = vpop.f32.mrf.mxu0
        %v3415 = vadd.f32 0.0, %v3414
        %v3416 = vpop.f32.mrf.mxu0
        %v3417 = vadd.f32 0.0, %v3416
        %3418 = vmatmul.bf16.gmra.mxu0 %v3403
        %v3419 = vpop.f32.mrf.mxu0
        %v3420 = vadd.f32 0.0, %v3419
        %v3421 = vpop.f32.mrf.mxu0
        %v3422 = vadd.f32 0.0, %v3421
        %3423 = vdwg.mxu0
        %3424 = vmatpush.bf16.msra.mxu0 0
        %3425 = vmatpush.bf16.msra.mxu0 0
        %3426 = vmatpush.bf16.msra.mxu0 0
        %3427 = vmatpush.bf16.msra.mxu0 0
        %3428 = vmatpush.bf16.msra.mxu0 0
        %3429 = vmatpush.bf16.msra.mxu0 0
        %3430 = vmatpush.bf16.msra.mxu0 %v3383
        %3431 = vmatpush.bf16.msra.mxu0 %v3380
        %3432 = vmatmul.bf16.gmra.mxu0 %v3400
        %v3433 = vpop.f32.mrf.mxu0
        %v3434 = vadd.f32 0.0, %v3433
        %v3435 = vpop.f32.mrf.mxu0
        %v3436 = vadd.f32 0.0, %v3435
        %3437 = vmatmul.bf16.gmra.mxu0 %v3403
        %v3438 = vpop.f32.mrf.mxu0
        %v3439 = vadd.f32 0.0, %v3438
        %v3440 = vpop.f32.mrf.mxu0
        %v3441 = vadd.f32 0.0, %v3440
        %3442 = vdwg.mxu0
        %3443 = vmatpush.bf16.msra.mxu0 0
        %3444 = vmatpush.bf16.msra.mxu0 0
        %3445 = vmatpush.bf16.msra.mxu0 0
        %3446 = vmatpush.bf16.msra.mxu0 0
        %3447 = vmatpush.bf16.msra.mxu0 0
        %3448 = vmatpush.bf16.msra.mxu0 0
        %3449 = vmatpush.bf16.msra.mxu0 %v3384
        %3450 = vmatpush.bf16.msra.mxu0 %v3381
        %3451 = vmatmul.bf16.gmra.mxu0 %v3400
        %v3452 = vpop.f32.mrf.mxu0
        %v3453 = vadd.f32 0.0, %v3452
        %v3454 = vpop.f32.mrf.mxu0
        %v3455 = vadd.f32 0.0, %v3454
        %3456 = vmatmul.bf16.gmra.mxu0 %v3403
        %v3457 = vpop.f32.mrf.mxu0
        %v3458 = vadd.f32 0.0, %v3457
        %v3459 = vpop.f32.mrf.mxu0
        %v3460 = vadd.f32 0.0, %v3459
        %3461 = vdwg.mxu0
        %s3462 = scalar_lea.vmem %s6, 16
        %v3463 = vld [vmem:[%s3462] sm:$0xf]
        %v3464 = vld [vmem:[%s3462 + $0x4] sm:$0xf]
        %v3465 = vld [vmem:[%s3462 + $0x8] sm:$0xf]
        %v3466 = vld [vmem:[%s3462 + $0xc] sm:$0xf]
        %v3471 = vunpack.c.l.b16 %v3463
        %v3472 = vunpack.c.l.b16 %v3464
        %v3473 = vunpack.c.l.b16 %v3465
        %v3474 = vunpack.c.l.b16 %v3466
        %v3475 = vpack.c.b16 %v3472, %v3471
        %v3476 = vpack.c.b16 %v3474, %v3473
        %v3478 = vsel %vm2965, %v3475, 0
        %v3481 = vsel %vm2965, %v3476, 0
        %3483 = vmatpush.bf16.msra.mxu0 0
        %3484 = vmatpush.bf16.msra.mxu0 0
        %3485 = vmatpush.bf16.msra.mxu0 0
        %3486 = vmatpush.bf16.msra.mxu0 0
        %3487 = vmatpush.bf16.msra.mxu0 0
        %3488 = vmatpush.bf16.msra.mxu0 0
        %3489 = vmatpush.bf16.msra.mxu0 %v3382
        %3490 = vmatpush.bf16.msra.mxu0 %v3379
        %3491 = vmatmul.bf16.gmra.mxu0 %v3478
        %v3492 = vpop.f32.mrf.mxu0
        %v3493 = vadd.f32 0.0, %v3492
        %v3494 = vpop.f32.mrf.mxu0
        %v3495 = vadd.f32 0.0, %v3494
        %3496 = vmatmul.bf16.gmra.mxu0 %v3481
        %v3497 = vpop.f32.mrf.mxu0
        %v3498 = vadd.f32 0.0, %v3497
        %v3499 = vpop.f32.mrf.mxu0
        %v3500 = vadd.f32 0.0, %v3499
        %3501 = vdwg.mxu0
        %3502 = vmatpush.bf16.msra.mxu0 0
        %3503 = vmatpush.bf16.msra.mxu0 0
        %3504 = vmatpush.bf16.msra.mxu0 0
        %3505 = vmatpush.bf16.msra.mxu0 0
        %3506 = vmatpush.bf16.msra.mxu0 0
        %3507 = vmatpush.bf16.msra.mxu0 0
        %3508 = vmatpush.bf16.msra.mxu0 %v3383
        %3509 = vmatpush.bf16.msra.mxu0 %v3380
        %3510 = vmatmul.bf16.gmra.mxu0 %v3478
        %v3511 = vpop.f32.mrf.mxu0
        %v3512 = vadd.f32 0.0, %v3511
        %v3513 = vpop.f32.mrf.mxu0
        %v3514 = vadd.f32 0.0, %v3513
        %3515 = vmatmul.bf16.gmra.mxu0 %v3481
        %v3516 = vpop.f32.mrf.mxu0
        %v3517 = vadd.f32 0.0, %v3516
        %v3518 = vpop.f32.mrf.mxu0
        %v3519 = vadd.f32 0.0, %v3518
        %3520 = vdwg.mxu0
        %3521 = vmatpush.bf16.msra.mxu0 0
        %3522 = vmatpush.bf16.msra.mxu0 0
        %3523 = vmatpush.bf16.msra.mxu0 0
        %3524 = vmatpush.bf16.msra.mxu0 0
        %3525 = vmatpush.bf16.msra.mxu0 0
        %3526 = vmatpush.bf16.msra.mxu0 0
        %3527 = vmatpush.bf16.msra.mxu0 %v3384
        %3528 = vmatpush.bf16.msra.mxu0 %v3381
        %3529 = vmatmul.bf16.gmra.mxu0 %v3478
        %v3530 = vpop.f32.mrf.mxu0
        %v3531 = vadd.f32 0.0, %v3530
        %v3532 = vpop.f32.mrf.mxu0
        %v3533 = vadd.f32 0.0, %v3532
        %3534 = vmatmul.bf16.gmra.mxu0 %v3481
        %v3535 = vpop.f32.mrf.mxu0
        %v3536 = vadd.f32 0.0, %v3535
        %v3537 = vpop.f32.mrf.mxu0
        %v3538 = vadd.f32 0.0, %v3537
        %3539 = vdwg.mxu0
        %s3540 = scalar_lea.vmem %s6, 32
        %v3541 = vld [vmem:[%s3540] sm:$0xf]
        %v3542 = vld [vmem:[%s3540 + $0x4] sm:$0xf]
        %v3543 = vld [vmem:[%s3540 + $0x8] sm:$0xf]
        %v3544 = vld [vmem:[%s3540 + $0xc] sm:$0xf]
        %v3549 = vunpack.c.l.b16 %v3541
        %v3550 = vunpack.c.l.b16 %v3542
        %v3551 = vunpack.c.l.b16 %v3543
        %v3552 = vunpack.c.l.b16 %v3544
        %v3553 = vpack.c.b16 %v3550, %v3549
        %v3554 = vpack.c.b16 %v3552, %v3551
        %v3556 = vsel %vm2965, %v3553, 0
        %v3559 = vsel %vm2965, %v3554, 0
        %3561 = vmatpush.bf16.msra.mxu0 0
        %3562 = vmatpush.bf16.msra.mxu0 0
        %3563 = vmatpush.bf16.msra.mxu0 0
        %3564 = vmatpush.bf16.msra.mxu0 0
        %3565 = vmatpush.bf16.msra.mxu0 0
        %3566 = vmatpush.bf16.msra.mxu0 0
        %3567 = vmatpush.bf16.msra.mxu0 %v3382
        %3568 = vmatpush.bf16.msra.mxu0 %v3379
        %3569 = vmatmul.bf16.gmra.mxu0 %v3556
        %v3570 = vpop.f32.mrf.mxu0
        %v3571 = vadd.f32 0.0, %v3570
        %v3572 = vpop.f32.mrf.mxu0
        %v3573 = vadd.f32 0.0, %v3572
        %3574 = vmatmul.bf16.gmra.mxu0 %v3559
        %v3575 = vpop.f32.mrf.mxu0
        %v3576 = vadd.f32 0.0, %v3575
        %v3577 = vpop.f32.mrf.mxu0
        %v3578 = vadd.f32 0.0, %v3577
        %3579 = vdwg.mxu0
        %3580 = vmatpush.bf16.msra.mxu0 0
        %3581 = vmatpush.bf16.msra.mxu0 0
        %3582 = vmatpush.bf16.msra.mxu0 0
        %3583 = vmatpush.bf16.msra.mxu0 0
        %3584 = vmatpush.bf16.msra.mxu0 0
        %3585 = vmatpush.bf16.msra.mxu0 0
        %3586 = vmatpush.bf16.msra.mxu0 %v3383
        %3587 = vmatpush.bf16.msra.mxu0 %v3380
        %3588 = vmatmul.bf16.gmra.mxu0 %v3556
        %v3589 = vpop.f32.mrf.mxu0
        %v3590 = vadd.f32 0.0, %v3589
        %v3591 = vpop.f32.mrf.mxu0
        %v3592 = vadd.f32 0.0, %v3591
        %3593 = vmatmul.bf16.gmra.mxu0 %v3559
        %v3594 = vpop.f32.mrf.mxu0
        %v3595 = vadd.f32 0.0, %v3594
        %v3596 = vpop.f32.mrf.mxu0
        %v3597 = vadd.f32 0.0, %v3596
        %3598 = vdwg.mxu0
        %3599 = vmatpush.bf16.msra.mxu0 0
        %3600 = vmatpush.bf16.msra.mxu0 0
        %3601 = vmatpush.bf16.msra.mxu0 0
        %3602 = vmatpush.bf16.msra.mxu0 0
        %3603 = vmatpush.bf16.msra.mxu0 0
        %3604 = vmatpush.bf16.msra.mxu0 0
        %3605 = vmatpush.bf16.msra.mxu0 %v3384
        %3606 = vmatpush.bf16.msra.mxu0 %v3381
        %3607 = vmatmul.bf16.gmra.mxu0 %v3556
        %v3608 = vpop.f32.mrf.mxu0
        %v3609 = vadd.f32 0.0, %v3608
        %v3610 = vpop.f32.mrf.mxu0
        %v3611 = vadd.f32 0.0, %v3610
        %3612 = vmatmul.bf16.gmra.mxu0 %v3559
        %v3613 = vpop.f32.mrf.mxu0
        %v3614 = vadd.f32 0.0, %v3613
        %v3615 = vpop.f32.mrf.mxu0
        %v3616 = vadd.f32 0.0, %v3615
        %3617 = vdwg.mxu0
        %3618 = vrot.lane.b32.xlu0 %v3415, 1
        %v3619 = vpop.permute.xlu0 %3618
        %3620 = vrot.lane.b32.xlu0 %v3417, 1
        %v3621 = vpop.permute.xlu0 %3620
        %3622 = vrot.lane.b32.xlu0 %v3420, 1
        %v3623 = vpop.permute.xlu0 %3622
        %3624 = vrot.lane.b32.xlu0 %v3422, 1
        %v3625 = vpop.permute.xlu0 %3624
        %3626 = vrot.lane.b32.xlu0 %v3434, 1
        %v3627 = vpop.permute.xlu0 %3626
        %3628 = vrot.lane.b32.xlu0 %v3436, 1
        %v3629 = vpop.permute.xlu0 %3628
        %3630 = vrot.lane.b32.xlu0 %v3439, 1
        %v3631 = vpop.permute.xlu0 %3630
        %3632 = vrot.lane.b32.xlu0 %v3441, 1
        %v3633 = vpop.permute.xlu0 %3632
        %3634 = vrot.lane.b32.xlu0 %v3453, 1
        %v3635 = vpop.permute.xlu0 %3634
        %3636 = vrot.lane.b32.xlu0 %v3455, 1
        %v3637 = vpop.permute.xlu0 %3636
        %3638 = vrot.lane.b32.xlu0 %v3458, 1
        %v3639 = vpop.permute.xlu0 %3638
        %3640 = vrot.lane.b32.xlu0 %v3460, 1
        %v3641 = vpop.permute.xlu0 %3640
        %v3642 = vsel %vm3209, %v3627, %v3635
        %v3643 = vsel %vm3209, %v3629, %v3637
        %v3644 = vsel %vm3209, %v3631, %v3639
        %v3645 = vsel %vm3209, %v3633, %v3641
        %v3646 = vsel %vm3209, %v3619, %v3627
        %v3647 = vsel %vm3209, %v3621, %v3629
        %v3648 = vsel %vm3209, %v3623, %v3631
        %v3649 = vsel %vm3209, %v3625, %v3633
        %v3650 = vsel %vm3209, %v3635, %v3619
        %v3651 = vsel %vm3209, %v3637, %v3621
        %v3652 = vsel %vm3209, %v3639, %v3623
        %v3653 = vsel %vm3209, %v3641, %v3625
        %v3654 = vadd.f32 %v3650, %v3493
        %v3655 = vadd.f32 %v3646, %v3512
        %v3656 = vadd.f32 %v3642, %v3531
        %v3657 = vadd.f32 %v3651, %v3495
        %v3658 = vadd.f32 %v3647, %v3514
        %v3659 = vadd.f32 %v3643, %v3533
        %v3660 = vadd.f32 %v3652, %v3498
        %v3661 = vadd.f32 %v3648, %v3517
        %v3662 = vadd.f32 %v3644, %v3536
        %v3663 = vadd.f32 %v3653, %v3500
        %v3664 = vadd.f32 %v3649, %v3519
        %v3665 = vadd.f32 %v3645, %v3538
        %3666 = vrot.lane.b32.xlu0 %v3571, 127
        %v3667 = vpop.permute.xlu0 %3666
        %3668 = vrot.lane.b32.xlu0 %v3573, 127
        %v3669 = vpop.permute.xlu0 %3668
        %3670 = vrot.lane.b32.xlu0 %v3576, 127
        %v3671 = vpop.permute.xlu0 %3670
        %3672 = vrot.lane.b32.xlu0 %v3578, 127
        %v3673 = vpop.permute.xlu0 %3672
        %3674 = vrot.lane.b32.xlu0 %v3590, 127
        %v3675 = vpop.permute.xlu0 %3674
        %3676 = vrot.lane.b32.xlu0 %v3592, 127
        %v3677 = vpop.permute.xlu0 %3676
        %3678 = vrot.lane.b32.xlu0 %v3595, 127
        %v3679 = vpop.permute.xlu0 %3678
        %3680 = vrot.lane.b32.xlu0 %v3597, 127
        %v3681 = vpop.permute.xlu0 %3680
        %3682 = vrot.lane.b32.xlu0 %v3609, 127
        %v3683 = vpop.permute.xlu0 %3682
        %3684 = vrot.lane.b32.xlu0 %v3611, 127
        %v3685 = vpop.permute.xlu0 %3684
        %3686 = vrot.lane.b32.xlu0 %v3614, 127
        %v3687 = vpop.permute.xlu0 %3686
        %3688 = vrot.lane.b32.xlu0 %v3616, 127
        %v3689 = vpop.permute.xlu0 %3688
        %v3690 = vsel %vm3258, %v3675, %v3683
        %v3691 = vsel %vm3258, %v3677, %v3685
        %v3692 = vsel %vm3258, %v3679, %v3687
        %v3693 = vsel %vm3258, %v3681, %v3689
        %v3694 = vsel %vm3258, %v3667, %v3675
        %v3695 = vsel %vm3258, %v3669, %v3677
        %v3696 = vsel %vm3258, %v3671, %v3679
        %v3697 = vsel %vm3258, %v3673, %v3681
        %v3698 = vsel %vm3258, %v3683, %v3667
        %v3699 = vsel %vm3258, %v3685, %v3669
        %v3700 = vsel %vm3258, %v3687, %v3671
        %v3701 = vsel %vm3258, %v3689, %v3673
        %v3702 = vadd.f32 %v3654, %v3694
        %v3703 = vadd.f32 %v3655, %v3690
        %v3704 = vadd.f32 %v3656, %v3698
        %v3705 = vadd.f32 %v3657, %v3695
        %v3706 = vadd.f32 %v3658, %v3691
        %v3707 = vadd.f32 %v3659, %v3699
        %v3708 = vadd.f32 %v3660, %v3696
        %v3709 = vadd.f32 %v3661, %v3692
        %v3710 = vadd.f32 %v3662, %v3700
        %v3711 = vadd.f32 %v3663, %v3697
        %v3712 = vadd.f32 %v3664, %v3693
        %v3713 = vadd.f32 %v3665, %v3701
        %v3714 = vld [vmem:[%s7] sm:$0xff]
        %v3715 = vld [vmem:[%s7 + $0x8] sm:$0xff]
        %v3716 = vld [vmem:[%s7 + $0x10] sm:$0xff]
        %v3717 = vld [vmem:[%s7 + $0x18] sm:$0xff]
        %3719 = vset.pattern.permute.xlu0 0
        %3720 = vperm.xlu0 %3719, %v3714
        %v3721 = vpop.permute.xlu0 %3720
        %3724 = vset.pattern.permute.xlu0 0
        %3725 = vperm.xlu0 %3724, %v3715
        %v3726 = vpop.permute.xlu0 %3725
        %3729 = vset.pattern.permute.xlu0 0
        %3730 = vperm.xlu0 %3729, %v3716
        %v3731 = vpop.permute.xlu0 %3730
        %3734 = vset.pattern.permute.xlu0 0
        %3735 = vperm.xlu0 %3734, %v3717
        %v3736 = vpop.permute.xlu0 %3735
        %v3738 = vmul.f32 %v3702, %v3721
        %v3739 = vmul.f32 %v3703, %v3721
        %v3740 = vmul.f32 %v3704, %v3721
        %v3741 = vmul.f32 %v3705, %v3726
        %v3742 = vmul.f32 %v3706, %v3726
        %v3743 = vmul.f32 %v3707, %v3726
        %v3744 = vmul.f32 %v3708, %v3731
        %v3745 = vmul.f32 %v3709, %v3731
        %v3746 = vmul.f32 %v3710, %v3731
        %v3747 = vmul.f32 %v3711, %v3736
        %v3748 = vmul.f32 %v3712, %v3736
        %v3749 = vmul.f32 %v3713, %v3736
        %v3750 = vld [vmem:[%s8] sm:$0xff]
        %v3751 = vld [vmem:[%s8 + $0x8] sm:$0xff]
        %v3752 = vld [vmem:[%s8 + $0x10] sm:$0xff]
        %v3753 = vld [vmem:[%s8 + $0x18] sm:$0xff]
        %3755 = vset.pattern.permute.xlu0 0
        %3756 = vperm.xlu0 %3755, %v3750
        %v3757 = vpop.permute.xlu0 %3756
        %3760 = vset.pattern.permute.xlu0 0
        %3761 = vperm.xlu0 %3760, %v3751
        %v3762 = vpop.permute.xlu0 %3761
        %3765 = vset.pattern.permute.xlu0 0
        %3766 = vperm.xlu0 %3765, %v3752
        %v3767 = vpop.permute.xlu0 %3766
        %3770 = vset.pattern.permute.xlu0 0
        %3771 = vperm.xlu0 %3770, %v3753
        %v3772 = vpop.permute.xlu0 %3771
        %v3774 = vadd.f32 %v3738, %v3757
        %v3775 = vadd.f32 %v3739, %v3757
        %v3776 = vadd.f32 %v3740, %v3757
        %v3777 = vadd.f32 %v3741, %v3762
        %v3778 = vadd.f32 %v3742, %v3762
        %v3779 = vadd.f32 %v3743, %v3762
        %v3780 = vadd.f32 %v3744, %v3767
        %v3781 = vadd.f32 %v3745, %v3767
        %v3782 = vadd.f32 %v3746, %v3767
        %v3783 = vadd.f32 %v3747, %v3772
        %v3784 = vadd.f32 %v3748, %v3772
        %v3785 = vadd.f32 %v3749, %v3772
        %v3786 = vadd.f32 %v3774, %v2933
        %v3787 = vadd.f32 %v3775, %v2934
        %v3788 = vadd.f32 %v3776, %v2935
        %v3789 = vadd.f32 %v3777, %v2936
        %v3790 = vadd.f32 %v3778, %v2937
        %v3791 = vadd.f32 %v3779, %v2938
        %v3792 = vadd.f32 %v3780, %v2939
        %v3793 = vadd.f32 %v3781, %v2940
        %v3794 = vadd.f32 %v3782, %v2941
        %v3795 = vadd.f32 %v3783, %v2942
        %v3796 = vadd.f32 %v3784, %v2943
        %v3797 = vadd.f32 %v3785, %v2944
        %v3798 = vmax.f32 %v3786, 0.0
        %v3799 = vmax.f32 %v3787, 0.0
        %v3800 = vmax.f32 %v3788, 0.0
        %v3801 = vmax.f32 %v3789, 0.0
        %v3802 = vmax.f32 %v3790, 0.0
        %v3803 = vmax.f32 %v3791, 0.0
        %v3804 = vmax.f32 %v3792, 0.0
        %v3805 = vmax.f32 %v3793, 0.0
        %v3806 = vmax.f32 %v3794, 0.0
        %v3807 = vmax.f32 %v3795, 0.0
        %v3808 = vmax.f32 %v3796, 0.0
        %v3809 = vmax.f32 %v3797, 0.0
        %v3810 = vsel %vm2930, %v3798, 0.0
        %v3811 = vsel %vm2931, %v3799, 0.0
        %v3812 = vsel %vm2932, %v3800, 0.0
        %v3813 = vsel %vm2930, %v3801, 0.0
        %v3814 = vsel %vm2931, %v3802, 0.0
        %v3815 = vsel %vm2932, %v3803, 0.0
        %v3816 = vsel %vm2930, %v3804, 0.0
        %v3817 = vsel %vm2931, %v3805, 0.0
        %v3818 = vsel %vm2932, %v3806, 0.0
        %v3819 = vsel %vm2930, %v3807, 0.0
        %v3820 = vsel %vm2931, %v3808, 0.0
        %v3821 = vsel %vm2932, %v3809, 0.0
        %v3822 = vpack.c.bf16 %v3813, %v3810
        %v3823 = vpack.c.bf16 %v3814, %v3811
        %v3824 = vpack.c.bf16 %v3815, %v3812
        %v3825 = vpack.c.bf16 %v3819, %v3816
        %v3826 = vpack.c.bf16 %v3820, %v3817
        %v3827 = vpack.c.bf16 %v3821, %v3818
        %s3828 = scalar_lea.vmem %s3, 48
        %v3829 = vld [vmem:[%s3828] sm:$0xf]
        %v3830 = vld [vmem:[%s3828 + $0x4] sm:$0xf]
        %v3831 = vld [vmem:[%s3828 + $0x8] sm:$0xf]
        %v3832 = vld [vmem:[%s3828 + $0xc] sm:$0xf]
        %v3837 = vunpack.c.l.b16 %v3829
        %v3838 = vunpack.c.l.b16 %v3830
        %v3839 = vunpack.c.l.b16 %v3831
        %v3840 = vunpack.c.l.b16 %v3832
        %v3841 = vpack.c.b16 %v3838, %v3837
        %v3842 = vpack.c.b16 %v3840, %v3839
        %v3844 = vsel %vm2965, %v3841, 0
        %v3847 = vsel %vm2965, %v3842, 0
        %3849 = vmatpush.bf16.msra.mxu0 0
        %3850 = vmatpush.bf16.msra.mxu0 0
        %3851 = vmatpush.bf16.msra.mxu0 0
        %3852 = vmatpush.bf16.msra.mxu0 0
        %3853 = vmatpush.bf16.msra.mxu0 0
        %3854 = vmatpush.bf16.msra.mxu0 0
        %3855 = vmatpush.bf16.msra.mxu0 %v3825
        %3856 = vmatpush.bf16.msra.mxu0 %v3822
        %3857 = vmatmul.bf16.gmra.mxu0 %v3844
        %v3858 = vpop.f32.mrf.mxu0
        %v3859 = vadd.f32 0.0, %v3858
        %v3860 = vpop.f32.mrf.mxu0
        %v3861 = vadd.f32 0.0, %v3860
        %3862 = vmatmul.bf16.gmra.mxu0 %v3847
        %v3863 = vpop.f32.mrf.mxu0
        %v3864 = vadd.f32 0.0, %v3863
        %v3865 = vpop.f32.mrf.mxu0
        %v3866 = vadd.f32 0.0, %v3865
        %3867 = vdwg.mxu0
        %3868 = vmatpush.bf16.msra.mxu0 0
        %3869 = vmatpush.bf16.msra.mxu0 0
        %3870 = vmatpush.bf16.msra.mxu0 0
        %3871 = vmatpush.bf16.msra.mxu0 0
        %3872 = vmatpush.bf16.msra.mxu0 0
        %3873 = vmatpush.bf16.msra.mxu0 0
        %3874 = vmatpush.bf16.msra.mxu0 %v3826
        %3875 = vmatpush.bf16.msra.mxu0 %v3823
        %3876 = vmatmul.bf16.gmra.mxu0 %v3844
        %v3877 = vpop.f32.mrf.mxu0
        %v3878 = vadd.f32 0.0, %v3877
        %v3879 = vpop.f32.mrf.mxu0
        %v3880 = vadd.f32 0.0, %v3879
        %3881 = vmatmul.bf16.gmra.mxu0 %v3847
        %v3882 = vpop.f32.mrf.mxu0
        %v3883 = vadd.f32 0.0, %v3882
        %v3884 = vpop.f32.mrf.mxu0
        %v3885 = vadd.f32 0.0, %v3884
        %3886 = vdwg.mxu0
        %3887 = vmatpush.bf16.msra.mxu0 0
        %3888 = vmatpush.bf16.msra.mxu0 0
        %3889 = vmatpush.bf16.msra.mxu0 0
        %3890 = vmatpush.bf16.msra.mxu0 0
        %3891 = vmatpush.bf16.msra.mxu0 0
        %3892 = vmatpush.bf16.msra.mxu0 0
        %3893 = vmatpush.bf16.msra.mxu0 %v3827
        %3894 = vmatpush.bf16.msra.mxu0 %v3824
        %3895 = vmatmul.bf16.gmra.mxu0 %v3844
        %v3896 = vpop.f32.mrf.mxu0
        %v3897 = vadd.f32 0.0, %v3896
        %v3898 = vpop.f32.mrf.mxu0
        %v3899 = vadd.f32 0.0, %v3898
        %3900 = vmatmul.bf16.gmra.mxu0 %v3847
        %v3901 = vpop.f32.mrf.mxu0
        %v3902 = vadd.f32 0.0, %v3901
        %v3903 = vpop.f32.mrf.mxu0
        %v3904 = vadd.f32 0.0, %v3903
        %3905 = vdwg.mxu0
        %s3906 = scalar_lea.vmem %s3, 64
        %v3907 = vld [vmem:[%s3906] sm:$0xf]
        %v3908 = vld [vmem:[%s3906 + $0x4] sm:$0xf]
        %v3909 = vld [vmem:[%s3906 + $0x8] sm:$0xf]
        %v3910 = vld [vmem:[%s3906 + $0xc] sm:$0xf]
        %v3915 = vunpack.c.l.b16 %v3907
        %v3916 = vunpack.c.l.b16 %v3908
        %v3917 = vunpack.c.l.b16 %v3909
        %v3918 = vunpack.c.l.b16 %v3910
        %v3919 = vpack.c.b16 %v3916, %v3915
        %v3920 = vpack.c.b16 %v3918, %v3917
        %v3922 = vsel %vm2965, %v3919, 0
        %v3925 = vsel %vm2965, %v3920, 0
        %3927 = vmatpush.bf16.msra.mxu0 0
        %3928 = vmatpush.bf16.msra.mxu0 0
        %3929 = vmatpush.bf16.msra.mxu0 0
        %3930 = vmatpush.bf16.msra.mxu0 0
        %3931 = vmatpush.bf16.msra.mxu0 0
        %3932 = vmatpush.bf16.msra.mxu0 0
        %3933 = vmatpush.bf16.msra.mxu0 %v3825
        %3934 = vmatpush.bf16.msra.mxu0 %v3822
        %3935 = vmatmul.bf16.gmra.mxu0 %v3922
        %v3936 = vpop.f32.mrf.mxu0
        %v3937 = vadd.f32 0.0, %v3936
        %v3938 = vpop.f32.mrf.mxu0
        %v3939 = vadd.f32 0.0, %v3938
        %3940 = vmatmul.bf16.gmra.mxu0 %v3925
        %v3941 = vpop.f32.mrf.mxu0
        %v3942 = vadd.f32 0.0, %v3941
        %v3943 = vpop.f32.mrf.mxu0
        %v3944 = vadd.f32 0.0, %v3943
        %3945 = vdwg.mxu0
        %3946 = vmatpush.bf16.msra.mxu0 0
        %3947 = vmatpush.bf16.msra.mxu0 0
        %3948 = vmatpush.bf16.msra.mxu0 0
        %3949 = vmatpush.bf16.msra.mxu0 0
        %3950 = vmatpush.bf16.msra.mxu0 0
        %3951 = vmatpush.bf16.msra.mxu0 0
        %3952 = vmatpush.bf16.msra.mxu0 %v3826
        %3953 = vmatpush.bf16.msra.mxu0 %v3823
        %3954 = vmatmul.bf16.gmra.mxu0 %v3922
        %v3955 = vpop.f32.mrf.mxu0
        %v3956 = vadd.f32 0.0, %v3955
        %v3957 = vpop.f32.mrf.mxu0
        %v3958 = vadd.f32 0.0, %v3957
        %3959 = vmatmul.bf16.gmra.mxu0 %v3925
        %v3960 = vpop.f32.mrf.mxu0
        %v3961 = vadd.f32 0.0, %v3960
        %v3962 = vpop.f32.mrf.mxu0
        %v3963 = vadd.f32 0.0, %v3962
        %3964 = vdwg.mxu0
        %3965 = vmatpush.bf16.msra.mxu0 0
        %3966 = vmatpush.bf16.msra.mxu0 0
        %3967 = vmatpush.bf16.msra.mxu0 0
        %3968 = vmatpush.bf16.msra.mxu0 0
        %3969 = vmatpush.bf16.msra.mxu0 0
        %3970 = vmatpush.bf16.msra.mxu0 0
        %3971 = vmatpush.bf16.msra.mxu0 %v3827
        %3972 = vmatpush.bf16.msra.mxu0 %v3824
        %3973 = vmatmul.bf16.gmra.mxu0 %v3922
        %v3974 = vpop.f32.mrf.mxu0
        %v3975 = vadd.f32 0.0, %v3974
        %v3976 = vpop.f32.mrf.mxu0
        %v3977 = vadd.f32 0.0, %v3976
        %3978 = vmatmul.bf16.gmra.mxu0 %v3925
        %v3979 = vpop.f32.mrf.mxu0
        %v3980 = vadd.f32 0.0, %v3979
        %v3981 = vpop.f32.mrf.mxu0
        %v3982 = vadd.f32 0.0, %v3981
        %3983 = vdwg.mxu0
        %s3984 = scalar_lea.vmem %s3, 80
        %v3985 = vld [vmem:[%s3984] sm:$0xf]
        %v3986 = vld [vmem:[%s3984 + $0x4] sm:$0xf]
        %v3987 = vld [vmem:[%s3984 + $0x8] sm:$0xf]
        %v3988 = vld [vmem:[%s3984 + $0xc] sm:$0xf]
        %v3993 = vunpack.c.l.b16 %v3985
        %v3994 = vunpack.c.l.b16 %v3986
        %v3995 = vunpack.c.l.b16 %v3987
        %v3996 = vunpack.c.l.b16 %v3988
        %v3997 = vpack.c.b16 %v3994, %v3993
        %v3998 = vpack.c.b16 %v3996, %v3995
        %v4000 = vsel %vm2965, %v3997, 0
        %v4003 = vsel %vm2965, %v3998, 0
        %4005 = vmatpush.bf16.msra.mxu0 0
        %4006 = vmatpush.bf16.msra.mxu0 0
        %4007 = vmatpush.bf16.msra.mxu0 0
        %4008 = vmatpush.bf16.msra.mxu0 0
        %4009 = vmatpush.bf16.msra.mxu0 0
        %4010 = vmatpush.bf16.msra.mxu0 0
        %4011 = vmatpush.bf16.msra.mxu0 %v3825
        %4012 = vmatpush.bf16.msra.mxu0 %v3822
        %4013 = vmatmul.bf16.gmra.mxu0 %v4000
        %v4014 = vpop.f32.mrf.mxu0
        %v4015 = vadd.f32 0.0, %v4014
        %v4016 = vpop.f32.mrf.mxu0
        %v4017 = vadd.f32 0.0, %v4016
        %4018 = vmatmul.bf16.gmra.mxu0 %v4003
        %v4019 = vpop.f32.mrf.mxu0
        %v4020 = vadd.f32 0.0, %v4019
        %v4021 = vpop.f32.mrf.mxu0
        %v4022 = vadd.f32 0.0, %v4021
        %4023 = vdwg.mxu0
        %4024 = vmatpush.bf16.msra.mxu0 0
        %4025 = vmatpush.bf16.msra.mxu0 0
        %4026 = vmatpush.bf16.msra.mxu0 0
        %4027 = vmatpush.bf16.msra.mxu0 0
        %4028 = vmatpush.bf16.msra.mxu0 0
        %4029 = vmatpush.bf16.msra.mxu0 0
        %4030 = vmatpush.bf16.msra.mxu0 %v3826
        %4031 = vmatpush.bf16.msra.mxu0 %v3823
        %4032 = vmatmul.bf16.gmra.mxu0 %v4000
        %v4033 = vpop.f32.mrf.mxu0
        %v4034 = vadd.f32 0.0, %v4033
        %v4035 = vpop.f32.mrf.mxu0
        %v4036 = vadd.f32 0.0, %v4035
        %4037 = vmatmul.bf16.gmra.mxu0 %v4003
        %v4038 = vpop.f32.mrf.mxu0
        %v4039 = vadd.f32 0.0, %v4038
        %v4040 = vpop.f32.mrf.mxu0
        %v4041 = vadd.f32 0.0, %v4040
        %4042 = vdwg.mxu0
        %4043 = vmatpush.bf16.msra.mxu0 0
        %4044 = vmatpush.bf16.msra.mxu0 0
        %4045 = vmatpush.bf16.msra.mxu0 0
        %4046 = vmatpush.bf16.msra.mxu0 0
        %4047 = vmatpush.bf16.msra.mxu0 0
        %4048 = vmatpush.bf16.msra.mxu0 0
        %4049 = vmatpush.bf16.msra.mxu0 %v3827
        %4050 = vmatpush.bf16.msra.mxu0 %v3824
        %4051 = vmatmul.bf16.gmra.mxu0 %v4000
        %v4052 = vpop.f32.mrf.mxu0
        %v4053 = vadd.f32 0.0, %v4052
        %v4054 = vpop.f32.mrf.mxu0
        %v4055 = vadd.f32 0.0, %v4054
        %4056 = vmatmul.bf16.gmra.mxu0 %v4003
        %v4057 = vpop.f32.mrf.mxu0
        %v4058 = vadd.f32 0.0, %v4057
        %v4059 = vpop.f32.mrf.mxu0
        %v4060 = vadd.f32 0.0, %v4059
        %4061 = vdwg.mxu0
        %4062 = vrot.lane.b32.xlu0 %v3859, 1
        %v4063 = vpop.permute.xlu0 %4062
        %4064 = vrot.lane.b32.xlu0 %v3861, 1
        %v4065 = vpop.permute.xlu0 %4064
        %4066 = vrot.lane.b32.xlu0 %v3864, 1
        %v4067 = vpop.permute.xlu0 %4066
        %4068 = vrot.lane.b32.xlu0 %v3866, 1
        %v4069 = vpop.permute.xlu0 %4068
        %4070 = vrot.lane.b32.xlu0 %v3878, 1
        %v4071 = vpop.permute.xlu0 %4070
        %4072 = vrot.lane.b32.xlu0 %v3880, 1
        %v4073 = vpop.permute.xlu0 %4072
        %4074 = vrot.lane.b32.xlu0 %v3883, 1
        %v4075 = vpop.permute.xlu0 %4074
        %4076 = vrot.lane.b32.xlu0 %v3885, 1
        %v4077 = vpop.permute.xlu0 %4076
        %4078 = vrot.lane.b32.xlu0 %v3897, 1
        %v4079 = vpop.permute.xlu0 %4078
        %4080 = vrot.lane.b32.xlu0 %v3899, 1
        %v4081 = vpop.permute.xlu0 %4080
        %4082 = vrot.lane.b32.xlu0 %v3902, 1
        %v4083 = vpop.permute.xlu0 %4082
        %4084 = vrot.lane.b32.xlu0 %v3904, 1
        %v4085 = vpop.permute.xlu0 %4084
        %v4086 = vsel %vm3209, %v4071, %v4079
        %v4087 = vsel %vm3209, %v4073, %v4081
        %v4088 = vsel %vm3209, %v4075, %v4083
        %v4089 = vsel %vm3209, %v4077, %v4085
        %v4090 = vsel %vm3209, %v4063, %v4071
        %v4091 = vsel %vm3209, %v4065, %v4073
        %v4092 = vsel %vm3209, %v4067, %v4075
        %v4093 = vsel %vm3209, %v4069, %v4077
        %v4094 = vsel %vm3209, %v4079, %v4063
        %v4095 = vsel %vm3209, %v4081, %v4065
        %v4096 = vsel %vm3209, %v4083, %v4067
        %v4097 = vsel %vm3209, %v4085, %v4069
        %v4098 = vadd.f32 %v4094, %v3937
        %v4099 = vadd.f32 %v4090, %v3956
        %v4100 = vadd.f32 %v4086, %v3975
        %v4101 = vadd.f32 %v4095, %v3939
        %v4102 = vadd.f32 %v4091, %v3958
        %v4103 = vadd.f32 %v4087, %v3977
        %v4104 = vadd.f32 %v4096, %v3942
        %v4105 = vadd.f32 %v4092, %v3961
        %v4106 = vadd.f32 %v4088, %v3980
        %v4107 = vadd.f32 %v4097, %v3944
        %v4108 = vadd.f32 %v4093, %v3963
        %v4109 = vadd.f32 %v4089, %v3982
        %4110 = vrot.lane.b32.xlu0 %v4015, 127
        %v4111 = vpop.permute.xlu0 %4110
        %4112 = vrot.lane.b32.xlu0 %v4017, 127
        %v4113 = vpop.permute.xlu0 %4112
        %4114 = vrot.lane.b32.xlu0 %v4020, 127
        %v4115 = vpop.permute.xlu0 %4114
        %4116 = vrot.lane.b32.xlu0 %v4022, 127
        %v4117 = vpop.permute.xlu0 %4116
        %4118 = vrot.lane.b32.xlu0 %v4034, 127
        %v4119 = vpop.permute.xlu0 %4118
        %4120 = vrot.lane.b32.xlu0 %v4036, 127
        %v4121 = vpop.permute.xlu0 %4120
        %4122 = vrot.lane.b32.xlu0 %v4039, 127
        %v4123 = vpop.permute.xlu0 %4122
        %4124 = vrot.lane.b32.xlu0 %v4041, 127
        %v4125 = vpop.permute.xlu0 %4124
        %4126 = vrot.lane.b32.xlu0 %v4053, 127
        %v4127 = vpop.permute.xlu0 %4126
        %4128 = vrot.lane.b32.xlu0 %v4055, 127
        %v4129 = vpop.permute.xlu0 %4128
        %4130 = vrot.lane.b32.xlu0 %v4058, 127
        %v4131 = vpop.permute.xlu0 %4130
        %4132 = vrot.lane.b32.xlu0 %v4060, 127
        %v4133 = vpop.permute.xlu0 %4132
        %v4134 = vsel %vm3258, %v4119, %v4127
        %v4135 = vsel %vm3258, %v4121, %v4129
        %v4136 = vsel %vm3258, %v4123, %v4131
        %v4137 = vsel %vm3258, %v4125, %v4133
        %v4138 = vsel %vm3258, %v4111, %v4119
        %v4139 = vsel %vm3258, %v4113, %v4121
        %v4140 = vsel %vm3258, %v4115, %v4123
        %v4141 = vsel %vm3258, %v4117, %v4125
        %v4142 = vsel %vm3258, %v4127, %v4111
        %v4143 = vsel %vm3258, %v4129, %v4113
        %v4144 = vsel %vm3258, %v4131, %v4115
        %v4145 = vsel %vm3258, %v4133, %v4117
        %v4146 = vadd.f32 %v4098, %v4138
        %v4147 = vadd.f32 %v4099, %v4134
        %v4148 = vadd.f32 %v4100, %v4142
        %v4149 = vadd.f32 %v4101, %v4139
        %v4150 = vadd.f32 %v4102, %v4135
        %v4151 = vadd.f32 %v4103, %v4143
        %v4152 = vadd.f32 %v4104, %v4140
        %v4153 = vadd.f32 %v4105, %v4136
        %v4154 = vadd.f32 %v4106, %v4144
        %v4155 = vadd.f32 %v4107, %v4141
        %v4156 = vadd.f32 %v4108, %v4137
        %v4157 = vadd.f32 %v4109, %v4145
        %s4158 = scalar_lea.vmem %s4, 32
        %v4159 = vld [vmem:[%s4158] sm:$0xff]
        %v4160 = vld [vmem:[%s4158 + $0x8] sm:$0xff]
        %v4161 = vld [vmem:[%s4158 + $0x10] sm:$0xff]
        %v4162 = vld [vmem:[%s4158 + $0x18] sm:$0xff]
        %4164 = vset.pattern.permute.xlu0 0
        %4165 = vperm.xlu0 %4164, %v4159
        %v4166 = vpop.permute.xlu0 %4165
        %4169 = vset.pattern.permute.xlu0 0
        %4170 = vperm.xlu0 %4169, %v4160
        %v4171 = vpop.permute.xlu0 %4170
        %4174 = vset.pattern.permute.xlu0 0
        %4175 = vperm.xlu0 %4174, %v4161
        %v4176 = vpop.permute.xlu0 %4175
        %4179 = vset.pattern.permute.xlu0 0
        %4180 = vperm.xlu0 %4179, %v4162
        %v4181 = vpop.permute.xlu0 %4180
        %v4183 = vmul.f32 %v4146, %v4166
        %v4184 = vmul.f32 %v4147, %v4166
        %v4185 = vmul.f32 %v4148, %v4166
        %v4186 = vmul.f32 %v4149, %v4171
        %v4187 = vmul.f32 %v4150, %v4171
        %v4188 = vmul.f32 %v4151, %v4171
        %v4189 = vmul.f32 %v4152, %v4176
        %v4190 = vmul.f32 %v4153, %v4176
        %v4191 = vmul.f32 %v4154, %v4176
        %v4192 = vmul.f32 %v4155, %v4181
        %v4193 = vmul.f32 %v4156, %v4181
        %v4194 = vmul.f32 %v4157, %v4181
        %s4195 = scalar_lea.vmem %s5, 32
        %v4196 = vld [vmem:[%s4195] sm:$0xff]
        %v4197 = vld [vmem:[%s4195 + $0x8] sm:$0xff]
        %v4198 = vld [vmem:[%s4195 + $0x10] sm:$0xff]
        %v4199 = vld [vmem:[%s4195 + $0x18] sm:$0xff]
        %4201 = vset.pattern.permute.xlu0 0
        %4202 = vperm.xlu0 %4201, %v4196
        %v4203 = vpop.permute.xlu0 %4202
        %4206 = vset.pattern.permute.xlu0 0
        %4207 = vperm.xlu0 %4206, %v4197
        %v4208 = vpop.permute.xlu0 %4207
        %4211 = vset.pattern.permute.xlu0 0
        %4212 = vperm.xlu0 %4211, %v4198
        %v4213 = vpop.permute.xlu0 %4212
        %4216 = vset.pattern.permute.xlu0 0
        %4217 = vperm.xlu0 %4216, %v4199
        %v4218 = vpop.permute.xlu0 %4217
        %v4220 = vadd.f32 %v4183, %v4203
        %v4221 = vadd.f32 %v4184, %v4203
        %v4222 = vadd.f32 %v4185, %v4203
        %v4223 = vadd.f32 %v4186, %v4208
        %v4224 = vadd.f32 %v4187, %v4208
        %v4225 = vadd.f32 %v4188, %v4208
        %v4226 = vadd.f32 %v4189, %v4213
        %v4227 = vadd.f32 %v4190, %v4213
        %v4228 = vadd.f32 %v4191, %v4213
        %v4229 = vadd.f32 %v4192, %v4218
        %v4230 = vadd.f32 %v4193, %v4218
        %v4231 = vadd.f32 %v4194, %v4218
        %v4232 = vmax.f32 %v4220, 0.0
        %v4233 = vmax.f32 %v4221, 0.0
        %v4234 = vmax.f32 %v4222, 0.0
        %v4235 = vmax.f32 %v4223, 0.0
        %v4236 = vmax.f32 %v4224, 0.0
        %v4237 = vmax.f32 %v4225, 0.0
        %v4238 = vmax.f32 %v4226, 0.0
        %v4239 = vmax.f32 %v4227, 0.0
        %v4240 = vmax.f32 %v4228, 0.0
        %v4241 = vmax.f32 %v4229, 0.0
        %v4242 = vmax.f32 %v4230, 0.0
        %v4243 = vmax.f32 %v4231, 0.0
        %v4244 = vsel %vm2930, %v4232, 0.0
        %v4245 = vsel %vm2931, %v4233, 0.0
        %v4246 = vsel %vm2932, %v4234, 0.0
        %v4247 = vsel %vm2930, %v4235, 0.0
        %v4248 = vsel %vm2931, %v4236, 0.0
        %v4249 = vsel %vm2932, %v4237, 0.0
        %v4250 = vsel %vm2930, %v4238, 0.0
        %v4251 = vsel %vm2931, %v4239, 0.0
        %v4252 = vsel %vm2932, %v4240, 0.0
        %v4253 = vsel %vm2930, %v4241, 0.0
        %v4254 = vsel %vm2931, %v4242, 0.0
        %v4255 = vsel %vm2932, %v4243, 0.0
        %v4256 = vpack.c.bf16 %v4247, %v4244
        %v4257 = vpack.c.bf16 %v4248, %v4245
        %v4258 = vpack.c.bf16 %v4249, %v4246
        %v4259 = vpack.c.bf16 %v4253, %v4250
        %v4260 = vpack.c.bf16 %v4254, %v4251
        %v4261 = vpack.c.bf16 %v4255, %v4252
        %s4262 = scalar_lea.vmem %s6, 48
        %v4263 = vld [vmem:[%s4262] sm:$0xf]
        %v4264 = vld [vmem:[%s4262 + $0x4] sm:$0xf]
        %v4265 = vld [vmem:[%s4262 + $0x8] sm:$0xf]
        %v4266 = vld [vmem:[%s4262 + $0xc] sm:$0xf]
        %v4271 = vunpack.c.l.b16 %v4263
        %v4272 = vunpack.c.l.b16 %v4264
        %v4273 = vunpack.c.l.b16 %v4265
        %v4274 = vunpack.c.l.b16 %v4266
        %v4275 = vpack.c.b16 %v4272, %v4271
        %v4276 = vpack.c.b16 %v4274, %v4273
        %v4278 = vsel %vm2965, %v4275, 0
        %v4281 = vsel %vm2965, %v4276, 0
        %4283 = vmatpush.bf16.msra.mxu0 0
        %4284 = vmatpush.bf16.msra.mxu0 0
        %4285 = vmatpush.bf16.msra.mxu0 0
        %4286 = vmatpush.bf16.msra.mxu0 0
        %4287 = vmatpush.bf16.msra.mxu0 0
        %4288 = vmatpush.bf16.msra.mxu0 0
        %4289 = vmatpush.bf16.msra.mxu0 %v4259
        %4290 = vmatpush.bf16.msra.mxu0 %v4256
        %4291 = vmatmul.bf16.gmra.mxu0 %v4278
        %v4292 = vpop.f32.mrf.mxu0
        %v4293 = vadd.f32 0.0, %v4292
        %v4294 = vpop.f32.mrf.mxu0
        %v4295 = vadd.f32 0.0, %v4294
        %4296 = vmatmul.bf16.gmra.mxu0 %v4281
        %v4297 = vpop.f32.mrf.mxu0
        %v4298 = vadd.f32 0.0, %v4297
        %v4299 = vpop.f32.mrf.mxu0
        %v4300 = vadd.f32 0.0, %v4299
        %4301 = vdwg.mxu0
        %4302 = vmatpush.bf16.msra.mxu0 0
        %4303 = vmatpush.bf16.msra.mxu0 0
        %4304 = vmatpush.bf16.msra.mxu0 0
        %4305 = vmatpush.bf16.msra.mxu0 0
        %4306 = vmatpush.bf16.msra.mxu0 0
        %4307 = vmatpush.bf16.msra.mxu0 0
        %4308 = vmatpush.bf16.msra.mxu0 %v4260
        %4309 = vmatpush.bf16.msra.mxu0 %v4257
        %4310 = vmatmul.bf16.gmra.mxu0 %v4278
        %v4311 = vpop.f32.mrf.mxu0
        %v4312 = vadd.f32 0.0, %v4311
        %v4313 = vpop.f32.mrf.mxu0
        %v4314 = vadd.f32 0.0, %v4313
        %4315 = vmatmul.bf16.gmra.mxu0 %v4281
        %v4316 = vpop.f32.mrf.mxu0
        %v4317 = vadd.f32 0.0, %v4316
        %v4318 = vpop.f32.mrf.mxu0
        %v4319 = vadd.f32 0.0, %v4318
        %4320 = vdwg.mxu0
        %4321 = vmatpush.bf16.msra.mxu0 0
        %4322 = vmatpush.bf16.msra.mxu0 0
        %4323 = vmatpush.bf16.msra.mxu0 0
        %4324 = vmatpush.bf16.msra.mxu0 0
        %4325 = vmatpush.bf16.msra.mxu0 0
        %4326 = vmatpush.bf16.msra.mxu0 0
        %4327 = vmatpush.bf16.msra.mxu0 %v4261
        %4328 = vmatpush.bf16.msra.mxu0 %v4258
        %4329 = vmatmul.bf16.gmra.mxu0 %v4278
        %v4330 = vpop.f32.mrf.mxu0
        %v4331 = vadd.f32 0.0, %v4330
        %v4332 = vpop.f32.mrf.mxu0
        %v4333 = vadd.f32 0.0, %v4332
        %4334 = vmatmul.bf16.gmra.mxu0 %v4281
        %v4335 = vpop.f32.mrf.mxu0
        %v4336 = vadd.f32 0.0, %v4335
        %v4337 = vpop.f32.mrf.mxu0
        %v4338 = vadd.f32 0.0, %v4337
        %4339 = vdwg.mxu0
        %s4340 = scalar_lea.vmem %s6, 64
        %v4341 = vld [vmem:[%s4340] sm:$0xf]
        %v4342 = vld [vmem:[%s4340 + $0x4] sm:$0xf]
        %v4343 = vld [vmem:[%s4340 + $0x8] sm:$0xf]
        %v4344 = vld [vmem:[%s4340 + $0xc] sm:$0xf]
        %v4349 = vunpack.c.l.b16 %v4341
        %v4350 = vunpack.c.l.b16 %v4342
        %v4351 = vunpack.c.l.b16 %v4343
        %v4352 = vunpack.c.l.b16 %v4344
        %v4353 = vpack.c.b16 %v4350, %v4349
        %v4354 = vpack.c.b16 %v4352, %v4351
        %v4356 = vsel %vm2965, %v4353, 0
        %v4359 = vsel %vm2965, %v4354, 0
        %4361 = vmatpush.bf16.msra.mxu0 0
        %4362 = vmatpush.bf16.msra.mxu0 0
        %4363 = vmatpush.bf16.msra.mxu0 0
        %4364 = vmatpush.bf16.msra.mxu0 0
        %4365 = vmatpush.bf16.msra.mxu0 0
        %4366 = vmatpush.bf16.msra.mxu0 0
        %4367 = vmatpush.bf16.msra.mxu0 %v4259
        %4368 = vmatpush.bf16.msra.mxu0 %v4256
        %4369 = vmatmul.bf16.gmra.mxu0 %v4356
        %v4370 = vpop.f32.mrf.mxu0
        %v4371 = vadd.f32 0.0, %v4370
        %v4372 = vpop.f32.mrf.mxu0
        %v4373 = vadd.f32 0.0, %v4372
        %4374 = vmatmul.bf16.gmra.mxu0 %v4359
        %v4375 = vpop.f32.mrf.mxu0
        %v4376 = vadd.f32 0.0, %v4375
        %v4377 = vpop.f32.mrf.mxu0
        %v4378 = vadd.f32 0.0, %v4377
        %4379 = vdwg.mxu0
        %4380 = vmatpush.bf16.msra.mxu0 0
        %4381 = vmatpush.bf16.msra.mxu0 0
        %4382 = vmatpush.bf16.msra.mxu0 0
        %4383 = vmatpush.bf16.msra.mxu0 0
        %4384 = vmatpush.bf16.msra.mxu0 0
        %4385 = vmatpush.bf16.msra.mxu0 0
        %4386 = vmatpush.bf16.msra.mxu0 %v4260
        %4387 = vmatpush.bf16.msra.mxu0 %v4257
        %4388 = vmatmul.bf16.gmra.mxu0 %v4356
        %v4389 = vpop.f32.mrf.mxu0
        %v4390 = vadd.f32 0.0, %v4389
        %v4391 = vpop.f32.mrf.mxu0
        %v4392 = vadd.f32 0.0, %v4391
        %4393 = vmatmul.bf16.gmra.mxu0 %v4359
        %v4394 = vpop.f32.mrf.mxu0
        %v4395 = vadd.f32 0.0, %v4394
        %v4396 = vpop.f32.mrf.mxu0
        %v4397 = vadd.f32 0.0, %v4396
        %4398 = vdwg.mxu0
        %4399 = vmatpush.bf16.msra.mxu0 0
        %4400 = vmatpush.bf16.msra.mxu0 0
        %4401 = vmatpush.bf16.msra.mxu0 0
        %4402 = vmatpush.bf16.msra.mxu0 0
        %4403 = vmatpush.bf16.msra.mxu0 0
        %4404 = vmatpush.bf16.msra.mxu0 0
        %4405 = vmatpush.bf16.msra.mxu0 %v4261
        %4406 = vmatpush.bf16.msra.mxu0 %v4258
        %4407 = vmatmul.bf16.gmra.mxu0 %v4356
        %v4408 = vpop.f32.mrf.mxu0
        %v4409 = vadd.f32 0.0, %v4408
        %v4410 = vpop.f32.mrf.mxu0
        %v4411 = vadd.f32 0.0, %v4410
        %4412 = vmatmul.bf16.gmra.mxu0 %v4359
        %v4413 = vpop.f32.mrf.mxu0
        %v4414 = vadd.f32 0.0, %v4413
        %v4415 = vpop.f32.mrf.mxu0
        %v4416 = vadd.f32 0.0, %v4415
        %4417 = vdwg.mxu0
        %s4418 = scalar_lea.vmem %s6, 80
        %v4419 = vld [vmem:[%s4418] sm:$0xf]
        %v4420 = vld [vmem:[%s4418 + $0x4] sm:$0xf]
        %v4421 = vld [vmem:[%s4418 + $0x8] sm:$0xf]
        %v4422 = vld [vmem:[%s4418 + $0xc] sm:$0xf]
        %v4427 = vunpack.c.l.b16 %v4419
        %v4428 = vunpack.c.l.b16 %v4420
        %v4429 = vunpack.c.l.b16 %v4421
        %v4430 = vunpack.c.l.b16 %v4422
        %v4431 = vpack.c.b16 %v4428, %v4427
        %v4432 = vpack.c.b16 %v4430, %v4429
        %v4434 = vsel %vm2965, %v4431, 0
        %v4437 = vsel %vm2965, %v4432, 0
        %4439 = vmatpush.bf16.msra.mxu0 0
        %4440 = vmatpush.bf16.msra.mxu0 0
        %4441 = vmatpush.bf16.msra.mxu0 0
        %4442 = vmatpush.bf16.msra.mxu0 0
        %4443 = vmatpush.bf16.msra.mxu0 0
        %4444 = vmatpush.bf16.msra.mxu0 0
        %4445 = vmatpush.bf16.msra.mxu0 %v4259
        %4446 = vmatpush.bf16.msra.mxu0 %v4256
        %4447 = vmatmul.bf16.gmra.mxu0 %v4434
        %v4448 = vpop.f32.mrf.mxu0
        %v4449 = vadd.f32 0.0, %v4448
        %v4450 = vpop.f32.mrf.mxu0
        %v4451 = vadd.f32 0.0, %v4450
        %4452 = vmatmul.bf16.gmra.mxu0 %v4437
        %v4453 = vpop.f32.mrf.mxu0
        %v4454 = vadd.f32 0.0, %v4453
        %v4455 = vpop.f32.mrf.mxu0
        %v4456 = vadd.f32 0.0, %v4455
        %4457 = vdwg.mxu0
        %4458 = vmatpush.bf16.msra.mxu0 0
        %4459 = vmatpush.bf16.msra.mxu0 0
        %4460 = vmatpush.bf16.msra.mxu0 0
        %4461 = vmatpush.bf16.msra.mxu0 0
        %4462 = vmatpush.bf16.msra.mxu0 0
        %4463 = vmatpush.bf16.msra.mxu0 0
        %4464 = vmatpush.bf16.msra.mxu0 %v4260
        %4465 = vmatpush.bf16.msra.mxu0 %v4257
        %4466 = vmatmul.bf16.gmra.mxu0 %v4434
        %v4467 = vpop.f32.mrf.mxu0
        %v4468 = vadd.f32 0.0, %v4467
        %v4469 = vpop.f32.mrf.mxu0
        %v4470 = vadd.f32 0.0, %v4469
        %4471 = vmatmul.bf16.gmra.mxu0 %v4437
        %v4472 = vpop.f32.mrf.mxu0
        %v4473 = vadd.f32 0.0, %v4472
        %v4474 = vpop.f32.mrf.mxu0
        %v4475 = vadd.f32 0.0, %v4474
        %4476 = vdwg.mxu0
        %4477 = vmatpush.bf16.msra.mxu0 0
        %4478 = vmatpush.bf16.msra.mxu0 0
        %4479 = vmatpush.bf16.msra.mxu0 0
        %4480 = vmatpush.bf16.msra.mxu0 0
        %4481 = vmatpush.bf16.msra.mxu0 0
        %4482 = vmatpush.bf16.msra.mxu0 0
        %4483 = vmatpush.bf16.msra.mxu0 %v4261
        %4484 = vmatpush.bf16.msra.mxu0 %v4258
        %4485 = vmatmul.bf16.gmra.mxu0 %v4434
        %v4486 = vpop.f32.mrf.mxu0
        %v4487 = vadd.f32 0.0, %v4486
        %v4488 = vpop.f32.mrf.mxu0
        %v4489 = vadd.f32 0.0, %v4488
        %4490 = vmatmul.bf16.gmra.mxu0 %v4437
        %v4491 = vpop.f32.mrf.mxu0
        %v4492 = vadd.f32 0.0, %v4491
        %v4493 = vpop.f32.mrf.mxu0
        %v4494 = vadd.f32 0.0, %v4493
        %4495 = vdwg.mxu0
        %4496 = vrot.lane.b32.xlu0 %v4293, 1
        %v4497 = vpop.permute.xlu0 %4496
        %4498 = vrot.lane.b32.xlu0 %v4295, 1
        %v4499 = vpop.permute.xlu0 %4498
        %4500 = vrot.lane.b32.xlu0 %v4298, 1
        %v4501 = vpop.permute.xlu0 %4500
        %4502 = vrot.lane.b32.xlu0 %v4300, 1
        %v4503 = vpop.permute.xlu0 %4502
        %4504 = vrot.lane.b32.xlu0 %v4312, 1
        %v4505 = vpop.permute.xlu0 %4504
        %4506 = vrot.lane.b32.xlu0 %v4314, 1
        %v4507 = vpop.permute.xlu0 %4506
        %4508 = vrot.lane.b32.xlu0 %v4317, 1
        %v4509 = vpop.permute.xlu0 %4508
        %4510 = vrot.lane.b32.xlu0 %v4319, 1
        %v4511 = vpop.permute.xlu0 %4510
        %4512 = vrot.lane.b32.xlu0 %v4331, 1
        %v4513 = vpop.permute.xlu0 %4512
        %4514 = vrot.lane.b32.xlu0 %v4333, 1
        %v4515 = vpop.permute.xlu0 %4514
        %4516 = vrot.lane.b32.xlu0 %v4336, 1
        %v4517 = vpop.permute.xlu0 %4516
        %4518 = vrot.lane.b32.xlu0 %v4338, 1
        %v4519 = vpop.permute.xlu0 %4518
        %v4520 = vsel %vm3209, %v4505, %v4513
        %v4521 = vsel %vm3209, %v4507, %v4515
        %v4522 = vsel %vm3209, %v4509, %v4517
        %v4523 = vsel %vm3209, %v4511, %v4519
        %v4524 = vsel %vm3209, %v4497, %v4505
        %v4525 = vsel %vm3209, %v4499, %v4507
        %v4526 = vsel %vm3209, %v4501, %v4509
        %v4527 = vsel %vm3209, %v4503, %v4511
        %v4528 = vsel %vm3209, %v4513, %v4497
        %v4529 = vsel %vm3209, %v4515, %v4499
        %v4530 = vsel %vm3209, %v4517, %v4501
        %v4531 = vsel %vm3209, %v4519, %v4503
        %v4532 = vadd.f32 %v4528, %v4371
        %v4533 = vadd.f32 %v4524, %v4390
        %v4534 = vadd.f32 %v4520, %v4409
        %v4535 = vadd.f32 %v4529, %v4373
        %v4536 = vadd.f32 %v4525, %v4392
        %v4537 = vadd.f32 %v4521, %v4411
        %v4538 = vadd.f32 %v4530, %v4376
        %v4539 = vadd.f32 %v4526, %v4395
        %v4540 = vadd.f32 %v4522, %v4414
        %v4541 = vadd.f32 %v4531, %v4378
        %v4542 = vadd.f32 %v4527, %v4397
        %v4543 = vadd.f32 %v4523, %v4416
        %4544 = vrot.lane.b32.xlu0 %v4449, 127
        %v4545 = vpop.permute.xlu0 %4544
        %4546 = vrot.lane.b32.xlu0 %v4451, 127
        %v4547 = vpop.permute.xlu0 %4546
        %4548 = vrot.lane.b32.xlu0 %v4454, 127
        %v4549 = vpop.permute.xlu0 %4548
        %4550 = vrot.lane.b32.xlu0 %v4456, 127
        %v4551 = vpop.permute.xlu0 %4550
        %4552 = vrot.lane.b32.xlu0 %v4468, 127
        %v4553 = vpop.permute.xlu0 %4552
        %4554 = vrot.lane.b32.xlu0 %v4470, 127
        %v4555 = vpop.permute.xlu0 %4554
        %4556 = vrot.lane.b32.xlu0 %v4473, 127
        %v4557 = vpop.permute.xlu0 %4556
        %4558 = vrot.lane.b32.xlu0 %v4475, 127
        %v4559 = vpop.permute.xlu0 %4558
        %4560 = vrot.lane.b32.xlu0 %v4487, 127
        %v4561 = vpop.permute.xlu0 %4560
        %4562 = vrot.lane.b32.xlu0 %v4489, 127
        %v4563 = vpop.permute.xlu0 %4562
        %4564 = vrot.lane.b32.xlu0 %v4492, 127
        %v4565 = vpop.permute.xlu0 %4564
        %4566 = vrot.lane.b32.xlu0 %v4494, 127
        %v4567 = vpop.permute.xlu0 %4566
        %v4568 = vsel %vm3258, %v4553, %v4561
        %v4569 = vsel %vm3258, %v4555, %v4563
        %v4570 = vsel %vm3258, %v4557, %v4565
        %v4571 = vsel %vm3258, %v4559, %v4567
        %v4572 = vsel %vm3258, %v4545, %v4553
        %v4573 = vsel %vm3258, %v4547, %v4555
        %v4574 = vsel %vm3258, %v4549, %v4557
        %v4575 = vsel %vm3258, %v4551, %v4559
        %v4576 = vsel %vm3258, %v4561, %v4545
        %v4577 = vsel %vm3258, %v4563, %v4547
        %v4578 = vsel %vm3258, %v4565, %v4549
        %v4579 = vsel %vm3258, %v4567, %v4551
        %v4580 = vadd.f32 %v4532, %v4572
        %v4581 = vadd.f32 %v4533, %v4568
        %v4582 = vadd.f32 %v4534, %v4576
        %v4583 = vadd.f32 %v4535, %v4573
        %v4584 = vadd.f32 %v4536, %v4569
        %v4585 = vadd.f32 %v4537, %v4577
        %v4586 = vadd.f32 %v4538, %v4574
        %v4587 = vadd.f32 %v4539, %v4570
        %v4588 = vadd.f32 %v4540, %v4578
        %v4589 = vadd.f32 %v4541, %v4575
        %v4590 = vadd.f32 %v4542, %v4571
        %v4591 = vadd.f32 %v4543, %v4579
        %s4592 = scalar_lea.vmem %s7, 32
        %v4593 = vld [vmem:[%s4592] sm:$0xff]
        %v4594 = vld [vmem:[%s4592 + $0x8] sm:$0xff]
        %v4595 = vld [vmem:[%s4592 + $0x10] sm:$0xff]
        %v4596 = vld [vmem:[%s4592 + $0x18] sm:$0xff]
        %4598 = vset.pattern.permute.xlu0 0
        %4599 = vperm.xlu0 %4598, %v4593
        %v4600 = vpop.permute.xlu0 %4599
        %4603 = vset.pattern.permute.xlu0 0
        %4604 = vperm.xlu0 %4603, %v4594
        %v4605 = vpop.permute.xlu0 %4604
        %4608 = vset.pattern.permute.xlu0 0
        %4609 = vperm.xlu0 %4608, %v4595
        %v4610 = vpop.permute.xlu0 %4609
        %4613 = vset.pattern.permute.xlu0 0
        %4614 = vperm.xlu0 %4613, %v4596
        %v4615 = vpop.permute.xlu0 %4614
        %v4617 = vmul.f32 %v4580, %v4600
        %v4618 = vmul.f32 %v4581, %v4600
        %v4619 = vmul.f32 %v4582, %v4600
        %v4620 = vmul.f32 %v4583, %v4605
        %v4621 = vmul.f32 %v4584, %v4605
        %v4622 = vmul.f32 %v4585, %v4605
        %v4623 = vmul.f32 %v4586, %v4610
        %v4624 = vmul.f32 %v4587, %v4610
        %v4625 = vmul.f32 %v4588, %v4610
        %v4626 = vmul.f32 %v4589, %v4615
        %v4627 = vmul.f32 %v4590, %v4615
        %v4628 = vmul.f32 %v4591, %v4615
        %s4629 = scalar_lea.vmem %s8, 32
        %v4630 = vld [vmem:[%s4629] sm:$0xff]
        %v4631 = vld [vmem:[%s4629 + $0x8] sm:$0xff]
        %v4632 = vld [vmem:[%s4629 + $0x10] sm:$0xff]
        %v4633 = vld [vmem:[%s4629 + $0x18] sm:$0xff]
        %4635 = vset.pattern.permute.xlu0 0
        %4636 = vperm.xlu0 %4635, %v4630
        %v4637 = vpop.permute.xlu0 %4636
        %4640 = vset.pattern.permute.xlu0 0
        %4641 = vperm.xlu0 %4640, %v4631
        %v4642 = vpop.permute.xlu0 %4641
        %4645 = vset.pattern.permute.xlu0 0
        %4646 = vperm.xlu0 %4645, %v4632
        %v4647 = vpop.permute.xlu0 %4646
        %4650 = vset.pattern.permute.xlu0 0
        %4651 = vperm.xlu0 %4650, %v4633
        %v4652 = vpop.permute.xlu0 %4651
        %v4654 = vadd.f32 %v4617, %v4637
        %v4655 = vadd.f32 %v4618, %v4637
        %v4656 = vadd.f32 %v4619, %v4637
        %v4657 = vadd.f32 %v4620, %v4642
        %v4658 = vadd.f32 %v4621, %v4642
        %v4659 = vadd.f32 %v4622, %v4642
        %v4660 = vadd.f32 %v4623, %v4647
        %v4661 = vadd.f32 %v4624, %v4647
        %v4662 = vadd.f32 %v4625, %v4647
        %v4663 = vadd.f32 %v4626, %v4652
        %v4664 = vadd.f32 %v4627, %v4652
        %v4665 = vadd.f32 %v4628, %v4652
        %v4666 = vadd.f32 %v4654, %v3810
        %v4667 = vadd.f32 %v4655, %v3811
        %v4668 = vadd.f32 %v4656, %v3812
        %v4669 = vadd.f32 %v4657, %v3813
        %v4670 = vadd.f32 %v4658, %v3814
        %v4671 = vadd.f32 %v4659, %v3815
        %v4672 = vadd.f32 %v4660, %v3816
        %v4673 = vadd.f32 %v4661, %v3817
        %v4674 = vadd.f32 %v4662, %v3818
        %v4675 = vadd.f32 %v4663, %v3819
        %v4676 = vadd.f32 %v4664, %v3820
        %v4677 = vadd.f32 %v4665, %v3821
        %v4678 = vmax.f32 %v4666, 0.0
        %v4679 = vmax.f32 %v4667, 0.0
        %v4680 = vmax.f32 %v4668, 0.0
        %v4681 = vmax.f32 %v4669, 0.0
        %v4682 = vmax.f32 %v4670, 0.0
        %v4683 = vmax.f32 %v4671, 0.0
        %v4684 = vmax.f32 %v4672, 0.0
        %v4685 = vmax.f32 %v4673, 0.0
        %v4686 = vmax.f32 %v4674, 0.0
        %v4687 = vmax.f32 %v4675, 0.0
        %v4688 = vmax.f32 %v4676, 0.0
        %v4689 = vmax.f32 %v4677, 0.0
        %v4690 = vsel %vm2930, %v4678, 0.0
        %v4691 = vsel %vm2931, %v4679, 0.0
        %v4692 = vsel %vm2932, %v4680, 0.0
        %v4693 = vsel %vm2930, %v4681, 0.0
        %v4694 = vsel %vm2931, %v4682, 0.0
        %v4695 = vsel %vm2932, %v4683, 0.0
        %v4696 = vsel %vm2930, %v4684, 0.0
        %v4697 = vsel %vm2931, %v4685, 0.0
        %v4698 = vsel %vm2932, %v4686, 0.0
        %v4699 = vsel %vm2930, %v4687, 0.0
        %v4700 = vsel %vm2931, %v4688, 0.0
        %v4701 = vsel %vm2932, %v4689, 0.0
        %v4702 = vpack.c.bf16 %v4693, %v4690
        %v4703 = vpack.c.bf16 %v4694, %v4691
        %v4704 = vpack.c.bf16 %v4695, %v4692
        %v4705 = vpack.c.bf16 %v4699, %v4696
        %v4706 = vpack.c.bf16 %v4700, %v4697
        %v4707 = vpack.c.bf16 %v4701, %v4698
        %s4708 = scalar_lea.vmem %s3, 96
        %v4709 = vld [vmem:[%s4708] sm:$0xf]
        %v4710 = vld [vmem:[%s4708 + $0x4] sm:$0xf]
        %v4711 = vld [vmem:[%s4708 + $0x8] sm:$0xf]
        %v4712 = vld [vmem:[%s4708 + $0xc] sm:$0xf]
        %v4717 = vunpack.c.l.b16 %v4709
        %v4718 = vunpack.c.l.b16 %v4710
        %v4719 = vunpack.c.l.b16 %v4711
        %v4720 = vunpack.c.l.b16 %v4712
        %v4721 = vpack.c.b16 %v4718, %v4717
        %v4722 = vpack.c.b16 %v4720, %v4719
        %v4724 = vsel %vm2965, %v4721, 0
        %v4727 = vsel %vm2965, %v4722, 0
        %4729 = vmatpush.bf16.msra.mxu0 0
        %4730 = vmatpush.bf16.msra.mxu0 0
        %4731 = vmatpush.bf16.msra.mxu0 0
        %4732 = vmatpush.bf16.msra.mxu0 0
        %4733 = vmatpush.bf16.msra.mxu0 0
        %4734 = vmatpush.bf16.msra.mxu0 0
        %4735 = vmatpush.bf16.msra.mxu0 %v4705
        %4736 = vmatpush.bf16.msra.mxu0 %v4702
        %4737 = vmatmul.bf16.gmra.mxu0 %v4724
        %v4738 = vpop.f32.mrf.mxu0
        %v4739 = vadd.f32 0.0, %v4738
        %v4740 = vpop.f32.mrf.mxu0
        %v4741 = vadd.f32 0.0, %v4740
        %4742 = vmatmul.bf16.gmra.mxu0 %v4727
        %v4743 = vpop.f32.mrf.mxu0
        %v4744 = vadd.f32 0.0, %v4743
        %v4745 = vpop.f32.mrf.mxu0
        %v4746 = vadd.f32 0.0, %v4745
        %4747 = vdwg.mxu0
        %4748 = vmatpush.bf16.msra.mxu0 0
        %4749 = vmatpush.bf16.msra.mxu0 0
        %4750 = vmatpush.bf16.msra.mxu0 0
        %4751 = vmatpush.bf16.msra.mxu0 0
        %4752 = vmatpush.bf16.msra.mxu0 0
        %4753 = vmatpush.bf16.msra.mxu0 0
        %4754 = vmatpush.bf16.msra.mxu0 %v4706
        %4755 = vmatpush.bf16.msra.mxu0 %v4703
        %4756 = vmatmul.bf16.gmra.mxu0 %v4724
        %v4757 = vpop.f32.mrf.mxu0
        %v4758 = vadd.f32 0.0, %v4757
        %v4759 = vpop.f32.mrf.mxu0
        %v4760 = vadd.f32 0.0, %v4759
        %4761 = vmatmul.bf16.gmra.mxu0 %v4727
        %v4762 = vpop.f32.mrf.mxu0
        %v4763 = vadd.f32 0.0, %v4762
        %v4764 = vpop.f32.mrf.mxu0
        %v4765 = vadd.f32 0.0, %v4764
        %4766 = vdwg.mxu0
        %4767 = vmatpush.bf16.msra.mxu0 0
        %4768 = vmatpush.bf16.msra.mxu0 0
        %4769 = vmatpush.bf16.msra.mxu0 0
        %4770 = vmatpush.bf16.msra.mxu0 0
        %4771 = vmatpush.bf16.msra.mxu0 0
        %4772 = vmatpush.bf16.msra.mxu0 0
        %4773 = vmatpush.bf16.msra.mxu0 %v4707
        %4774 = vmatpush.bf16.msra.mxu0 %v4704
        %4775 = vmatmul.bf16.gmra.mxu0 %v4724
        %v4776 = vpop.f32.mrf.mxu0
        %v4777 = vadd.f32 0.0, %v4776
        %v4778 = vpop.f32.mrf.mxu0
        %v4779 = vadd.f32 0.0, %v4778
        %4780 = vmatmul.bf16.gmra.mxu0 %v4727
        %v4781 = vpop.f32.mrf.mxu0
        %v4782 = vadd.f32 0.0, %v4781
        %v4783 = vpop.f32.mrf.mxu0
        %v4784 = vadd.f32 0.0, %v4783
        %4785 = vdwg.mxu0
        %s4786 = scalar_lea.vmem %s3, 112
        %v4787 = vld [vmem:[%s4786] sm:$0xf]
        %v4788 = vld [vmem:[%s4786 + $0x4] sm:$0xf]
        %v4789 = vld [vmem:[%s4786 + $0x8] sm:$0xf]
        %v4790 = vld [vmem:[%s4786 + $0xc] sm:$0xf]
        %v4795 = vunpack.c.l.b16 %v4787
        %v4796 = vunpack.c.l.b16 %v4788
        %v4797 = vunpack.c.l.b16 %v4789
        %v4798 = vunpack.c.l.b16 %v4790
        %v4799 = vpack.c.b16 %v4796, %v4795
        %v4800 = vpack.c.b16 %v4798, %v4797
        %v4802 = vsel %vm2965, %v4799, 0
        %v4805 = vsel %vm2965, %v4800, 0
        %4807 = vmatpush.bf16.msra.mxu0 0
        %4808 = vmatpush.bf16.msra.mxu0 0
        %4809 = vmatpush.bf16.msra.mxu0 0
        %4810 = vmatpush.bf16.msra.mxu0 0
        %4811 = vmatpush.bf16.msra.mxu0 0
        %4812 = vmatpush.bf16.msra.mxu0 0
        %4813 = vmatpush.bf16.msra.mxu0 %v4705
        %4814 = vmatpush.bf16.msra.mxu0 %v4702
        %4815 = vmatmul.bf16.gmra.mxu0 %v4802
        %v4816 = vpop.f32.mrf.mxu0
        %v4817 = vadd.f32 0.0, %v4816
        %v4818 = vpop.f32.mrf.mxu0
        %v4819 = vadd.f32 0.0, %v4818
        %4820 = vmatmul.bf16.gmra.mxu0 %v4805
        %v4821 = vpop.f32.mrf.mxu0
        %v4822 = vadd.f32 0.0, %v4821
        %v4823 = vpop.f32.mrf.mxu0
        %v4824 = vadd.f32 0.0, %v4823
        %4825 = vdwg.mxu0
        %4826 = vmatpush.bf16.msra.mxu0 0
        %4827 = vmatpush.bf16.msra.mxu0 0
        %4828 = vmatpush.bf16.msra.mxu0 0
        %4829 = vmatpush.bf16.msra.mxu0 0
        %4830 = vmatpush.bf16.msra.mxu0 0
        %4831 = vmatpush.bf16.msra.mxu0 0
        %4832 = vmatpush.bf16.msra.mxu0 %v4706
        %4833 = vmatpush.bf16.msra.mxu0 %v4703
        %4834 = vmatmul.bf16.gmra.mxu0 %v4802
        %v4835 = vpop.f32.mrf.mxu0
        %v4836 = vadd.f32 0.0, %v4835
        %v4837 = vpop.f32.mrf.mxu0
        %v4838 = vadd.f32 0.0, %v4837
        %4839 = vmatmul.bf16.gmra.mxu0 %v4805
        %v4840 = vpop.f32.mrf.mxu0
        %v4841 = vadd.f32 0.0, %v4840
        %v4842 = vpop.f32.mrf.mxu0
        %v4843 = vadd.f32 0.0, %v4842
        %4844 = vdwg.mxu0
        %4845 = vmatpush.bf16.msra.mxu0 0
        %4846 = vmatpush.bf16.msra.mxu0 0
        %4847 = vmatpush.bf16.msra.mxu0 0
        %4848 = vmatpush.bf16.msra.mxu0 0
        %4849 = vmatpush.bf16.msra.mxu0 0
        %4850 = vmatpush.bf16.msra.mxu0 0
        %4851 = vmatpush.bf16.msra.mxu0 %v4707
        %4852 = vmatpush.bf16.msra.mxu0 %v4704
        %4853 = vmatmul.bf16.gmra.mxu0 %v4802
        %v4854 = vpop.f32.mrf.mxu0
        %v4855 = vadd.f32 0.0, %v4854
        %v4856 = vpop.f32.mrf.mxu0
        %v4857 = vadd.f32 0.0, %v4856
        %4858 = vmatmul.bf16.gmra.mxu0 %v4805
        %v4859 = vpop.f32.mrf.mxu0
        %v4860 = vadd.f32 0.0, %v4859
        %v4861 = vpop.f32.mrf.mxu0
        %v4862 = vadd.f32 0.0, %v4861
        %4863 = vdwg.mxu0
        %s4864 = scalar_lea.vmem %s3, 128
        %v4865 = vld [vmem:[%s4864] sm:$0xf]
        %v4866 = vld [vmem:[%s4864 + $0x4] sm:$0xf]
        %v4867 = vld [vmem:[%s4864 + $0x8] sm:$0xf]
        %v4868 = vld [vmem:[%s4864 + $0xc] sm:$0xf]
        %v4873 = vunpack.c.l.b16 %v4865
        %v4874 = vunpack.c.l.b16 %v4866
        %v4875 = vunpack.c.l.b16 %v4867
        %v4876 = vunpack.c.l.b16 %v4868
        %v4877 = vpack.c.b16 %v4874, %v4873
        %v4878 = vpack.c.b16 %v4876, %v4875
        %v4880 = vsel %vm2965, %v4877, 0
        %v4883 = vsel %vm2965, %v4878, 0
        %4885 = vmatpush.bf16.msra.mxu0 0
        %4886 = vmatpush.bf16.msra.mxu0 0
        %4887 = vmatpush.bf16.msra.mxu0 0
        %4888 = vmatpush.bf16.msra.mxu0 0
        %4889 = vmatpush.bf16.msra.mxu0 0
        %4890 = vmatpush.bf16.msra.mxu0 0
        %4891 = vmatpush.bf16.msra.mxu0 %v4705
        %4892 = vmatpush.bf16.msra.mxu0 %v4702
        %4893 = vmatmul.bf16.gmra.mxu0 %v4880
        %v4894 = vpop.f32.mrf.mxu0
        %v4895 = vadd.f32 0.0, %v4894
        %v4896 = vpop.f32.mrf.mxu0
        %v4897 = vadd.f32 0.0, %v4896
        %4898 = vmatmul.bf16.gmra.mxu0 %v4883
        %v4899 = vpop.f32.mrf.mxu0
        %v4900 = vadd.f32 0.0, %v4899
        %v4901 = vpop.f32.mrf.mxu0
        %v4902 = vadd.f32 0.0, %v4901
        %4903 = vdwg.mxu0
        %4904 = vmatpush.bf16.msra.mxu0 0
        %4905 = vmatpush.bf16.msra.mxu0 0
        %4906 = vmatpush.bf16.msra.mxu0 0
        %4907 = vmatpush.bf16.msra.mxu0 0
        %4908 = vmatpush.bf16.msra.mxu0 0
        %4909 = vmatpush.bf16.msra.mxu0 0
        %4910 = vmatpush.bf16.msra.mxu0 %v4706
        %4911 = vmatpush.bf16.msra.mxu0 %v4703
        %4912 = vmatmul.bf16.gmra.mxu0 %v4880
        %v4913 = vpop.f32.mrf.mxu0
        %v4914 = vadd.f32 0.0, %v4913
        %v4915 = vpop.f32.mrf.mxu0
        %v4916 = vadd.f32 0.0, %v4915
        %4917 = vmatmul.bf16.gmra.mxu0 %v4883
        %v4918 = vpop.f32.mrf.mxu0
        %v4919 = vadd.f32 0.0, %v4918
        %v4920 = vpop.f32.mrf.mxu0
        %v4921 = vadd.f32 0.0, %v4920
        %4922 = vdwg.mxu0
        %4923 = vmatpush.bf16.msra.mxu0 0
        %4924 = vmatpush.bf16.msra.mxu0 0
        %4925 = vmatpush.bf16.msra.mxu0 0
        %4926 = vmatpush.bf16.msra.mxu0 0
        %4927 = vmatpush.bf16.msra.mxu0 0
        %4928 = vmatpush.bf16.msra.mxu0 0
        %4929 = vmatpush.bf16.msra.mxu0 %v4707
        %4930 = vmatpush.bf16.msra.mxu0 %v4704
        %4931 = vmatmul.bf16.gmra.mxu0 %v4880
        %v4932 = vpop.f32.mrf.mxu0
        %v4933 = vadd.f32 0.0, %v4932
        %v4934 = vpop.f32.mrf.mxu0
        %v4935 = vadd.f32 0.0, %v4934
        %4936 = vmatmul.bf16.gmra.mxu0 %v4883
        %v4937 = vpop.f32.mrf.mxu0
        %v4938 = vadd.f32 0.0, %v4937
        %v4939 = vpop.f32.mrf.mxu0
        %v4940 = vadd.f32 0.0, %v4939
        %4941 = vdwg.mxu0
        %4942 = vrot.lane.b32.xlu0 %v4739, 1
        %v4943 = vpop.permute.xlu0 %4942
        %4944 = vrot.lane.b32.xlu0 %v4741, 1
        %v4945 = vpop.permute.xlu0 %4944
        %4946 = vrot.lane.b32.xlu0 %v4744, 1
        %v4947 = vpop.permute.xlu0 %4946
        %4948 = vrot.lane.b32.xlu0 %v4746, 1
        %v4949 = vpop.permute.xlu0 %4948
        %4950 = vrot.lane.b32.xlu0 %v4758, 1
        %v4951 = vpop.permute.xlu0 %4950
        %4952 = vrot.lane.b32.xlu0 %v4760, 1
        %v4953 = vpop.permute.xlu0 %4952
        %4954 = vrot.lane.b32.xlu0 %v4763, 1
        %v4955 = vpop.permute.xlu0 %4954
        %4956 = vrot.lane.b32.xlu0 %v4765, 1
        %v4957 = vpop.permute.xlu0 %4956
        %4958 = vrot.lane.b32.xlu0 %v4777, 1
        %v4959 = vpop.permute.xlu0 %4958
        %4960 = vrot.lane.b32.xlu0 %v4779, 1
        %v4961 = vpop.permute.xlu0 %4960
        %4962 = vrot.lane.b32.xlu0 %v4782, 1
        %v4963 = vpop.permute.xlu0 %4962
        %4964 = vrot.lane.b32.xlu0 %v4784, 1
        %v4965 = vpop.permute.xlu0 %4964
        %v4966 = vsel %vm3209, %v4951, %v4959
        %v4967 = vsel %vm3209, %v4953, %v4961
        %v4968 = vsel %vm3209, %v4955, %v4963
        %v4969 = vsel %vm3209, %v4957, %v4965
        %v4970 = vsel %vm3209, %v4943, %v4951
        %v4971 = vsel %vm3209, %v4945, %v4953
        %v4972 = vsel %vm3209, %v4947, %v4955
        %v4973 = vsel %vm3209, %v4949, %v4957
        %v4974 = vsel %vm3209, %v4959, %v4943
        %v4975 = vsel %vm3209, %v4961, %v4945
        %v4976 = vsel %vm3209, %v4963, %v4947
        %v4977 = vsel %vm3209, %v4965, %v4949
        %v4978 = vadd.f32 %v4974, %v4817
        %v4979 = vadd.f32 %v4970, %v4836
        %v4980 = vadd.f32 %v4966, %v4855
        %v4981 = vadd.f32 %v4975, %v4819
        %v4982 = vadd.f32 %v4971, %v4838
        %v4983 = vadd.f32 %v4967, %v4857
        %v4984 = vadd.f32 %v4976, %v4822
        %v4985 = vadd.f32 %v4972, %v4841
        %v4986 = vadd.f32 %v4968, %v4860
        %v4987 = vadd.f32 %v4977, %v4824
        %v4988 = vadd.f32 %v4973, %v4843
        %v4989 = vadd.f32 %v4969, %v4862
        %4990 = vrot.lane.b32.xlu0 %v4895, 127
        %v4991 = vpop.permute.xlu0 %4990
        %4992 = vrot.lane.b32.xlu0 %v4897, 127
        %v4993 = vpop.permute.xlu0 %4992
        %4994 = vrot.lane.b32.xlu0 %v4900, 127
        %v4995 = vpop.permute.xlu0 %4994
        %4996 = vrot.lane.b32.xlu0 %v4902, 127
        %v4997 = vpop.permute.xlu0 %4996
        %4998 = vrot.lane.b32.xlu0 %v4914, 127
        %v4999 = vpop.permute.xlu0 %4998
        %5000 = vrot.lane.b32.xlu0 %v4916, 127
        %v5001 = vpop.permute.xlu0 %5000
        %5002 = vrot.lane.b32.xlu0 %v4919, 127
        %v5003 = vpop.permute.xlu0 %5002
        %5004 = vrot.lane.b32.xlu0 %v4921, 127
        %v5005 = vpop.permute.xlu0 %5004
        %5006 = vrot.lane.b32.xlu0 %v4933, 127
        %v5007 = vpop.permute.xlu0 %5006
        %5008 = vrot.lane.b32.xlu0 %v4935, 127
        %v5009 = vpop.permute.xlu0 %5008
        %5010 = vrot.lane.b32.xlu0 %v4938, 127
        %v5011 = vpop.permute.xlu0 %5010
        %5012 = vrot.lane.b32.xlu0 %v4940, 127
        %v5013 = vpop.permute.xlu0 %5012
        %v5014 = vsel %vm3258, %v4999, %v5007
        %v5015 = vsel %vm3258, %v5001, %v5009
        %v5016 = vsel %vm3258, %v5003, %v5011
        %v5017 = vsel %vm3258, %v5005, %v5013
        %v5018 = vsel %vm3258, %v4991, %v4999
        %v5019 = vsel %vm3258, %v4993, %v5001
        %v5020 = vsel %vm3258, %v4995, %v5003
        %v5021 = vsel %vm3258, %v4997, %v5005
        %v5022 = vsel %vm3258, %v5007, %v4991
        %v5023 = vsel %vm3258, %v5009, %v4993
        %v5024 = vsel %vm3258, %v5011, %v4995
        %v5025 = vsel %vm3258, %v5013, %v4997
        %v5026 = vadd.f32 %v4978, %v5018
        %v5027 = vadd.f32 %v4979, %v5014
        %v5028 = vadd.f32 %v4980, %v5022
        %v5029 = vadd.f32 %v4981, %v5019
        %v5030 = vadd.f32 %v4982, %v5015
        %v5031 = vadd.f32 %v4983, %v5023
        %v5032 = vadd.f32 %v4984, %v5020
        %v5033 = vadd.f32 %v4985, %v5016
        %v5034 = vadd.f32 %v4986, %v5024
        %v5035 = vadd.f32 %v4987, %v5021
        %v5036 = vadd.f32 %v4988, %v5017
        %v5037 = vadd.f32 %v4989, %v5025
        %s5038 = scalar_lea.vmem %s4, 64
        %v5039 = vld [vmem:[%s5038] sm:$0xff]
        %v5040 = vld [vmem:[%s5038 + $0x8] sm:$0xff]
        %v5041 = vld [vmem:[%s5038 + $0x10] sm:$0xff]
        %v5042 = vld [vmem:[%s5038 + $0x18] sm:$0xff]
        %5044 = vset.pattern.permute.xlu0 0
        %5045 = vperm.xlu0 %5044, %v5039
        %v5046 = vpop.permute.xlu0 %5045
        %5049 = vset.pattern.permute.xlu0 0
        %5050 = vperm.xlu0 %5049, %v5040
        %v5051 = vpop.permute.xlu0 %5050
        %5054 = vset.pattern.permute.xlu0 0
        %5055 = vperm.xlu0 %5054, %v5041
        %v5056 = vpop.permute.xlu0 %5055
        %5059 = vset.pattern.permute.xlu0 0
        %5060 = vperm.xlu0 %5059, %v5042
        %v5061 = vpop.permute.xlu0 %5060
        %v5063 = vmul.f32 %v5026, %v5046
        %v5064 = vmul.f32 %v5027, %v5046
        %v5065 = vmul.f32 %v5028, %v5046
        %v5066 = vmul.f32 %v5029, %v5051
        %v5067 = vmul.f32 %v5030, %v5051
        %v5068 = vmul.f32 %v5031, %v5051
        %v5069 = vmul.f32 %v5032, %v5056
        %v5070 = vmul.f32 %v5033, %v5056
        %v5071 = vmul.f32 %v5034, %v5056
        %v5072 = vmul.f32 %v5035, %v5061
        %v5073 = vmul.f32 %v5036, %v5061
        %v5074 = vmul.f32 %v5037, %v5061
        %s5075 = scalar_lea.vmem %s5, 64
        %v5076 = vld [vmem:[%s5075] sm:$0xff]
        %v5077 = vld [vmem:[%s5075 + $0x8] sm:$0xff]
        %v5078 = vld [vmem:[%s5075 + $0x10] sm:$0xff]
        %v5079 = vld [vmem:[%s5075 + $0x18] sm:$0xff]
        %5081 = vset.pattern.permute.xlu0 0
        %5082 = vperm.xlu0 %5081, %v5076
        %v5083 = vpop.permute.xlu0 %5082
        %5086 = vset.pattern.permute.xlu0 0
        %5087 = vperm.xlu0 %5086, %v5077
        %v5088 = vpop.permute.xlu0 %5087
        %5091 = vset.pattern.permute.xlu0 0
        %5092 = vperm.xlu0 %5091, %v5078
        %v5093 = vpop.permute.xlu0 %5092
        %5096 = vset.pattern.permute.xlu0 0
        %5097 = vperm.xlu0 %5096, %v5079
        %v5098 = vpop.permute.xlu0 %5097
        %v5100 = vadd.f32 %v5063, %v5083
        %v5101 = vadd.f32 %v5064, %v5083
        %v5102 = vadd.f32 %v5065, %v5083
        %v5103 = vadd.f32 %v5066, %v5088
        %v5104 = vadd.f32 %v5067, %v5088
        %v5105 = vadd.f32 %v5068, %v5088
        %v5106 = vadd.f32 %v5069, %v5093
        %v5107 = vadd.f32 %v5070, %v5093
        %v5108 = vadd.f32 %v5071, %v5093
        %v5109 = vadd.f32 %v5072, %v5098
        %v5110 = vadd.f32 %v5073, %v5098
        %v5111 = vadd.f32 %v5074, %v5098
        %v5112 = vmax.f32 %v5100, 0.0
        %v5113 = vmax.f32 %v5101, 0.0
        %v5114 = vmax.f32 %v5102, 0.0
        %v5115 = vmax.f32 %v5103, 0.0
        %v5116 = vmax.f32 %v5104, 0.0
        %v5117 = vmax.f32 %v5105, 0.0
        %v5118 = vmax.f32 %v5106, 0.0
        %v5119 = vmax.f32 %v5107, 0.0
        %v5120 = vmax.f32 %v5108, 0.0
        %v5121 = vmax.f32 %v5109, 0.0
        %v5122 = vmax.f32 %v5110, 0.0
        %v5123 = vmax.f32 %v5111, 0.0
        %v5124 = vsel %vm2930, %v5112, 0.0
        %v5125 = vsel %vm2931, %v5113, 0.0
        %v5126 = vsel %vm2932, %v5114, 0.0
        %v5127 = vsel %vm2930, %v5115, 0.0
        %v5128 = vsel %vm2931, %v5116, 0.0
        %v5129 = vsel %vm2932, %v5117, 0.0
        %v5130 = vsel %vm2930, %v5118, 0.0
        %v5131 = vsel %vm2931, %v5119, 0.0
        %v5132 = vsel %vm2932, %v5120, 0.0
        %v5133 = vsel %vm2930, %v5121, 0.0
        %v5134 = vsel %vm2931, %v5122, 0.0
        %v5135 = vsel %vm2932, %v5123, 0.0
        %v5136 = vpack.c.bf16 %v5127, %v5124
        %v5137 = vpack.c.bf16 %v5128, %v5125
        %v5138 = vpack.c.bf16 %v5129, %v5126
        %v5139 = vpack.c.bf16 %v5133, %v5130
        %v5140 = vpack.c.bf16 %v5134, %v5131
        %v5141 = vpack.c.bf16 %v5135, %v5132
        %s5142 = scalar_lea.vmem %s6, 96
        %v5143 = vld [vmem:[%s5142] sm:$0xf]
        %v5144 = vld [vmem:[%s5142 + $0x4] sm:$0xf]
        %v5145 = vld [vmem:[%s5142 + $0x8] sm:$0xf]
        %v5146 = vld [vmem:[%s5142 + $0xc] sm:$0xf]
        %v5151 = vunpack.c.l.b16 %v5143
        %v5152 = vunpack.c.l.b16 %v5144
        %v5153 = vunpack.c.l.b16 %v5145
        %v5154 = vunpack.c.l.b16 %v5146
        %v5155 = vpack.c.b16 %v5152, %v5151
        %v5156 = vpack.c.b16 %v5154, %v5153
        %v5158 = vsel %vm2965, %v5155, 0
        %v5161 = vsel %vm2965, %v5156, 0
        %5163 = vmatpush.bf16.msra.mxu0 0
        %5164 = vmatpush.bf16.msra.mxu0 0
        %5165 = vmatpush.bf16.msra.mxu0 0
        %5166 = vmatpush.bf16.msra.mxu0 0
        %5167 = vmatpush.bf16.msra.mxu0 0
        %5168 = vmatpush.bf16.msra.mxu0 0
        %5169 = vmatpush.bf16.msra.mxu0 %v5139
        %5170 = vmatpush.bf16.msra.mxu0 %v5136
        %5171 = vmatmul.bf16.gmra.mxu0 %v5158
        %v5172 = vpop.f32.mrf.mxu0
        %v5173 = vadd.f32 0.0, %v5172
        %v5174 = vpop.f32.mrf.mxu0
        %v5175 = vadd.f32 0.0, %v5174
        %5176 = vmatmul.bf16.gmra.mxu0 %v5161
        %v5177 = vpop.f32.mrf.mxu0
        %v5178 = vadd.f32 0.0, %v5177
        %v5179 = vpop.f32.mrf.mxu0
        %v5180 = vadd.f32 0.0, %v5179
        %5181 = vdwg.mxu0
        %5182 = vmatpush.bf16.msra.mxu0 0
        %5183 = vmatpush.bf16.msra.mxu0 0
        %5184 = vmatpush.bf16.msra.mxu0 0
        %5185 = vmatpush.bf16.msra.mxu0 0
        %5186 = vmatpush.bf16.msra.mxu0 0
        %5187 = vmatpush.bf16.msra.mxu0 0
        %5188 = vmatpush.bf16.msra.mxu0 %v5140
        %5189 = vmatpush.bf16.msra.mxu0 %v5137
        %5190 = vmatmul.bf16.gmra.mxu0 %v5158
        %v5191 = vpop.f32.mrf.mxu0
        %v5192 = vadd.f32 0.0, %v5191
        %v5193 = vpop.f32.mrf.mxu0
        %v5194 = vadd.f32 0.0, %v5193
        %5195 = vmatmul.bf16.gmra.mxu0 %v5161
        %v5196 = vpop.f32.mrf.mxu0
        %v5197 = vadd.f32 0.0, %v5196
        %v5198 = vpop.f32.mrf.mxu0
        %v5199 = vadd.f32 0.0, %v5198
        %5200 = vdwg.mxu0
        %s5201 = scalar_lea.vmem %s6, 112
        %v5202 = vld [vmem:[%s5201] sm:$0xf]
        %v5203 = vld [vmem:[%s5201 + $0x4] sm:$0xf]
        %v5204 = vld [vmem:[%s5201 + $0x8] sm:$0xf]
        %v5205 = vld [vmem:[%s5201 + $0xc] sm:$0xf]
        %v5210 = vunpack.c.l.b16 %v5202
        %v5211 = vunpack.c.l.b16 %v5203
        %v5212 = vunpack.c.l.b16 %v5204
        %v5213 = vunpack.c.l.b16 %v5205
        %v5214 = vpack.c.b16 %v5211, %v5210
        %v5215 = vpack.c.b16 %v5213, %v5212
        %v5217 = vsel %vm2965, %v5214, 0
        %v5220 = vsel %vm2965, %v5215, 0
        %5222 = vmatpush.bf16.msra.mxu0 0
        %5223 = vmatpush.bf16.msra.mxu0 0
        %5224 = vmatpush.bf16.msra.mxu0 0
        %5225 = vmatpush.bf16.msra.mxu0 0
        %5226 = vmatpush.bf16.msra.mxu0 0
        %5227 = vmatpush.bf16.msra.mxu0 0
        %5228 = vmatpush.bf16.msra.mxu0 %v5140
        %5229 = vmatpush.bf16.msra.mxu0 %v5137
        %5230 = vmatmul.bf16.gmra.mxu0 %v5217
        %v5231 = vpop.f32.mrf.mxu0
        %v5232 = vadd.f32 0.0, %v5231
        %v5233 = vpop.f32.mrf.mxu0
        %v5234 = vadd.f32 0.0, %v5233
        %5235 = vmatmul.bf16.gmra.mxu0 %v5220
        %v5236 = vpop.f32.mrf.mxu0
        %v5237 = vadd.f32 0.0, %v5236
        %v5238 = vpop.f32.mrf.mxu0
        %v5239 = vadd.f32 0.0, %v5238
        %5240 = vdwg.mxu0
        %s5241 = scalar_lea.vmem %s6, 128
        %v5242 = vld [vmem:[%s5241] sm:$0xf]
        %v5243 = vld [vmem:[%s5241 + $0x4] sm:$0xf]
        %v5244 = vld [vmem:[%s5241 + $0x8] sm:$0xf]
        %v5245 = vld [vmem:[%s5241 + $0xc] sm:$0xf]
        %v5250 = vunpack.c.l.b16 %v5242
        %v5251 = vunpack.c.l.b16 %v5243
        %v5252 = vunpack.c.l.b16 %v5244
        %v5253 = vunpack.c.l.b16 %v5245
        %v5254 = vpack.c.b16 %v5251, %v5250
        %v5255 = vpack.c.b16 %v5253, %v5252
        %v5257 = vsel %vm2965, %v5254, 0
        %v5260 = vsel %vm2965, %v5255, 0
        %5262 = vmatpush.bf16.msra.mxu0 0
        %5263 = vmatpush.bf16.msra.mxu0 0
        %5264 = vmatpush.bf16.msra.mxu0 0
        %5265 = vmatpush.bf16.msra.mxu0 0
        %5266 = vmatpush.bf16.msra.mxu0 0
        %5267 = vmatpush.bf16.msra.mxu0 0
        %5268 = vmatpush.bf16.msra.mxu0 %v5140
        %5269 = vmatpush.bf16.msra.mxu0 %v5137
        %5270 = vmatmul.bf16.gmra.mxu0 %v5257
        %v5271 = vpop.f32.mrf.mxu0
        %v5272 = vadd.f32 0.0, %v5271
        %v5273 = vpop.f32.mrf.mxu0
        %v5274 = vadd.f32 0.0, %v5273
        %5275 = vmatmul.bf16.gmra.mxu0 %v5260
        %v5276 = vpop.f32.mrf.mxu0
        %v5277 = vadd.f32 0.0, %v5276
        %v5278 = vpop.f32.mrf.mxu0
        %v5279 = vadd.f32 0.0, %v5278
        %5280 = vdwg.mxu0
        %5281 = vmatpush.bf16.msra.mxu0 0
        %5282 = vmatpush.bf16.msra.mxu0 0
        %5283 = vmatpush.bf16.msra.mxu0 0
        %5284 = vmatpush.bf16.msra.mxu0 0
        %5285 = vmatpush.bf16.msra.mxu0 0
        %5286 = vmatpush.bf16.msra.mxu0 0
        %5287 = vmatpush.bf16.msra.mxu0 %v5141
        %5288 = vmatpush.bf16.msra.mxu0 %v5138
        %5289 = vmatmul.bf16.gmra.mxu0 %v5257
        %v5290 = vpop.f32.mrf.mxu0
        %v5291 = vadd.f32 0.0, %v5290
        %v5292 = vpop.f32.mrf.mxu0
        %v5293 = vadd.f32 0.0, %v5292
        %5294 = vmatmul.bf16.gmra.mxu0 %v5260
        %v5295 = vpop.f32.mrf.mxu0
        %v5296 = vadd.f32 0.0, %v5295
        %v5297 = vpop.f32.mrf.mxu0
        %v5298 = vadd.f32 0.0, %v5297
        %5299 = vdwg.mxu0
        %5300 = vrot.lane.b32.xlu0 %v5173, 1
        %v5301 = vpop.permute.xlu0 %5300
        %5302 = vrot.lane.b32.xlu0 %v5175, 1
        %v5303 = vpop.permute.xlu0 %5302
        %5304 = vrot.lane.b32.xlu0 %v5178, 1
        %v5305 = vpop.permute.xlu0 %5304
        %5306 = vrot.lane.b32.xlu0 %v5180, 1
        %v5307 = vpop.permute.xlu0 %5306
        %5308 = vrot.lane.b32.xlu0 %v5192, 1
        %v5309 = vpop.permute.xlu0 %5308
        %5310 = vrot.lane.b32.xlu0 %v5194, 1
        %v5311 = vpop.permute.xlu0 %5310
        %5312 = vrot.lane.b32.xlu0 %v5197, 1
        %v5313 = vpop.permute.xlu0 %5312
        %5314 = vrot.lane.b32.xlu0 %v5199, 1
        %v5315 = vpop.permute.xlu0 %5314
        %v5316 = vsel %vm3209, %v5301, %v5309
        %v5317 = vsel %vm3209, %v5303, %v5311
        %v5318 = vsel %vm3209, %v5305, %v5313
        %v5319 = vsel %vm3209, %v5307, %v5315
        %v5320 = vadd.f32 %v5316, %v5232
        %v5321 = vadd.f32 %v5317, %v5234
        %v5322 = vadd.f32 %v5318, %v5237
        %v5323 = vadd.f32 %v5319, %v5239
        %5324 = vrot.lane.b32.xlu0 %v5272, 127
        %v5325 = vpop.permute.xlu0 %5324
        %5326 = vrot.lane.b32.xlu0 %v5274, 127
        %v5327 = vpop.permute.xlu0 %5326
        %5328 = vrot.lane.b32.xlu0 %v5277, 127
        %v5329 = vpop.permute.xlu0 %5328
        %5330 = vrot.lane.b32.xlu0 %v5279, 127
        %v5331 = vpop.permute.xlu0 %5330
        %5332 = vrot.lane.b32.xlu0 %v5291, 127
        %v5333 = vpop.permute.xlu0 %5332
        %5334 = vrot.lane.b32.xlu0 %v5293, 127
        %v5335 = vpop.permute.xlu0 %5334
        %5336 = vrot.lane.b32.xlu0 %v5296, 127
        %v5337 = vpop.permute.xlu0 %5336
        %5338 = vrot.lane.b32.xlu0 %v5298, 127
        %v5339 = vpop.permute.xlu0 %5338
        %v5340 = vsel %vm3258, %v5325, %v5333
        %v5341 = vsel %vm3258, %v5327, %v5335
        %v5342 = vsel %vm3258, %v5329, %v5337
        %v5343 = vsel %vm3258, %v5331, %v5339
        %v5344 = vadd.f32 %v5320, %v5340
        %v5345 = vadd.f32 %v5321, %v5341
        %v5346 = vadd.f32 %v5322, %v5342
        %v5347 = vadd.f32 %v5323, %v5343
        %s5348 = scalar_lea.vmem %s7, 64
        %v5349 = vld [vmem:[%s5348] sm:$0xff]
        %v5350 = vld [vmem:[%s5348 + $0x8] sm:$0xff]
        %v5351 = vld [vmem:[%s5348 + $0x10] sm:$0xff]
        %v5352 = vld [vmem:[%s5348 + $0x18] sm:$0xff]
        %5354 = vset.pattern.permute.xlu0 0
        %5355 = vperm.xlu0 %5354, %v5349
        %v5356 = vpop.permute.xlu0 %5355
        %5359 = vset.pattern.permute.xlu0 0
        %5360 = vperm.xlu0 %5359, %v5350
        %v5361 = vpop.permute.xlu0 %5360
        %5364 = vset.pattern.permute.xlu0 0
        %5365 = vperm.xlu0 %5364, %v5351
        %v5366 = vpop.permute.xlu0 %5365
        %5369 = vset.pattern.permute.xlu0 0
        %5370 = vperm.xlu0 %5369, %v5352
        %v5371 = vpop.permute.xlu0 %5370
        %v5373 = vmul.f32 %v5344, %v5356
        %v5374 = vmul.f32 %v5345, %v5361
        %v5375 = vmul.f32 %v5346, %v5366
        %v5376 = vmul.f32 %v5347, %v5371
        %s5377 = scalar_lea.vmem %s8, 64
        %v5378 = vld [vmem:[%s5377] sm:$0xff]
        %v5379 = vld [vmem:[%s5377 + $0x8] sm:$0xff]
        %v5380 = vld [vmem:[%s5377 + $0x10] sm:$0xff]
        %v5381 = vld [vmem:[%s5377 + $0x18] sm:$0xff]
        %5383 = vset.pattern.permute.xlu0 0
        %5384 = vperm.xlu0 %5383, %v5378
        %v5385 = vpop.permute.xlu0 %5384
        %5388 = vset.pattern.permute.xlu0 0
        %5389 = vperm.xlu0 %5388, %v5379
        %v5390 = vpop.permute.xlu0 %5389
        %5393 = vset.pattern.permute.xlu0 0
        %5394 = vperm.xlu0 %5393, %v5380
        %v5395 = vpop.permute.xlu0 %5394
        %5398 = vset.pattern.permute.xlu0 0
        %5399 = vperm.xlu0 %5398, %v5381
        %v5400 = vpop.permute.xlu0 %5399
        %v5402 = vadd.f32 %v5373, %v5385
        %v5403 = vadd.f32 %v5374, %v5390
        %v5404 = vadd.f32 %v5375, %v5395
        %v5405 = vadd.f32 %v5376, %v5400
        %v5406 = vadd.f32 %v5402, %v4691
        %v5407 = vadd.f32 %v5403, %v4694
        %v5408 = vadd.f32 %v5404, %v4697
        %v5409 = vadd.f32 %v5405, %v4700
        %v5410 = vmax.f32 %v5406, 0.0
        %v5411 = vmax.f32 %v5407, 0.0
        %v5412 = vmax.f32 %v5408, 0.0
        %v5413 = vmax.f32 %v5409, 0.0
        %v5414 = vsel %vm2931, %v5410, 0.0
        %v5415 = vsel %vm2931, %v5411, 0.0
        %v5416 = vsel %vm2931, %v5412, 0.0
        %v5417 = vsel %vm2931, %v5413, 0.0
        %5418 = vst [vmem:[%s467] sm:$0xff] %v5414
        %5419 = vst [vmem:[%s467 + $0x8] sm:$0xff] %v5415
        %5420 = vst [vmem:[%s467 + $0x10] sm:$0xff] %v5416
        %5421 = vst [vmem:[%s467 + $0x18] sm:$0xff] %v5417
      $region64: #{tpu_custom_call.1} parent=55 // pred_fallthru
        _
      %p5422 = scmp.lt.s32.totalorder %s24, 1
      %s5423 = scalar_select %p5422, %s24, 1
      %p5424 = scmp.lt.s32.totalorder %s25, 0
      %s5425 = scalar_select %p5424, %s25, 0
      %s5426 = smul.addr %s5423, 4
      %s5427 = sadd.s32 %s5425, %s5426
      %s5428 = smul.addr %s5427, 8
      %s5429 = scalar_lea.vmem %s9, %s5428
      // Predicated region
      $region65: #{tpu_custom_call.1} parent=55 // pred_check
        %p5430 = pneg %p274
      $region66: #{tpu_custom_call.1} parent=55 // pred_check_branch
        %5432 = sbr.rel (%p5430) target = $region68
      $region67: #{tpu_custom_call.1} parent=55 // pred_region
        _
      $region68: #{tpu_custom_call.1} parent=55 // pred_fallthru
        _
    $region56: #{tpu_custom_call.1} parent=5 // pred_fallthru
      _
    %p5433 = scmp.le.s32.totalorder 2, %s15
    // Predicated region
    $region69: #{tpu_custom_call.1} parent=5 // pred_check
      %p5434 = pneg %p5433
    $region70: #{tpu_custom_call.1} parent=5 // pred_check_branch
      %5436 = sbr.rel (%p5434) target = $region72
    $region71: #{tpu_custom_call.1} parent=5 // pred_region
      %s5437 = ssub.s32 %s15, 2
      // Predicated region
      $region73: #{tpu_custom_call.1} parent=71 // pred_check
        %p5438 = pneg %p280
      $region74: #{tpu_custom_call.1} parent=71 // pred_check_branch
        %5440 = sbr.rel (%p5438) target = $region76
      $region75: #{tpu_custom_call.1} parent=71 // pred_region
        %p5441 = scmp.lt.s32.totalorder %s26, 1
        %s5442 = scalar_select %p5441, %s26, 1
        %p5443 = scmp.lt.s32.totalorder %s27, 0
        %s5444 = scalar_select %p5443, %s27, 0
        %s5445 = smul.addr %s5442, 4
        %s5446 = sadd.s32 %s5444, %s5445
        %s5447 = smul.addr %s5446, 8
        %s5448 = scalar_lea.vmem %s9, %s5447
      $region76: #{tpu_custom_call.1} parent=71 // pred_fallthru
        _
    $region72: #{tpu_custom_call.1} parent=5 // pred_fallthru
      _
  $region6: #{tpu_custom_call.1} parent=0 // loop_footer
    %s19 = sadd.s32 1, %s15
  $region7: #{tpu_custom_call.1} parent=0 // loop_footer_branch
    %14 = sbr.rel target = $region3
  $region8: #{tpu_custom_call.1} parent=0 // loop_exit
    _

</llo_original>
